<compile_context>
chip_gen: v6e
topology: v6e:2x2x1
jax: 0.10.0
libtpu: 0.0.40
codegen_flags: <defaults>
</compile_context>

<pallas_src>
import functools
import math

import jax
import jax.numpy as jnp
from jax import lax
from jax.experimental import pallas as pl
from jax.experimental.pallas import tpu as pltpu


def _round_up(a, m):
    return (a + m - 1) // m * m


def _sigmoid(x):
    # sigmoid(x) = 0.5 * tanh(0.5 x) + 0.5  -> a single EUP transcendental.
    return 0.5 * jnp.tanh(0.5 * x) + 0.5


def _lstm_kernel(wx_ref, v_ref, h0_ref, c0_ref,
                 hseq_ref, h_out_ref, c_out_ref,
                 h_sc, c_sc, *, hidden_pad, t_chunk, seq_len, unroll):
    """One grid step = one chunk of `t_chunk` LSTM time steps.

    Grid = (batch_blocks [parallel], time_chunks [arbitrary, serial]).
    h/c state persists across time chunks in VMEM scratch.
    Fused gate layout along the 4Hp axis: [ i | f | o | g ].
    """
    ci = pl.program_id(1)          # time-chunk index (serial recurrence axis)
    Hp = hidden_pad

    @pl.when(ci == 0)
    def _():
        h_sc[...] = h0_ref[...].astype(jnp.float32)
        c_sc[...] = c0_ref[...].astype(jnp.float32)

    v = v_ref[...]                 # resident across the whole grid
    chunk_base = ci * t_chunk
    last_t = seq_len - 1

    def step(t, carry):
        h, c = carry
        # Per-step work is only the recurrent matmul; x@U + b was hoisted.
        gates = wx_ref[t].astype(jnp.float32) + jnp.dot(
            h.astype(v.dtype), v, preferred_element_type=jnp.float32)
        # i/f/o share one fused sigmoid over a contiguous (bs, 3Hp) slab.
        sig = _sigmoid(gates[:, :3 * Hp])
        i_t = sig[:, 0 * Hp:1 * Hp]
        f_t = sig[:, 1 * Hp:2 * Hp]
        o_t = sig[:, 2 * Hp:3 * Hp]
        g_t = jnp.tanh(gates[:, 3 * Hp:4 * Hp])
        c_new = f_t * c + i_t * g_t
        h_new = o_t * jnp.tanh(c_new)
        hseq_ref[t] = h_new.astype(hseq_ref.dtype)

        # Write the final (h, c) exactly once, at the last *real* time step
        # (time may be padded to a multiple of t_chunk).  Keeps the loop carry
        # to just (h, c) -- no extra live arrays or per-step selects.
        @pl.when((chunk_base + t) == last_t)
        def _():
            h_out_ref[...] = h_new.astype(h_out_ref.dtype)
            c_out_ref[...] = c_new.astype(c_out_ref.dtype)

        return h_new, c_new

    h, c = lax.fori_loop(0, t_chunk, step, (h_sc[...], c_sc[...]),
                         unroll=unroll)
    h_sc[...] = h
    c_sc[...] = c


def lstm_forward(x, params, init_states=None, *,
                 t_chunk=32, batch_block=128,
                 weight_dtype=jnp.bfloat16, wx_dtype=jnp.bfloat16,
                 hseq_dtype=None, time_major_output=False):
    """x: (batch, seq, input_sz). Returns (hidden_seq (b,s,H), (h_T, c_T)).

    weight_dtype / wx_dtype default to bf16 (MXU-native, half the HBM/VMEM
    traffic); state and accumulation stay f32.  Pass float32 for both to get
    bit-tight agreement with the reference.
    """
    bs, seq, _ = x.shape
    H = params["U_i"].shape[1]
    out_dtype = hseq_dtype if hseq_dtype is not None else x.dtype

    # ---- padded / tiled sizes --------------------------------------------
    Hp = _round_up(H, 128)                       # lane-aligned hidden size
    bs_block = min(_round_up(bs, 8), _round_up(batch_block, 8))
    bs_p = _round_up(bs, bs_block)
    # v7x megacore: ensure the "parallel" batch axis has >= 2 blocks whenever
    # there is enough batch to split, so both TensorCores get work.
    if bs_p == bs_block and bs_p >= 16:
        bs_block = _round_up(bs_p // 2, 8)
        bs_p = _round_up(bs, bs_block)

    tc = max(1, min(t_chunk, seq))
    # Prefer a chunk size that divides seq (no wasted padded tail steps),
    # without shrinking the chunk by more than 2x.
    for cand in range(tc, max(tc // 2, 1) - 1, -1):
        if seq % cand == 0:
            tc = cand
            break

    # ---- VMEM budget: shrink tc / bs_block to fit v7x's 64 MiB -------------
    def vmem_estimate(tc_, bsb_):
        def nbytes(shape, dt):
            return math.prod(shape) * jnp.dtype(dt).itemsize
        est = 0
        est += 2 * nbytes((tc_, bsb_, 4 * Hp), wx_dtype)     # wx blocks (2 bufs)
        est += 2 * nbytes((tc_, bsb_, Hp), out_dtype)        # hseq blocks
        est += 2 * nbytes((Hp, 4 * Hp), weight_dtype)        # V (assume 2 bufs)
        est += 4 * 2 * nbytes((bsb_, Hp), jnp.float32)       # h0,c0,h_T,c_T
        est += 2 * nbytes((bsb_, Hp), jnp.float32)           # h/c scratch
        return est

    VMEM_BUDGET = 44 * 1024 * 1024
    while vmem_estimate(tc, bs_block) > VMEM_BUDGET and tc > 1:
        tc = max(1, tc // 2)
    while vmem_estimate(tc, bs_block) > VMEM_BUDGET and bs_block > 8:
        bs_block = max(8, bs_block // 2)
    # TODO(synk): for very large H (>=2048 on v7x) additionally tile the
    # recurrent matmul over the 4Hp gate axis so V streams in column blocks.

    seq_p = _round_up(seq, tc)
    bs_p = _round_up(bs, bs_block)
    n_bblocks = bs_p // bs_block
    n_chunks = seq_p // tc
    unroll = tc if tc <= 8 else next(u for u in (8, 4, 2, 1) if tc % u == 0)

    # ---- fused / padded parameters, gate layout [ i | f | o | g ] ----------
    def pad_cols(w):   # (r, H) -> (r, Hp)
        return jnp.pad(w.astype(jnp.float32), ((0, 0), (0, Hp - H)))

    def pad_bias(v):   # (H,) -> (Hp,)
        return jnp.pad(v.astype(jnp.float32), (0, Hp - H))

    U = jnp.concatenate([pad_cols(params["U_i"]), pad_cols(params["U_f"]),
                         pad_cols(params["U_o"]), pad_cols(params["U_c"])],
                        axis=1)                                   # (D, 4Hp)
    V = jnp.concatenate([pad_cols(params["V_i"]), pad_cols(params["V_f"]),
                         pad_cols(params["V_o"]), pad_cols(params["V_c"])],
                        axis=1)                                   # (H, 4Hp)
    V = jnp.pad(V, ((0, Hp - H), (0, 0)))                         # (Hp, 4Hp)
    b = jnp.concatenate([pad_bias(params["b_i"]), pad_bias(params["b_f"]),
                         pad_bias(params["b_o"]), pad_bias(params["b_c"])],
                        axis=0)                                   # (4Hp,)

    # ---- hoisted input projection (one big parallel matmul, time-major) ----
    x_p = jnp.pad(x.astype(jnp.float32),
                  ((0, bs_p - bs), (0, seq_p - seq), (0, 0)))
    wx = (jnp.einsum("btd,dg->tbg", x_p, U) + b[None, None, :]).astype(wx_dtype)
    V_k = V.astype(weight_dtype)

    # Initial state (module semantics: zeros when init_states is None).
    if init_states is None:
        h0 = jnp.zeros((bs_p, Hp), jnp.float32)
        c0 = jnp.zeros((bs_p, Hp), jnp.float32)
    else:
        h0 = jnp.pad(init_states[0].astype(jnp.float32),
                     ((0, bs_p - bs), (0, Hp - H)))
        c0 = jnp.pad(init_states[1].astype(jnp.float32),
                     ((0, bs_p - bs), (0, Hp - H)))

    kernel = functools.partial(_lstm_kernel, hidden_pad=Hp, t_chunk=tc,
                               seq_len=seq, unroll=unroll)
    vmem_limit = int(min(max(vmem_estimate(tc, bs_block) * 1.3,
                             32 * 1024 * 1024),
                         128 * 1024 * 1024))

    def run(single_buffer_v):
        v_spec_kwargs = {}
        if single_buffer_v:
            # V has a constant block index (DMA'd once) -> one buffer suffices.
            v_spec_kwargs["pipeline_mode"] = pl.Buffered(1)
        return pl.pallas_call(
            kernel,
            out_shape=(
                jax.ShapeDtypeStruct((seq_p, bs_p, Hp), out_dtype),
                jax.ShapeDtypeStruct((bs_p, Hp), jnp.float32),
                jax.ShapeDtypeStruct((bs_p, Hp), jnp.float32),
            ),
            grid_spec=pltpu.PrefetchScalarGridSpec(
                num_scalar_prefetch=0,
                grid=(n_bblocks, n_chunks),
                in_specs=[
                    # precomputed gate pre-activations: one time-chunk per step
                    pl.BlockSpec((tc, bs_block, 4 * Hp),
                                 lambda bb, ci: (ci, bb, 0)),
                    # recurrent weights: constant index -> resident
                    pl.BlockSpec((Hp, 4 * Hp), lambda bb, ci: (0, 0),
                                 **v_spec_kwargs),
                    pl.BlockSpec((bs_block, Hp), lambda bb, ci: (bb, 0)),  # h0
                    pl.BlockSpec((bs_block, Hp), lambda bb, ci: (bb, 0)),  # c0
                ],
                out_specs=[
                    pl.BlockSpec((tc, bs_block, Hp), lambda bb, ci: (ci, bb, 0)),
                    pl.BlockSpec((bs_block, Hp), lambda bb, ci: (bb, 0)),  # h_T
                    pl.BlockSpec((bs_block, Hp), lambda bb, ci: (bb, 0)),  # c_T
                ],
                scratch_shapes=[
                    pltpu.VMEM((bs_block, Hp), jnp.float32),   # h state
                    pltpu.VMEM((bs_block, Hp), jnp.float32),   # c state
                ],
            ),
            compiler_params=pltpu.CompilerParams(
                # batch blocks independent (v7x megacore); time is serial
                dimension_semantics=("parallel", "arbitrary"),
                vmem_limit_bytes=vmem_limit),
        )(wx, V_k, h0, c0)

    try:
        hseq_tm, h_T, c_T = run(True)
    except Exception:
        # Fallback for JAX versions without pipeline_mode on pallas_call
        # BlockSpecs: default double-buffered V (correct, just more VMEM).
        hseq_tm, h_T, c_T = run(False)

    h_T = h_T[:bs, :H]
    c_T = c_T[:bs, :H]
    hseq = hseq_tm[:seq, :bs, :H]
    if not time_major_output:
        # Module semantics: (batch, seq, hidden).  Pass time_major_output=True
        # to skip this extra HBM round-trip when the consumer accepts (S,B,H).
        hseq = jnp.transpose(hseq, (1, 0, 2))
    return hseq, (h_T, c_T)


def init_params(key, input_sz, hidden_sz):
    """Deterministic init mimicking uniform(-1/sqrt(H), 1/sqrt(H))."""
    names = ["U_i", "V_i", "b_i", "U_f", "V_f", "b_f",
             "U_c", "V_c", "b_c", "U_o", "V_o", "b_o"]
    shapes = {"U": (input_sz, hidden_sz), "V": (hidden_sz, hidden_sz),
              "b": (hidden_sz,)}
    bound = 1.0 / (hidden_sz ** 0.5)
    params = {}
    keys = jax.random.split(key, len(names))
    for k, name in zip(keys, names):
        params[name] = jax.random.uniform(
            k, shapes[name[0]], dtype=jnp.float32, minval=-bound, maxval=bound)
    return params


def lstm_reference(x, params, init_states=None):
    """Pure-JAX reference matching the PyTorch forward exactly."""
    bs, seq, _ = x.shape
    H = params["U_i"].shape[1]
    if init_states is None:
        h = jnp.zeros((bs, H), x.dtype)
        c = jnp.zeros((bs, H), x.dtype)
    else:
        h, c = init_states
    outs = []
    for t in range(seq):
        x_t = x[:, t, :]
        i_t = jax.nn.sigmoid(x_t @ params["U_i"] + h @ params["V_i"] + params["b_i"])
        f_t = jax.nn.sigmoid(x_t @ params["U_f"] + h @ params["V_f"] + params["b_f"])
        g_t = jnp.tanh(x_t @ params["U_c"] + h @ params["V_c"] + params["b_c"])
        o_t = jax.nn.sigmoid(x_t @ params["U_o"] + h @ params["V_o"] + params["b_o"])
        c = f_t * c + i_t * g_t
        h = o_t * jnp.tanh(c)
        outs.append(h)
    return jnp.stack(outs, axis=1), (h, c)


if __name__ == "__main__":
    batch, seq, input_sz, hidden_sz = 2, 8, 16, 32

    key = jax.random.PRNGKey(0)
    k_x, k_p, k_h, k_c = jax.random.split(key, 4)
    x = jax.random.normal(k_x, (batch, seq, input_sz), dtype=jnp.float32)
    params = init_params(k_p, input_sz, hidden_sz)

    ref_seq, (ref_h, ref_c) = lstm_reference(x, params)

    # --- f32 weights / f32 wx: tight agreement with the reference ----------
    hseq32, (h32, c32) = lstm_forward(x, params,
                                      weight_dtype=jnp.float32,
                                      wx_dtype=jnp.float32)
    jax.block_until_ready((hseq32, h32, c32))
    assert hseq32.shape == (batch, seq, hidden_sz)
    assert jnp.allclose(hseq32, ref_seq, atol=1e-5, rtol=1e-5)
    assert jnp.allclose(h32, ref_h, atol=1e-5, rtol=1e-5)
    assert jnp.allclose(c32, ref_c, atol=1e-5, rtol=1e-5)

    # --- f32 path with explicit init_states ---------------------------------
    h0 = 0.1 * jax.random.normal(k_h, (batch, hidden_sz), dtype=jnp.float32)
    c0 = 0.1 * jax.random.normal(k_c, (batch, hidden_sz), dtype=jnp.float32)
    ref_seq_i, (ref_h_i, ref_c_i) = lstm_reference(x, params, (h0, c0))
    hseq_i, (h_i, c_i) = lstm_forward(x, params, init_states=(h0, c0),
                                      weight_dtype=jnp.float32,
                                      wx_dtype=jnp.float32)
    jax.block_until_ready((hseq_i, h_i, c_i))
    assert jnp.allclose(hseq_i, ref_seq_i, atol=1e-5, rtol=1e-5)
    assert jnp.allclose(h_i, ref_h_i, atol=1e-5, rtol=1e-5)
    assert jnp.allclose(c_i, ref_c_i, atol=1e-5, rtol=1e-5)

    # --- default bf16 V + bf16 wx (MXU-native), f32 state/accumulation ------
    hseq_bf, (h_bf, c_bf) = lstm_forward(x, params)
    jax.block_until_ready((hseq_bf, h_bf, c_bf))
    assert jnp.allclose(hseq_bf, ref_seq, atol=5e-2, rtol=5e-2)
    assert jnp.allclose(h_bf, ref_h, atol=5e-2, rtol=5e-2)
    assert jnp.allclose(c_bf, ref_c, atol=5e-2, rtol=5e-2)

    print("KERNEL_OK")
</pallas_src>

<mosaic_0001>
module attributes {stable_mosaic.version = 11 : i64} {
  func.func @_lstm_kernel(%arg0: i32, %arg1: i32, %arg2: memref<8x8x512xf32, #tpu.memory_space<vmem>>, %arg3: memref<128x512xf32, #tpu.memory_space<vmem>>, %arg4: memref<8x128xf32, #tpu.memory_space<vmem>>, %arg5: memref<8x128xf32, #tpu.memory_space<vmem>>, %arg6: memref<8x8x128xf32, #tpu.memory_space<vmem>>, %arg7: memref<8x128xf32, #tpu.memory_space<vmem>>, %arg8: memref<8x128xf32, #tpu.memory_space<vmem>>, %arg9: memref<8x128xf32, #tpu.memory_space<vmem>>, %arg10: memref<8x128xf32, #tpu.memory_space<vmem>>) attributes {dimension_semantics = [#tpu.dimension_semantics<parallel>, #tpu.dimension_semantics<arbitrary>], iteration_bounds = array<i64: 1, 1>, scalar_prefetch = 0 : i64, scratch_operands = 2 : i64, tpu.core_type = #tpu.core_type<tc>, window_params = [{transform_indices = @transform_0, window_bounds = array<i64: 8, 8, 512>}, {pipeline_mode = #tpu.pipeline_mode<synchronous>, transform_indices = @transform_1, window_bounds = array<i64: 128, 512>}, {transform_indices = @transform_2, window_bounds = array<i64: 8, 128>}, {transform_indices = @transform_3, window_bounds = array<i64: 8, 128>}, {transform_indices = @transform_4, window_bounds = array<i64: 8, 8, 128>}, {transform_indices = @transform_5, window_bounds = array<i64: 8, 128>}, {transform_indices = @transform_6, window_bounds = array<i64: 8, 128>}]} {
    %c0_i32 = arith.constant 0 : i32
    %0 = arith.cmpi eq, %arg1, %c0_i32 : i32
    %1 = arith.extui %0 : i1 to i32
    %c0_i32_0 = arith.constant 0 : i32
    %2 = arith.cmpi ne, %1, %c0_i32_0 : i32
    scf.if %2 {
      %c0_91 = arith.constant 0 : index
      %c0_92 = arith.constant 0 : index
      %257 = vector.load %arg4[%c0_91, %c0_92] : memref<8x128xf32, #tpu.memory_space<vmem>>, vector<8x128xf32>
      %c0_93 = arith.constant 0 : index
      %c0_94 = arith.constant 0 : index
      %258 = vector.load %arg9[%c0_93, %c0_94] : memref<8x128xf32, #tpu.memory_space<vmem>>, vector<8x128xf32>
      tpu.vector_store %arg9[%c0_93, %c0_94], %257 {strides = array<i32>} : memref<8x128xf32, #tpu.memory_space<vmem>>, vector<8x128xf32>,
      %c0_95 = arith.constant 0 : index
      %c0_96 = arith.constant 0 : index
      %259 = vector.load %arg5[%c0_95, %c0_96] : memref<8x128xf32, #tpu.memory_space<vmem>>, vector<8x128xf32>
      %c0_97 = arith.constant 0 : index
      %c0_98 = arith.constant 0 : index
      %260 = vector.load %arg10[%c0_97, %c0_98] : memref<8x128xf32, #tpu.memory_space<vmem>>, vector<8x128xf32>
      tpu.vector_store %arg10[%c0_97, %c0_98], %259 {strides = array<i32>} : memref<8x128xf32, #tpu.memory_space<vmem>>, vector<8x128xf32>,
    } else {
    }
    %c0 = arith.constant 0 : index
    %c0_1 = arith.constant 0 : index
    %3 = vector.load %arg3[%c0, %c0_1] : memref<128x512xf32, #tpu.memory_space<vmem>>, vector<128x512xf32>
    %c8_i32 = arith.constant 8 : i32
    %4 = arith.muli %arg1, %c8_i32 : i32
    %c0_2 = arith.constant 0 : index
    %c0_3 = arith.constant 0 : index
    %5 = vector.load %arg9[%c0_2, %c0_3] : memref<8x128xf32, #tpu.memory_space<vmem>>, vector<8x128xf32>
    %c0_4 = arith.constant 0 : index
    %c0_5 = arith.constant 0 : index
    %6 = vector.load %arg10[%c0_4, %c0_5] : memref<8x128xf32, #tpu.memory_space<vmem>>, vector<8x128xf32>
    %c0_i32_6 = arith.constant 0 : i32
    %7 = arith.index_cast %c0_i32_6 : i32 to index
    %c0_7 = arith.constant 0 : index
    %c0_8 = arith.constant 0 : index
    %8 = vector.load %arg2[%7, %c0_7, %c0_8] : memref<8x8x512xf32, #tpu.memory_space<vmem>>, vector<1x8x512xf32>
    %9 = vector.shape_cast %8 : vector<1x8x512xf32> to vector<8x512xf32>
    %cst = arith.constant dense<0.000000e+00> : vector<8x512xf32>
    %10 = tpu.matmul %5, %3, %cst {dimension_numbers = #tpu.dot_dimension_numbers<[1], [0], [0], [1], [0, 0, 1, 1], [], []>} : vector<8x128xf32>, vector<128x512xf32>, vector<8x512xf32> -> vector<8x512xf32>
    %11 = arith.addf %9, %10 : vector<8x512xf32>
    %12 = vector.extract_strided_slice %11 {offsets = [0, 0], sizes = [8, 384], strides = [1, 1]} : vector<8x512xf32> to vector<8x384xf32>
    %cst_9 = arith.constant 5.000000e-01 : f32
    %13 = vector.broadcast %cst_9 : f32 to vector<8x384xf32>
    %14 = arith.mulf %13, %12 : vector<8x384xf32>
    %15 = math.tanh %14 : vector<8x384xf32>
    %cst_10 = arith.constant 5.000000e-01 : f32
    %16 = vector.broadcast %cst_10 : f32 to vector<8x384xf32>
    %17 = arith.mulf %16, %15 : vector<8x384xf32>
    %cst_11 = arith.constant 5.000000e-01 : f32
    %18 = vector.broadcast %cst_11 : f32 to vector<8x384xf32>
    %19 = arith.addf %17, %18 : vector<8x384xf32>
    %20 = vector.extract_strided_slice %19 {offsets = [0, 0], sizes = [8, 128], strides = [1, 1]} : vector<8x384xf32> to vector<8x128xf32>
    %21 = vector.extract_strided_slice %19 {offsets = [0, 128], sizes = [8, 128], strides = [1, 1]} : vector<8x384xf32> to vector<8x128xf32>
    %22 = vector.extract_strided_slice %19 {offsets = [0, 256], sizes = [8, 128], strides = [1, 1]} : vector<8x384xf32> to vector<8x128xf32>
    %23 = vector.extract_strided_slice %11 {offsets = [0, 384], sizes = [8, 128], strides = [1, 1]} : vector<8x512xf32> to vector<8x128xf32>
    %24 = math.tanh %23 : vector<8x128xf32>
    %25 = arith.mulf %21, %6 : vector<8x128xf32>
    %26 = arith.mulf %20, %24 : vector<8x128xf32>
    %27 = arith.addf %25, %26 : vector<8x128xf32>
    %28 = math.tanh %27 : vector<8x128xf32>
    %29 = arith.mulf %22, %28 : vector<8x128xf32>
    %30 = arith.index_cast %c0_i32_6 : i32 to index
    %c0_12 = arith.constant 0 : index
    %c0_13 = arith.constant 0 : index
    %31 = vector.load %arg6[%30, %c0_12, %c0_13] : memref<8x8x128xf32, #tpu.memory_space<vmem>>, vector<1x8x128xf32>
    %32 = vector.shape_cast %31 : vector<1x8x128xf32> to vector<8x128xf32>
    %33 = vector.shape_cast %29 : vector<8x128xf32> to vector<1x8x128xf32>
    tpu.vector_store %arg6[%30, %c0_12, %c0_13], %33 {strides = array<i32>} : memref<8x8x128xf32, #tpu.memory_space<vmem>>, vector<1x8x128xf32>,
    %34 = arith.addi %4, %c0_i32_6 : i32
    %c7_i32 = arith.constant 7 : i32
    %35 = arith.cmpi eq, %34, %c7_i32 : i32
    %36 = arith.extui %35 : i1 to i32
    %c0_i32_14 = arith.constant 0 : i32
    %37 = arith.cmpi ne, %36, %c0_i32_14 : i32
    scf.if %37 {
      %c0_91 = arith.constant 0 : index
      %c0_92 = arith.constant 0 : index
      %257 = vector.load %arg7[%c0_91, %c0_92] : memref<8x128xf32, #tpu.memory_space<vmem>>, vector<8x128xf32>
      tpu.vector_store %arg7[%c0_91, %c0_92], %29 {strides = array<i32>} : memref<8x128xf32, #tpu.memory_space<vmem>>, vector<8x128xf32>,
      %c0_93 = arith.constant 0 : index
      %c0_94 = arith.constant 0 : index
      %258 = vector.load %arg8[%c0_93, %c0_94] : memref<8x128xf32, #tpu.memory_space<vmem>>, vector<8x128xf32>
      tpu.vector_store %arg8[%c0_93, %c0_94], %27 {strides = array<i32>} : memref<8x128xf32, #tpu.memory_space<vmem>>, vector<8x128xf32>,
    } else {
    }
    %c1_i32 = arith.constant 1 : i32
    %38 = arith.index_cast %c1_i32 : i32 to index
    %c0_15 = arith.constant 0 : index
    %c0_16 = arith.constant 0 : index
    %39 = vector.load %arg2[%38, %c0_15, %c0_16] : memref<8x8x512xf32, #tpu.memory_space<vmem>>, vector<1x8x512xf32>
    %40 = vector.shape_cast %39 : vector<1x8x512xf32> to vector<8x512xf32>
    %cst_17 = arith.constant dense<0.000000e+00> : vector<8x512xf32>
    %41 = tpu.matmul %29, %3, %cst_17 {dimension_numbers = #tpu.dot_dimension_numbers<[1], [0], [0], [1], [0, 0, 1, 1], [], []>} : vector<8x128xf32>, vector<128x512xf32>, vector<8x512xf32> -> vector<8x512xf32>
    %42 = arith.addf %40, %41 : vector<8x512xf32>
    %43 = vector.extract_strided_slice %42 {offsets = [0, 0], sizes = [8, 384], strides = [1, 1]} : vector<8x512xf32> to vector<8x384xf32>
    %cst_18 = arith.constant 5.000000e-01 : f32
    %44 = vector.broadcast %cst_18 : f32 to vector<8x384xf32>
    %45 = arith.mulf %44, %43 : vector<8x384xf32>
    %46 = math.tanh %45 : vector<8x384xf32>
    %cst_19 = arith.constant 5.000000e-01 : f32
    %47 = vector.broadcast %cst_19 : f32 to vector<8x384xf32>
    %48 = arith.mulf %47, %46 : vector<8x384xf32>
    %cst_20 = arith.constant 5.000000e-01 : f32
    %49 = vector.broadcast %cst_20 : f32 to vector<8x384xf32>
    %50 = arith.addf %48, %49 : vector<8x384xf32>
    %51 = vector.extract_strided_slice %50 {offsets = [0, 0], sizes = [8, 128], strides = [1, 1]} : vector<8x384xf32> to vector<8x128xf32>
    %52 = vector.extract_strided_slice %50 {offsets = [0, 128], sizes = [8, 128], strides = [1, 1]} : vector<8x384xf32> to vector<8x128xf32>
    %53 = vector.extract_strided_slice %50 {offsets = [0, 256], sizes = [8, 128], strides = [1, 1]} : vector<8x384xf32> to vector<8x128xf32>
    %54 = vector.extract_strided_slice %42 {offsets = [0, 384], sizes = [8, 128], strides = [1, 1]} : vector<8x512xf32> to vector<8x128xf32>
    %55 = math.tanh %54 : vector<8x128xf32>
    %56 = arith.mulf %52, %27 : vector<8x128xf32>
    %57 = arith.mulf %51, %55 : vector<8x128xf32>
    %58 = arith.addf %56, %57 : vector<8x128xf32>
    %59 = math.tanh %58 : vector<8x128xf32>
    %60 = arith.mulf %53, %59 : vector<8x128xf32>
    %61 = arith.index_cast %c1_i32 : i32 to index
    %c0_21 = arith.constant 0 : index
    %c0_22 = arith.constant 0 : index
    %62 = vector.load %arg6[%61, %c0_21, %c0_22] : memref<8x8x128xf32, #tpu.memory_space<vmem>>, vector<1x8x128xf32>
    %63 = vector.shape_cast %62 : vector<1x8x128xf32> to vector<8x128xf32>
    %64 = vector.shape_cast %60 : vector<8x128xf32> to vector<1x8x128xf32>
    tpu.vector_store %arg6[%61, %c0_21, %c0_22], %64 {strides = array<i32>} : memref<8x8x128xf32, #tpu.memory_space<vmem>>, vector<1x8x128xf32>,
    %65 = arith.addi %4, %c1_i32 : i32
    %c7_i32_23 = arith.constant 7 : i32
    %66 = arith.cmpi eq, %65, %c7_i32_23 : i32
    %67 = arith.extui %66 : i1 to i32
    %c0_i32_24 = arith.constant 0 : i32
    %68 = arith.cmpi ne, %67, %c0_i32_24 : i32
    scf.if %68 {
      %c0_91 = arith.constant 0 : index
      %c0_92 = arith.constant 0 : index
      %257 = vector.load %arg7[%c0_91, %c0_92] : memref<8x128xf32, #tpu.memory_space<vmem>>, vector<8x128xf32>
      tpu.vector_store %arg7[%c0_91, %c0_92], %60 {strides = array<i32>} : memref<8x128xf32, #tpu.memory_space<vmem>>, vector<8x128xf32>,
      %c0_93 = arith.constant 0 : index
      %c0_94 = arith.constant 0 : index
      %258 = vector.load %arg8[%c0_93, %c0_94] : memref<8x128xf32, #tpu.memory_space<vmem>>, vector<8x128xf32>
      tpu.vector_store %arg8[%c0_93, %c0_94], %58 {strides = array<i32>} : memref<8x128xf32, #tpu.memory_space<vmem>>, vector<8x128xf32>,
    } else {
    }
    %c2_i32 = arith.constant 2 : i32
    %69 = arith.index_cast %c2_i32 : i32 to index
    %c0_25 = arith.constant 0 : index
    %c0_26 = arith.constant 0 : index
    %70 = vector.load %arg2[%69, %c0_25, %c0_26] : memref<8x8x512xf32, #tpu.memory_space<vmem>>, vector<1x8x512xf32>
    %71 = vector.shape_cast %70 : vector<1x8x512xf32> to vector<8x512xf32>
    %cst_27 = arith.constant dense<0.000000e+00> : vector<8x512xf32>
    %72 = tpu.matmul %60, %3, %cst_27 {dimension_numbers = #tpu.dot_dimension_numbers<[1], [0], [0], [1], [0, 0, 1, 1], [], []>} : vector<8x128xf32>, vector<128x512xf32>, vector<8x512xf32> -> vector<8x512xf32>
    %73 = arith.addf %71, %72 : vector<8x512xf32>
    %74 = vector.extract_strided_slice %73 {offsets = [0, 0], sizes = [8, 384], strides = [1, 1]} : vector<8x512xf32> to vector<8x384xf32>
    %cst_28 = arith.constant 5.000000e-01 : f32
    %75 = vector.broadcast %cst_28 : f32 to vector<8x384xf32>
    %76 = arith.mulf %75, %74 : vector<8x384xf32>
    %77 = math.tanh %76 : vector<8x384xf32>
    %cst_29 = arith.constant 5.000000e-01 : f32
    %78 = vector.broadcast %cst_29 : f32 to vector<8x384xf32>
    %79 = arith.mulf %78, %77 : vector<8x384xf32>
    %cst_30 = arith.constant 5.000000e-01 : f32
    %80 = vector.broadcast %cst_30 : f32 to vector<8x384xf32>
    %81 = arith.addf %79, %80 : vector<8x384xf32>
    %82 = vector.extract_strided_slice %81 {offsets = [0, 0], sizes = [8, 128], strides = [1, 1]} : vector<8x384xf32> to vector<8x128xf32>
    %83 = vector.extract_strided_slice %81 {offsets = [0, 128], sizes = [8, 128], strides = [1, 1]} : vector<8x384xf32> to vector<8x128xf32>
    %84 = vector.extract_strided_slice %81 {offsets = [0, 256], sizes = [8, 128], strides = [1, 1]} : vector<8x384xf32> to vector<8x128xf32>
    %85 = vector.extract_strided_slice %73 {offsets = [0, 384], sizes = [8, 128], strides = [1, 1]} : vector<8x512xf32> to vector<8x128xf32>
    %86 = math.tanh %85 : vector<8x128xf32>
    %87 = arith.mulf %83, %58 : vector<8x128xf32>
    %88 = arith.mulf %82, %86 : vector<8x128xf32>
    %89 = arith.addf %87, %88 : vector<8x128xf32>
    %90 = math.tanh %89 : vector<8x128xf32>
    %91 = arith.mulf %84, %90 : vector<8x128xf32>
    %92 = arith.index_cast %c2_i32 : i32 to index
    %c0_31 = arith.constant 0 : index
    %c0_32 = arith.constant 0 : index
    %93 = vector.load %arg6[%92, %c0_31, %c0_32] : memref<8x8x128xf32, #tpu.memory_space<vmem>>, vector<1x8x128xf32>
    %94 = vector.shape_cast %93 : vector<1x8x128xf32> to vector<8x128xf32>
    %95 = vector.shape_cast %91 : vector<8x128xf32> to vector<1x8x128xf32>
    tpu.vector_store %arg6[%92, %c0_31, %c0_32], %95 {strides = array<i32>} : memref<8x8x128xf32, #tpu.memory_space<vmem>>, vector<1x8x128xf32>,
    %96 = arith.addi %4, %c2_i32 : i32
    %c7_i32_33 = arith.constant 7 : i32
    %97 = arith.cmpi eq, %96, %c7_i32_33 : i32
    %98 = arith.extui %97 : i1 to i32
    %c0_i32_34 = arith.constant 0 : i32
    %99 = arith.cmpi ne, %98, %c0_i32_34 : i32
    scf.if %99 {
      %c0_91 = arith.constant 0 : index
      %c0_92 = arith.constant 0 : index
      %257 = vector.load %arg7[%c0_91, %c0_92] : memref<8x128xf32, #tpu.memory_space<vmem>>, vector<8x128xf32>
      tpu.vector_store %arg7[%c0_91, %c0_92], %91 {strides = array<i32>} : memref<8x128xf32, #tpu.memory_space<vmem>>, vector<8x128xf32>,
      %c0_93 = arith.constant 0 : index
      %c0_94 = arith.constant 0 : index
      %258 = vector.load %arg8[%c0_93, %c0_94] : memref<8x128xf32, #tpu.memory_space<vmem>>, vector<8x128xf32>
      tpu.vector_store %arg8[%c0_93, %c0_94], %89 {strides = array<i32>} : memref<8x128xf32, #tpu.memory_space<vmem>>, vector<8x128xf32>,
    } else {
    }
    %c3_i32 = arith.constant 3 : i32
    %100 = arith.index_cast %c3_i32 : i32 to index
    %c0_35 = arith.constant 0 : index
    %c0_36 = arith.constant 0 : index
    %101 = vector.load %arg2[%100, %c0_35, %c0_36] : memref<8x8x512xf32, #tpu.memory_space<vmem>>, vector<1x8x512xf32>
    %102 = vector.shape_cast %101 : vector<1x8x512xf32> to vector<8x512xf32>
    %cst_37 = arith.constant dense<0.000000e+00> : vector<8x512xf32>
    %103 = tpu.matmul %91, %3, %cst_37 {dimension_numbers = #tpu.dot_dimension_numbers<[1], [0], [0], [1], [0, 0, 1, 1], [], []>} : vector<8x128xf32>, vector<128x512xf32>, vector<8x512xf32> -> vector<8x512xf32>
    %104 = arith.addf %102, %103 : vector<8x512xf32>
    %105 = vector.extract_strided_slice %104 {offsets = [0, 0], sizes = [8, 384], strides = [1, 1]} : vector<8x512xf32> to vector<8x384xf32>
    %cst_38 = arith.constant 5.000000e-01 : f32
    %106 = vector.broadcast %cst_38 : f32 to vector<8x384xf32>
    %107 = arith.mulf %106, %105 : vector<8x384xf32>
    %108 = math.tanh %107 : vector<8x384xf32>
    %cst_39 = arith.constant 5.000000e-01 : f32
    %109 = vector.broadcast %cst_39 : f32 to vector<8x384xf32>
    %110 = arith.mulf %109, %108 : vector<8x384xf32>
    %cst_40 = arith.constant 5.000000e-01 : f32
    %111 = vector.broadcast %cst_40 : f32 to vector<8x384xf32>
    %112 = arith.addf %110, %111 : vector<8x384xf32>
    %113 = vector.extract_strided_slice %112 {offsets = [0, 0], sizes = [8, 128], strides = [1, 1]} : vector<8x384xf32> to vector<8x128xf32>
    %114 = vector.extract_strided_slice %112 {offsets = [0, 128], sizes = [8, 128], strides = [1, 1]} : vector<8x384xf32> to vector<8x128xf32>
    %115 = vector.extract_strided_slice %112 {offsets = [0, 256], sizes = [8, 128], strides = [1, 1]} : vector<8x384xf32> to vector<8x128xf32>
    %116 = vector.extract_strided_slice %104 {offsets = [0, 384], sizes = [8, 128], strides = [1, 1]} : vector<8x512xf32> to vector<8x128xf32>
    %117 = math.tanh %116 : vector<8x128xf32>
    %118 = arith.mulf %114, %89 : vector<8x128xf32>
    %119 = arith.mulf %113, %117 : vector<8x128xf32>
    %120 = arith.addf %118, %119 : vector<8x128xf32>
    %121 = math.tanh %120 : vector<8x128xf32>
    %122 = arith.mulf %115, %121 : vector<8x128xf32>
    %123 = arith.index_cast %c3_i32 : i32 to index
    %c0_41 = arith.constant 0 : index
    %c0_42 = arith.constant 0 : index
    %124 = vector.load %arg6[%123, %c0_41, %c0_42] : memref<8x8x128xf32, #tpu.memory_space<vmem>>, vector<1x8x128xf32>
    %125 = vector.shape_cast %124 : vector<1x8x128xf32> to vector<8x128xf32>
    %126 = vector.shape_cast %122 : vector<8x128xf32> to vector<1x8x128xf32>
    tpu.vector_store %arg6[%123, %c0_41, %c0_42], %126 {strides = array<i32>} : memref<8x8x128xf32, #tpu.memory_space<vmem>>, vector<1x8x128xf32>,
    %127 = arith.addi %4, %c3_i32 : i32
    %c7_i32_43 = arith.constant 7 : i32
    %128 = arith.cmpi eq, %127, %c7_i32_43 : i32
    %129 = arith.extui %128 : i1 to i32
    %c0_i32_44 = arith.constant 0 : i32
    %130 = arith.cmpi ne, %129, %c0_i32_44 : i32
    scf.if %130 {
      %c0_91 = arith.constant 0 : index
      %c0_92 = arith.constant 0 : index
      %257 = vector.load %arg7[%c0_91, %c0_92] : memref<8x128xf32, #tpu.memory_space<vmem>>, vector<8x128xf32>
      tpu.vector_store %arg7[%c0_91, %c0_92], %122 {strides = array<i32>} : memref<8x128xf32, #tpu.memory_space<vmem>>, vector<8x128xf32>,
      %c0_93 = arith.constant 0 : index
      %c0_94 = arith.constant 0 : index
      %258 = vector.load %arg8[%c0_93, %c0_94] : memref<8x128xf32, #tpu.memory_space<vmem>>, vector<8x128xf32>
      tpu.vector_store %arg8[%c0_93, %c0_94], %120 {strides = array<i32>} : memref<8x128xf32, #tpu.memory_space<vmem>>, vector<8x128xf32>,
    } else {
    }
    %c4_i32 = arith.constant 4 : i32
    %131 = arith.index_cast %c4_i32 : i32 to index
    %c0_45 = arith.constant 0 : index
    %c0_46 = arith.constant 0 : index
    %132 = vector.load %arg2[%131, %c0_45, %c0_46] : memref<8x8x512xf32, #tpu.memory_space<vmem>>, vector<1x8x512xf32>
    %133 = vector.shape_cast %132 : vector<1x8x512xf32> to vector<8x512xf32>
    %cst_47 = arith.constant dense<0.000000e+00> : vector<8x512xf32>
    %134 = tpu.matmul %122, %3, %cst_47 {dimension_numbers = #tpu.dot_dimension_numbers<[1], [0], [0], [1], [0, 0, 1, 1], [], []>} : vector<8x128xf32>, vector<128x512xf32>, vector<8x512xf32> -> vector<8x512xf32>
    %135 = arith.addf %133, %134 : vector<8x512xf32>
    %136 = vector.extract_strided_slice %135 {offsets = [0, 0], sizes = [8, 384], strides = [1, 1]} : vector<8x512xf32> to vector<8x384xf32>
    %cst_48 = arith.constant 5.000000e-01 : f32
    %137 = vector.broadcast %cst_48 : f32 to vector<8x384xf32>
    %138 = arith.mulf %137, %136 : vector<8x384xf32>
    %139 = math.tanh %138 : vector<8x384xf32>
    %cst_49 = arith.constant 5.000000e-01 : f32
    %140 = vector.broadcast %cst_49 : f32 to vector<8x384xf32>
    %141 = arith.mulf %140, %139 : vector<8x384xf32>
    %cst_50 = arith.constant 5.000000e-01 : f32
    %142 = vector.broadcast %cst_50 : f32 to vector<8x384xf32>
    %143 = arith.addf %141, %142 : vector<8x384xf32>
    %144 = vector.extract_strided_slice %143 {offsets = [0, 0], sizes = [8, 128], strides = [1, 1]} : vector<8x384xf32> to vector<8x128xf32>
    %145 = vector.extract_strided_slice %143 {offsets = [0, 128], sizes = [8, 128], strides = [1, 1]} : vector<8x384xf32> to vector<8x128xf32>
    %146 = vector.extract_strided_slice %143 {offsets = [0, 256], sizes = [8, 128], strides = [1, 1]} : vector<8x384xf32> to vector<8x128xf32>
    %147 = vector.extract_strided_slice %135 {offsets = [0, 384], sizes = [8, 128], strides = [1, 1]} : vector<8x512xf32> to vector<8x128xf32>
    %148 = math.tanh %147 : vector<8x128xf32>
    %149 = arith.mulf %145, %120 : vector<8x128xf32>
    %150 = arith.mulf %144, %148 : vector<8x128xf32>
    %151 = arith.addf %149, %150 : vector<8x128xf32>
    %152 = math.tanh %151 : vector<8x128xf32>
    %153 = arith.mulf %146, %152 : vector<8x128xf32>
    %154 = arith.index_cast %c4_i32 : i32 to index
    %c0_51 = arith.constant 0 : index
    %c0_52 = arith.constant 0 : index
    %155 = vector.load %arg6[%154, %c0_51, %c0_52] : memref<8x8x128xf32, #tpu.memory_space<vmem>>, vector<1x8x128xf32>
    %156 = vector.shape_cast %155 : vector<1x8x128xf32> to vector<8x128xf32>
    %157 = vector.shape_cast %153 : vector<8x128xf32> to vector<1x8x128xf32>
    tpu.vector_store %arg6[%154, %c0_51, %c0_52], %157 {strides = array<i32>} : memref<8x8x128xf32, #tpu.memory_space<vmem>>, vector<1x8x128xf32>,
    %158 = arith.addi %4, %c4_i32 : i32
    %c7_i32_53 = arith.constant 7 : i32
    %159 = arith.cmpi eq, %158, %c7_i32_53 : i32
    %160 = arith.extui %159 : i1 to i32
    %c0_i32_54 = arith.constant 0 : i32
    %161 = arith.cmpi ne, %160, %c0_i32_54 : i32
    scf.if %161 {
      %c0_91 = arith.constant 0 : index
      %c0_92 = arith.constant 0 : index
      %257 = vector.load %arg7[%c0_91, %c0_92] : memref<8x128xf32, #tpu.memory_space<vmem>>, vector<8x128xf32>
      tpu.vector_store %arg7[%c0_91, %c0_92], %153 {strides = array<i32>} : memref<8x128xf32, #tpu.memory_space<vmem>>, vector<8x128xf32>,
      %c0_93 = arith.constant 0 : index
      %c0_94 = arith.constant 0 : index
      %258 = vector.load %arg8[%c0_93, %c0_94] : memref<8x128xf32, #tpu.memory_space<vmem>>, vector<8x128xf32>
      tpu.vector_store %arg8[%c0_93, %c0_94], %151 {strides = array<i32>} : memref<8x128xf32, #tpu.memory_space<vmem>>, vector<8x128xf32>,
    } else {
    }
    %c5_i32 = arith.constant 5 : i32
    %162 = arith.index_cast %c5_i32 : i32 to index
    %c0_55 = arith.constant 0 : index
    %c0_56 = arith.constant 0 : index
    %163 = vector.load %arg2[%162, %c0_55, %c0_56] : memref<8x8x512xf32, #tpu.memory_space<vmem>>, vector<1x8x512xf32>
    %164 = vector.shape_cast %163 : vector<1x8x512xf32> to vector<8x512xf32>
    %cst_57 = arith.constant dense<0.000000e+00> : vector<8x512xf32>
    %165 = tpu.matmul %153, %3, %cst_57 {dimension_numbers = #tpu.dot_dimension_numbers<[1], [0], [0], [1], [0, 0, 1, 1], [], []>} : vector<8x128xf32>, vector<128x512xf32>, vector<8x512xf32> -> vector<8x512xf32>
    %166 = arith.addf %164, %165 : vector<8x512xf32>
    %167 = vector.extract_strided_slice %166 {offsets = [0, 0], sizes = [8, 384], strides = [1, 1]} : vector<8x512xf32> to vector<8x384xf32>
    %cst_58 = arith.constant 5.000000e-01 : f32
    %168 = vector.broadcast %cst_58 : f32 to vector<8x384xf32>
    %169 = arith.mulf %168, %167 : vector<8x384xf32>
    %170 = math.tanh %169 : vector<8x384xf32>
    %cst_59 = arith.constant 5.000000e-01 : f32
    %171 = vector.broadcast %cst_59 : f32 to vector<8x384xf32>
    %172 = arith.mulf %171, %170 : vector<8x384xf32>
    %cst_60 = arith.constant 5.000000e-01 : f32
    %173 = vector.broadcast %cst_60 : f32 to vector<8x384xf32>
    %174 = arith.addf %172, %173 : vector<8x384xf32>
    %175 = vector.extract_strided_slice %174 {offsets = [0, 0], sizes = [8, 128], strides = [1, 1]} : vector<8x384xf32> to vector<8x128xf32>
    %176 = vector.extract_strided_slice %174 {offsets = [0, 128], sizes = [8, 128], strides = [1, 1]} : vector<8x384xf32> to vector<8x128xf32>
    %177 = vector.extract_strided_slice %174 {offsets = [0, 256], sizes = [8, 128], strides = [1, 1]} : vector<8x384xf32> to vector<8x128xf32>
    %178 = vector.extract_strided_slice %166 {offsets = [0, 384], sizes = [8, 128], strides = [1, 1]} : vector<8x512xf32> to vector<8x128xf32>
    %179 = math.tanh %178 : vector<8x128xf32>
    %180 = arith.mulf %176, %151 : vector<8x128xf32>
    %181 = arith.mulf %175, %179 : vector<8x128xf32>
    %182 = arith.addf %180, %181 : vector<8x128xf32>
    %183 = math.tanh %182 : vector<8x128xf32>
    %184 = arith.mulf %177, %183 : vector<8x128xf32>
    %185 = arith.index_cast %c5_i32 : i32 to index
    %c0_61 = arith.constant 0 : index
    %c0_62 = arith.constant 0 : index
    %186 = vector.load %arg6[%185, %c0_61, %c0_62] : memref<8x8x128xf32, #tpu.memory_space<vmem>>, vector<1x8x128xf32>
    %187 = vector.shape_cast %186 : vector<1x8x128xf32> to vector<8x128xf32>
    %188 = vector.shape_cast %184 : vector<8x128xf32> to vector<1x8x128xf32>
    tpu.vector_store %arg6[%185, %c0_61, %c0_62], %188 {strides = array<i32>} : memref<8x8x128xf32, #tpu.memory_space<vmem>>, vector<1x8x128xf32>,
    %189 = arith.addi %4, %c5_i32 : i32
    %c7_i32_63 = arith.constant 7 : i32
    %190 = arith.cmpi eq, %189, %c7_i32_63 : i32
    %191 = arith.extui %190 : i1 to i32
    %c0_i32_64 = arith.constant 0 : i32
    %192 = arith.cmpi ne, %191, %c0_i32_64 : i32
    scf.if %192 {
      %c0_91 = arith.constant 0 : index
      %c0_92 = arith.constant 0 : index
      %257 = vector.load %arg7[%c0_91, %c0_92] : memref<8x128xf32, #tpu.memory_space<vmem>>, vector<8x128xf32>
      tpu.vector_store %arg7[%c0_91, %c0_92], %184 {strides = array<i32>} : memref<8x128xf32, #tpu.memory_space<vmem>>, vector<8x128xf32>,
      %c0_93 = arith.constant 0 : index
      %c0_94 = arith.constant 0 : index
      %258 = vector.load %arg8[%c0_93, %c0_94] : memref<8x128xf32, #tpu.memory_space<vmem>>, vector<8x128xf32>
      tpu.vector_store %arg8[%c0_93, %c0_94], %182 {strides = array<i32>} : memref<8x128xf32, #tpu.memory_space<vmem>>, vector<8x128xf32>,
    } else {
    }
    %c6_i32 = arith.constant 6 : i32
    %193 = arith.index_cast %c6_i32 : i32 to index
    %c0_65 = arith.constant 0 : index
    %c0_66 = arith.constant 0 : index
    %194 = vector.load %arg2[%193, %c0_65, %c0_66] : memref<8x8x512xf32, #tpu.memory_space<vmem>>, vector<1x8x512xf32>
    %195 = vector.shape_cast %194 : vector<1x8x512xf32> to vector<8x512xf32>
    %cst_67 = arith.constant dense<0.000000e+00> : vector<8x512xf32>
    %196 = tpu.matmul %184, %3, %cst_67 {dimension_numbers = #tpu.dot_dimension_numbers<[1], [0], [0], [1], [0, 0, 1, 1], [], []>} : vector<8x128xf32>, vector<128x512xf32>, vector<8x512xf32> -> vector<8x512xf32>
    %197 = arith.addf %195, %196 : vector<8x512xf32>
    %198 = vector.extract_strided_slice %197 {offsets = [0, 0], sizes = [8, 384], strides = [1, 1]} : vector<8x512xf32> to vector<8x384xf32>
    %cst_68 = arith.constant 5.000000e-01 : f32
    %199 = vector.broadcast %cst_68 : f32 to vector<8x384xf32>
    %200 = arith.mulf %199, %198 : vector<8x384xf32>
    %201 = math.tanh %200 : vector<8x384xf32>
    %cst_69 = arith.constant 5.000000e-01 : f32
    %202 = vector.broadcast %cst_69 : f32 to vector<8x384xf32>
    %203 = arith.mulf %202, %201 : vector<8x384xf32>
    %cst_70 = arith.constant 5.000000e-01 : f32
    %204 = vector.broadcast %cst_70 : f32 to vector<8x384xf32>
    %205 = arith.addf %203, %204 : vector<8x384xf32>
    %206 = vector.extract_strided_slice %205 {offsets = [0, 0], sizes = [8, 128], strides = [1, 1]} : vector<8x384xf32> to vector<8x128xf32>
    %207 = vector.extract_strided_slice %205 {offsets = [0, 128], sizes = [8, 128], strides = [1, 1]} : vector<8x384xf32> to vector<8x128xf32>
    %208 = vector.extract_strided_slice %205 {offsets = [0, 256], sizes = [8, 128], strides = [1, 1]} : vector<8x384xf32> to vector<8x128xf32>
    %209 = vector.extract_strided_slice %197 {offsets = [0, 384], sizes = [8, 128], strides = [1, 1]} : vector<8x512xf32> to vector<8x128xf32>
    %210 = math.tanh %209 : vector<8x128xf32>
    %211 = arith.mulf %207, %182 : vector<8x128xf32>
    %212 = arith.mulf %206, %210 : vector<8x128xf32>
    %213 = arith.addf %211, %212 : vector<8x128xf32>
    %214 = math.tanh %213 : vector<8x128xf32>
    %215 = arith.mulf %208, %214 : vector<8x128xf32>
    %216 = arith.index_cast %c6_i32 : i32 to index
    %c0_71 = arith.constant 0 : index
    %c0_72 = arith.constant 0 : index
    %217 = vector.load %arg6[%216, %c0_71, %c0_72] : memref<8x8x128xf32, #tpu.memory_space<vmem>>, vector<1x8x128xf32>
    %218 = vector.shape_cast %217 : vector<1x8x128xf32> to vector<8x128xf32>
    %219 = vector.shape_cast %215 : vector<8x128xf32> to vector<1x8x128xf32>
    tpu.vector_store %arg6[%216, %c0_71, %c0_72], %219 {strides = array<i32>} : memref<8x8x128xf32, #tpu.memory_space<vmem>>, vector<1x8x128xf32>,
    %220 = arith.addi %4, %c6_i32 : i32
    %c7_i32_73 = arith.constant 7 : i32
    %221 = arith.cmpi eq, %220, %c7_i32_73 : i32
    %222 = arith.extui %221 : i1 to i32
    %c0_i32_74 = arith.constant 0 : i32
    %223 = arith.cmpi ne, %222, %c0_i32_74 : i32
    scf.if %223 {
      %c0_91 = arith.constant 0 : index
      %c0_92 = arith.constant 0 : index
      %257 = vector.load %arg7[%c0_91, %c0_92] : memref<8x128xf32, #tpu.memory_space<vmem>>, vector<8x128xf32>
      tpu.vector_store %arg7[%c0_91, %c0_92], %215 {strides = array<i32>} : memref<8x128xf32, #tpu.memory_space<vmem>>, vector<8x128xf32>,
      %c0_93 = arith.constant 0 : index
      %c0_94 = arith.constant 0 : index
      %258 = vector.load %arg8[%c0_93, %c0_94] : memref<8x128xf32, #tpu.memory_space<vmem>>, vector<8x128xf32>
      tpu.vector_store %arg8[%c0_93, %c0_94], %213 {strides = array<i32>} : memref<8x128xf32, #tpu.memory_space<vmem>>, vector<8x128xf32>,
    } else {
    }
    %c7_i32_75 = arith.constant 7 : i32
    %224 = arith.index_cast %c7_i32_75 : i32 to index
    %c0_76 = arith.constant 0 : index
    %c0_77 = arith.constant 0 : index
    %225 = vector.load %arg2[%224, %c0_76, %c0_77] : memref<8x8x512xf32, #tpu.memory_space<vmem>>, vector<1x8x512xf32>
    %226 = vector.shape_cast %225 : vector<1x8x512xf32> to vector<8x512xf32>
    %cst_78 = arith.constant dense<0.000000e+00> : vector<8x512xf32>
    %227 = tpu.matmul %215, %3, %cst_78 {dimension_numbers = #tpu.dot_dimension_numbers<[1], [0], [0], [1], [0, 0, 1, 1], [], []>} : vector<8x128xf32>, vector<128x512xf32>, vector<8x512xf32> -> vector<8x512xf32>
    %228 = arith.addf %226, %227 : vector<8x512xf32>
    %229 = vector.extract_strided_slice %228 {offsets = [0, 0], sizes = [8, 384], strides = [1, 1]} : vector<8x512xf32> to vector<8x384xf32>
    %cst_79 = arith.constant 5.000000e-01 : f32
    %230 = vector.broadcast %cst_79 : f32 to vector<8x384xf32>
    %231 = arith.mulf %230, %229 : vector<8x384xf32>
    %232 = math.tanh %231 : vector<8x384xf32>
    %cst_80 = arith.constant 5.000000e-01 : f32
    %233 = vector.broadcast %cst_80 : f32 to vector<8x384xf32>
    %234 = arith.mulf %233, %232 : vector<8x384xf32>
    %cst_81 = arith.constant 5.000000e-01 : f32
    %235 = vector.broadcast %cst_81 : f32 to vector<8x384xf32>
    %236 = arith.addf %234, %235 : vector<8x384xf32>
    %237 = vector.extract_strided_slice %236 {offsets = [0, 0], sizes = [8, 128], strides = [1, 1]} : vector<8x384xf32> to vector<8x128xf32>
    %238 = vector.extract_strided_slice %236 {offsets = [0, 128], sizes = [8, 128], strides = [1, 1]} : vector<8x384xf32> to vector<8x128xf32>
    %239 = vector.extract_strided_slice %236 {offsets = [0, 256], sizes = [8, 128], strides = [1, 1]} : vector<8x384xf32> to vector<8x128xf32>
    %240 = vector.extract_strided_slice %228 {offsets = [0, 384], sizes = [8, 128], strides = [1, 1]} : vector<8x512xf32> to vector<8x128xf32>
    %241 = math.tanh %240 : vector<8x128xf32>
    %242 = arith.mulf %238, %213 : vector<8x128xf32>
    %243 = arith.mulf %237, %241 : vector<8x128xf32>
    %244 = arith.addf %242, %243 : vector<8x128xf32>
    %245 = math.tanh %244 : vector<8x128xf32>
    %246 = arith.mulf %239, %245 : vector<8x128xf32>
    %247 = arith.index_cast %c7_i32_75 : i32 to index
    %c0_82 = arith.constant 0 : index
    %c0_83 = arith.constant 0 : index
    %248 = vector.load %arg6[%247, %c0_82, %c0_83] : memref<8x8x128xf32, #tpu.memory_space<vmem>>, vector<1x8x128xf32>
    %249 = vector.shape_cast %248 : vector<1x8x128xf32> to vector<8x128xf32>
    %250 = vector.shape_cast %246 : vector<8x128xf32> to vector<1x8x128xf32>
    tpu.vector_store %arg6[%247, %c0_82, %c0_83], %250 {strides = array<i32>} : memref<8x8x128xf32, #tpu.memory_space<vmem>>, vector<1x8x128xf32>,
    %251 = arith.addi %4, %c7_i32_75 : i32
    %c7_i32_84 = arith.constant 7 : i32
    %252 = arith.cmpi eq, %251, %c7_i32_84 : i32
    %253 = arith.extui %252 : i1 to i32
    %c0_i32_85 = arith.constant 0 : i32
    %254 = arith.cmpi ne, %253, %c0_i32_85 : i32
    scf.if %254 {
      %c0_91 = arith.constant 0 : index
      %c0_92 = arith.constant 0 : index
      %257 = vector.load %arg7[%c0_91, %c0_92] : memref<8x128xf32, #tpu.memory_space<vmem>>, vector<8x128xf32>
      tpu.vector_store %arg7[%c0_91, %c0_92], %246 {strides = array<i32>} : memref<8x128xf32, #tpu.memory_space<vmem>>, vector<8x128xf32>,
      %c0_93 = arith.constant 0 : index
      %c0_94 = arith.constant 0 : index
      %258 = vector.load %arg8[%c0_93, %c0_94] : memref<8x128xf32, #tpu.memory_space<vmem>>, vector<8x128xf32>
      tpu.vector_store %arg8[%c0_93, %c0_94], %244 {strides = array<i32>} : memref<8x128xf32, #tpu.memory_space<vmem>>, vector<8x128xf32>,
    } else {
    }
    %c8_i32_86 = arith.constant 8 : i32
    %c0_87 = arith.constant 0 : index
    %c0_88 = arith.constant 0 : index
    %255 = vector.load %arg9[%c0_87, %c0_88] : memref<8x128xf32, #tpu.memory_space<vmem>>, vector<8x128xf32>
    tpu.vector_store %arg9[%c0_87, %c0_88], %246 {strides = array<i32>} : memref<8x128xf32, #tpu.memory_space<vmem>>, vector<8x128xf32>,
    %c0_89 = arith.constant 0 : index
    %c0_90 = arith.constant 0 : index
    %256 = vector.load %arg10[%c0_89, %c0_90] : memref<8x128xf32, #tpu.memory_space<vmem>>, vector<8x128xf32>
    tpu.vector_store %arg10[%c0_89, %c0_90], %244 {strides = array<i32>} : memref<8x128xf32, #tpu.memory_space<vmem>>, vector<8x128xf32>,
    return
  }
  func.func @transform_0(%arg0: i32, %arg1: i32) -> (i32, i32, i32) {
    %c0_i32 = arith.constant 0 : i32
    %c0_i32_0 = arith.constant 0 : i32
    return %arg1, %arg0, %c0_i32 : i32, i32, i32
  }
  func.func @transform_1(%arg0: i32, %arg1: i32) -> (i32, i32) {
    %c0_i32 = arith.constant 0 : i32
    %c0_i32_0 = arith.constant 0 : i32
    %c0_i32_1 = arith.constant 0 : i32
    return %c0_i32, %c0_i32_0 : i32, i32
  }
  func.func @transform_2(%arg0: i32, %arg1: i32) -> (i32, i32) {
    %c0_i32 = arith.constant 0 : i32
    %c0_i32_0 = arith.constant 0 : i32
    return %arg0, %c0_i32 : i32, i32
  }
  func.func @transform_3(%arg0: i32, %arg1: i32) -> (i32, i32) {
    %c0_i32 = arith.constant 0 : i32
    %c0_i32_0 = arith.constant 0 : i32
    return %arg0, %c0_i32 : i32, i32
  }
  func.func @transform_4(%arg0: i32, %arg1: i32) -> (i32, i32, i32) {
    %c0_i32 = arith.constant 0 : i32
    %c0_i32_0 = arith.constant 0 : i32
    return %arg1, %arg0, %c0_i32 : i32, i32, i32
  }
  func.func @transform_5(%arg0: i32, %arg1: i32) -> (i32, i32) {
    %c0_i32 = arith.constant 0 : i32
    %c0_i32_0 = arith.constant 0 : i32
    return %arg0, %c0_i32 : i32, i32
  }
  func.func @transform_6(%arg0: i32, %arg1: i32) -> (i32, i32) {
    %c0_i32 = arith.constant 0 : i32
    %c0_i32_0 = arith.constant 0 : i32
    return %arg0, %c0_i32 : i32, i32
  }
}

module attributes {stable_mosaic.version = 11 : i64} {
  func.func @_lstm_kernel(%arg0: i32, %arg1: i32, %arg2: memref<8x8x512xf32, #tpu.memory_space<vmem>>, %arg3: memref<128x512xf32, #tpu.memory_space<vmem>>, %arg4: memref<8x128xf32, #tpu.memory_space<vmem>>, %arg5: memref<8x128xf32, #tpu.memory_space<vmem>>, %arg6: memref<8x8x128xf32, #tpu.memory_space<vmem>>, %arg7: memref<8x128xf32, #tpu.memory_space<vmem>>, %arg8: memref<8x128xf32, #tpu.memory_space<vmem>>, %arg9: memref<8x128xf32, #tpu.memory_space<vmem>>, %arg10: memref<8x128xf32, #tpu.memory_space<vmem>>) attributes {dimension_semantics = [#tpu.dimension_semantics<parallel>, #tpu.dimension_semantics<arbitrary>], iteration_bounds = array<i64: 1, 1>, scalar_prefetch = 0 : i64, scratch_operands = 2 : i64, tpu.core_type = #tpu.core_type<tc>, window_params = [{transform_indices = @transform_0, window_bounds = array<i64: 8, 8, 512>}, {pipeline_mode = #tpu.pipeline_mode<synchronous>, transform_indices = @transform_1, window_bounds = array<i64: 128, 512>}, {transform_indices = @transform_2, window_bounds = array<i64: 8, 128>}, {transform_indices = @transform_3, window_bounds = array<i64: 8, 128>}, {transform_indices = @transform_4, window_bounds = array<i64: 8, 8, 128>}, {transform_indices = @transform_5, window_bounds = array<i64: 8, 128>}, {transform_indices = @transform_6, window_bounds = array<i64: 8, 128>}]} {
    %c0_i32 = arith.constant 0 : i32
    %0 = arith.cmpi eq, %arg1, %c0_i32 : i32
    %1 = arith.extui %0 : i1 to i32
    %c0_i32_0 = arith.constant 0 : i32
    %2 = arith.cmpi ne, %1, %c0_i32_0 : i32
    scf.if %2 {
      %c0_91 = arith.constant 0 : index
      %c0_92 = arith.constant 0 : index
      %257 = vector.load %arg4[%c0_91, %c0_92] : memref<8x128xf32, #tpu.memory_space<vmem>>, vector<8x128xf32>
      %c0_93 = arith.constant 0 : index
      %c0_94 = arith.constant 0 : index
      %258 = vector.load %arg9[%c0_93, %c0_94] : memref<8x128xf32, #tpu.memory_space<vmem>>, vector<8x128xf32>
      tpu.vector_store %arg9[%c0_93, %c0_94], %257 {strides = array<i32>} : memref<8x128xf32, #tpu.memory_space<vmem>>, vector<8x128xf32>,
      %c0_95 = arith.constant 0 : index
      %c0_96 = arith.constant 0 : index
      %259 = vector.load %arg5[%c0_95, %c0_96] : memref<8x128xf32, #tpu.memory_space<vmem>>, vector<8x128xf32>
      %c0_97 = arith.constant 0 : index
      %c0_98 = arith.constant 0 : index
      %260 = vector.load %arg10[%c0_97, %c0_98] : memref<8x128xf32, #tpu.memory_space<vmem>>, vector<8x128xf32>
      tpu.vector_store %arg10[%c0_97, %c0_98], %259 {strides = array<i32>} : memref<8x128xf32, #tpu.memory_space<vmem>>, vector<8x128xf32>,
    } else {
    }
    %c0 = arith.constant 0 : index
    %c0_1 = arith.constant 0 : index
    %3 = vector.load %arg3[%c0, %c0_1] : memref<128x512xf32, #tpu.memory_space<vmem>>, vector<128x512xf32>
    %c8_i32 = arith.constant 8 : i32
    %4 = arith.muli %arg1, %c8_i32 : i32
    %c0_2 = arith.constant 0 : index
    %c0_3 = arith.constant 0 : index
    %5 = vector.load %arg9[%c0_2, %c0_3] : memref<8x128xf32, #tpu.memory_space<vmem>>, vector<8x128xf32>
    %c0_4 = arith.constant 0 : index
    %c0_5 = arith.constant 0 : index
    %6 = vector.load %arg10[%c0_4, %c0_5] : memref<8x128xf32, #tpu.memory_space<vmem>>, vector<8x128xf32>
    %c0_i32_6 = arith.constant 0 : i32
    %7 = arith.index_cast %c0_i32_6 : i32 to index
    %c0_7 = arith.constant 0 : index
    %c0_8 = arith.constant 0 : index
    %8 = vector.load %arg2[%7, %c0_7, %c0_8] : memref<8x8x512xf32, #tpu.memory_space<vmem>>, vector<1x8x512xf32>
    %9 = vector.shape_cast %8 : vector<1x8x512xf32> to vector<8x512xf32>
    %cst = arith.constant dense<0.000000e+00> : vector<8x512xf32>
    %10 = tpu.matmul %5, %3, %cst {dimension_numbers = #tpu.dot_dimension_numbers<[1], [0], [0], [1], [0, 0, 1, 1], [], []>} : vector<8x128xf32>, vector<128x512xf32>, vector<8x512xf32> -> vector<8x512xf32>
    %11 = arith.addf %9, %10 : vector<8x512xf32>
    %12 = vector.extract_strided_slice %11 {offsets = [0, 0], sizes = [8, 384], strides = [1, 1]} : vector<8x512xf32> to vector<8x384xf32>
    %cst_9 = arith.constant 5.000000e-01 : f32
    %13 = vector.broadcast %cst_9 : f32 to vector<8x384xf32>
    %14 = arith.mulf %13, %12 : vector<8x384xf32>
    %15 = math.tanh %14 : vector<8x384xf32>
    %cst_10 = arith.constant 5.000000e-01 : f32
    %16 = vector.broadcast %cst_10 : f32 to vector<8x384xf32>
    %17 = arith.mulf %16, %15 : vector<8x384xf32>
    %cst_11 = arith.constant 5.000000e-01 : f32
    %18 = vector.broadcast %cst_11 : f32 to vector<8x384xf32>
    %19 = arith.addf %17, %18 : vector<8x384xf32>
    %20 = vector.extract_strided_slice %19 {offsets = [0, 0], sizes = [8, 128], strides = [1, 1]} : vector<8x384xf32> to vector<8x128xf32>
    %21 = vector.extract_strided_slice %19 {offsets = [0, 128], sizes = [8, 128], strides = [1, 1]} : vector<8x384xf32> to vector<8x128xf32>
    %22 = vector.extract_strided_slice %19 {offsets = [0, 256], sizes = [8, 128], strides = [1, 1]} : vector<8x384xf32> to vector<8x128xf32>
    %23 = vector.extract_strided_slice %11 {offsets = [0, 384], sizes = [8, 128], strides = [1, 1]} : vector<8x512xf32> to vector<8x128xf32>
    %24 = math.tanh %23 : vector<8x128xf32>
    %25 = arith.mulf %21, %6 : vector<8x128xf32>
    %26 = arith.mulf %20, %24 : vector<8x128xf32>
    %27 = arith.addf %25, %26 : vector<8x128xf32>
    %28 = math.tanh %27 : vector<8x128xf32>
    %29 = arith.mulf %22, %28 : vector<8x128xf32>
    %30 = arith.index_cast %c0_i32_6 : i32 to index
    %c0_12 = arith.constant 0 : index
    %c0_13 = arith.constant 0 : index
    %31 = vector.load %arg6[%30, %c0_12, %c0_13] : memref<8x8x128xf32, #tpu.memory_space<vmem>>, vector<1x8x128xf32>
    %32 = vector.shape_cast %31 : vector<1x8x128xf32> to vector<8x128xf32>
    %33 = vector.shape_cast %29 : vector<8x128xf32> to vector<1x8x128xf32>
    tpu.vector_store %arg6[%30, %c0_12, %c0_13], %33 {strides = array<i32>} : memref<8x8x128xf32, #tpu.memory_space<vmem>>, vector<1x8x128xf32>,
    %34 = arith.addi %4, %c0_i32_6 : i32
    %c7_i32 = arith.constant 7 : i32
    %35 = arith.cmpi eq, %34, %c7_i32 : i32
    %36 = arith.extui %35 : i1 to i32
    %c0_i32_14 = arith.constant 0 : i32
    %37 = arith.cmpi ne, %36, %c0_i32_14 : i32
    scf.if %37 {
      %c0_91 = arith.constant 0 : index
      %c0_92 = arith.constant 0 : index
      %257 = vector.load %arg7[%c0_91, %c0_92] : memref<8x128xf32, #tpu.memory_space<vmem>>, vector<8x128xf32>
      tpu.vector_store %arg7[%c0_91, %c0_92], %29 {strides = array<i32>} : memref<8x128xf32, #tpu.memory_space<vmem>>, vector<8x128xf32>,
      %c0_93 = arith.constant 0 : index
      %c0_94 = arith.constant 0 : index
      %258 = vector.load %arg8[%c0_93, %c0_94] : memref<8x128xf32, #tpu.memory_space<vmem>>, vector<8x128xf32>
      tpu.vector_store %arg8[%c0_93, %c0_94], %27 {strides = array<i32>} : memref<8x128xf32, #tpu.memory_space<vmem>>, vector<8x128xf32>,
    } else {
    }
    %c1_i32 = arith.constant 1 : i32
    %38 = arith.index_cast %c1_i32 : i32 to index
    %c0_15 = arith.constant 0 : index
    %c0_16 = arith.constant 0 : index
    %39 = vector.load %arg2[%38, %c0_15, %c0_16] : memref<8x8x512xf32, #tpu.memory_space<vmem>>, vector<1x8x512xf32>
    %40 = vector.shape_cast %39 : vector<1x8x512xf32> to vector<8x512xf32>
    %cst_17 = arith.constant dense<0.000000e+00> : vector<8x512xf32>
    %41 = tpu.matmul %29, %3, %cst_17 {dimension_numbers = #tpu.dot_dimension_numbers<[1], [0], [0], [1], [0, 0, 1, 1], [], []>} : vector<8x128xf32>, vector<128x512xf32>, vector<8x512xf32> -> vector<8x512xf32>
    %42 = arith.addf %40, %41 : vector<8x512xf32>
    %43 = vector.extract_strided_slice %42 {offsets = [0, 0], sizes = [8, 384], strides = [1, 1]} : vector<8x512xf32> to vector<8x384xf32>
    %cst_18 = arith.constant 5.000000e-01 : f32
    %44 = vector.broadcast %cst_18 : f32 to vector<8x384xf32>
    %45 = arith.mulf %44, %43 : vector<8x384xf32>
    %46 = math.tanh %45 : vector<8x384xf32>
    %cst_19 = arith.constant 5.000000e-01 : f32
    %47 = vector.broadcast %cst_19 : f32 to vector<8x384xf32>
    %48 = arith.mulf %47, %46 : vector<8x384xf32>
    %cst_20 = arith.constant 5.000000e-01 : f32
    %49 = vector.broadcast %cst_20 : f32 to vector<8x384xf32>
    %50 = arith.addf %48, %49 : vector<8x384xf32>
    %51 = vector.extract_strided_slice %50 {offsets = [0, 0], sizes = [8, 128], strides = [1, 1]} : vector<8x384xf32> to vector<8x128xf32>
    %52 = vector.extract_strided_slice %50 {offsets = [0, 128], sizes = [8, 128], strides = [1, 1]} : vector<8x384xf32> to vector<8x128xf32>
    %53 = vector.extract_strided_slice %50 {offsets = [0, 256], sizes = [8, 128], strides = [1, 1]} : vector<8x384xf32> to vector<8x128xf32>
    %54 = vector.extract_strided_slice %42 {offsets = [0, 384], sizes = [8, 128], strides = [1, 1]} : vector<8x512xf32> to vector<8x128xf32>
    %55 = math.tanh %54 : vector<8x128xf32>
    %56 = arith.mulf %52, %27 : vector<8x128xf32>
    %57 = arith.mulf %51, %55 : vector<8x128xf32>
    %58 = arith.addf %56, %57 : vector<8x128xf32>
    %59 = math.tanh %58 : vector<8x128xf32>
    %60 = arith.mulf %53, %59 : vector<8x128xf32>
    %61 = arith.index_cast %c1_i32 : i32 to index
    %c0_21 = arith.constant 0 : index
    %c0_22 = arith.constant 0 : index
    %62 = vector.load %arg6[%61, %c0_21, %c0_22] : memref<8x8x128xf32, #tpu.memory_space<vmem>>, vector<1x8x128xf32>
    %63 = vector.shape_cast %62 : vector<1x8x128xf32> to vector<8x128xf32>
    %64 = vector.shape_cast %60 : vector<8x128xf32> to vector<1x8x128xf32>
    tpu.vector_store %arg6[%61, %c0_21, %c0_22], %64 {strides = array<i32>} : memref<8x8x128xf32, #tpu.memory_space<vmem>>, vector<1x8x128xf32>,
    %65 = arith.addi %4, %c1_i32 : i32
    %c7_i32_23 = arith.constant 7 : i32
    %66 = arith.cmpi eq, %65, %c7_i32_23 : i32
    %67 = arith.extui %66 : i1 to i32
    %c0_i32_24 = arith.constant 0 : i32
    %68 = arith.cmpi ne, %67, %c0_i32_24 : i32
    scf.if %68 {
      %c0_91 = arith.constant 0 : index
      %c0_92 = arith.constant 0 : index
      %257 = vector.load %arg7[%c0_91, %c0_92] : memref<8x128xf32, #tpu.memory_space<vmem>>, vector<8x128xf32>
      tpu.vector_store %arg7[%c0_91, %c0_92], %60 {strides = array<i32>} : memref<8x128xf32, #tpu.memory_space<vmem>>, vector<8x128xf32>,
      %c0_93 = arith.constant 0 : index
      %c0_94 = arith.constant 0 : index
      %258 = vector.load %arg8[%c0_93, %c0_94] : memref<8x128xf32, #tpu.memory_space<vmem>>, vector<8x128xf32>
      tpu.vector_store %arg8[%c0_93, %c0_94], %58 {strides = array<i32>} : memref<8x128xf32, #tpu.memory_space<vmem>>, vector<8x128xf32>,
    } else {
    }
    %c2_i32 = arith.constant 2 : i32
    %69 = arith.index_cast %c2_i32 : i32 to index
    %c0_25 = arith.constant 0 : index
    %c0_26 = arith.constant 0 : index
    %70 = vector.load %arg2[%69, %c0_25, %c0_26] : memref<8x8x512xf32, #tpu.memory_space<vmem>>, vector<1x8x512xf32>
    %71 = vector.shape_cast %70 : vector<1x8x512xf32> to vector<8x512xf32>
    %cst_27 = arith.constant dense<0.000000e+00> : vector<8x512xf32>
    %72 = tpu.matmul %60, %3, %cst_27 {dimension_numbers = #tpu.dot_dimension_numbers<[1], [0], [0], [1], [0, 0, 1, 1], [], []>} : vector<8x128xf32>, vector<128x512xf32>, vector<8x512xf32> -> vector<8x512xf32>
    %73 = arith.addf %71, %72 : vector<8x512xf32>
    %74 = vector.extract_strided_slice %73 {offsets = [0, 0], sizes = [8, 384], strides = [1, 1]} : vector<8x512xf32> to vector<8x384xf32>
    %cst_28 = arith.constant 5.000000e-01 : f32
    %75 = vector.broadcast %cst_28 : f32 to vector<8x384xf32>
    %76 = arith.mulf %75, %74 : vector<8x384xf32>
    %77 = math.tanh %76 : vector<8x384xf32>
    %cst_29 = arith.constant 5.000000e-01 : f32
    %78 = vector.broadcast %cst_29 : f32 to vector<8x384xf32>
    %79 = arith.mulf %78, %77 : vector<8x384xf32>
    %cst_30 = arith.constant 5.000000e-01 : f32
    %80 = vector.broadcast %cst_30 : f32 to vector<8x384xf32>
    %81 = arith.addf %79, %80 : vector<8x384xf32>
    %82 = vector.extract_strided_slice %81 {offsets = [0, 0], sizes = [8, 128], strides = [1, 1]} : vector<8x384xf32> to vector<8x128xf32>
    %83 = vector.extract_strided_slice %81 {offsets = [0, 128], sizes = [8, 128], strides = [1, 1]} : vector<8x384xf32> to vector<8x128xf32>
    %84 = vector.extract_strided_slice %81 {offsets = [0, 256], sizes = [8, 128], strides = [1, 1]} : vector<8x384xf32> to vector<8x128xf32>
    %85 = vector.extract_strided_slice %73 {offsets = [0, 384], sizes = [8, 128], strides = [1, 1]} : vector<8x512xf32> to vector<8x128xf32>
    %86 = math.tanh %85 : vector<8x128xf32>
    %87 = arith.mulf %83, %58 : vector<8x128xf32>
    %88 = arith.mulf %82, %86 : vector<8x128xf32>
    %89 = arith.addf %87, %88 : vector<8x128xf32>
    %90 = math.tanh %89 : vector<8x128xf32>
    %91 = arith.mulf %84, %90 : vector<8x128xf32>
    %92 = arith.index_cast %c2_i32 : i32 to index
    %c0_31 = arith.constant 0 : index
    %c0_32 = arith.constant 0 : index
    %93 = vector.load %arg6[%92, %c0_31, %c0_32] : memref<8x8x128xf32, #tpu.memory_space<vmem>>, vector<1x8x128xf32>
    %94 = vector.shape_cast %93 : vector<1x8x128xf32> to vector<8x128xf32>
    %95 = vector.shape_cast %91 : vector<8x128xf32> to vector<1x8x128xf32>
    tpu.vector_store %arg6[%92, %c0_31, %c0_32], %95 {strides = array<i32>} : memref<8x8x128xf32, #tpu.memory_space<vmem>>, vector<1x8x128xf32>,
    %96 = arith.addi %4, %c2_i32 : i32
    %c7_i32_33 = arith.constant 7 : i32
    %97 = arith.cmpi eq, %96, %c7_i32_33 : i32
    %98 = arith.extui %97 : i1 to i32
    %c0_i32_34 = arith.constant 0 : i32
    %99 = arith.cmpi ne, %98, %c0_i32_34 : i32
    scf.if %99 {
      %c0_91 = arith.constant 0 : index
      %c0_92 = arith.constant 0 : index
      %257 = vector.load %arg7[%c0_91, %c0_92] : memref<8x128xf32, #tpu.memory_space<vmem>>, vector<8x128xf32>
      tpu.vector_store %arg7[%c0_91, %c0_92], %91 {strides = array<i32>} : memref<8x128xf32, #tpu.memory_space<vmem>>, vector<8x128xf32>,
      %c0_93 = arith.constant 0 : index
      %c0_94 = arith.constant 0 : index
      %258 = vector.load %arg8[%c0_93, %c0_94] : memref<8x128xf32, #tpu.memory_space<vmem>>, vector<8x128xf32>
      tpu.vector_store %arg8[%c0_93, %c0_94], %89 {strides = array<i32>} : memref<8x128xf32, #tpu.memory_space<vmem>>, vector<8x128xf32>,
    } else {
    }
    %c3_i32 = arith.constant 3 : i32
    %100 = arith.index_cast %c3_i32 : i32 to index
    %c0_35 = arith.constant 0 : index
    %c0_36 = arith.constant 0 : index
    %101 = vector.load %arg2[%100, %c0_35, %c0_36] : memref<8x8x512xf32, #tpu.memory_space<vmem>>, vector<1x8x512xf32>
    %102 = vector.shape_cast %101 : vector<1x8x512xf32> to vector<8x512xf32>
    %cst_37 = arith.constant dense<0.000000e+00> : vector<8x512xf32>
    %103 = tpu.matmul %91, %3, %cst_37 {dimension_numbers = #tpu.dot_dimension_numbers<[1], [0], [0], [1], [0, 0, 1, 1], [], []>} : vector<8x128xf32>, vector<128x512xf32>, vector<8x512xf32> -> vector<8x512xf32>
    %104 = arith.addf %102, %103 : vector<8x512xf32>
    %105 = vector.extract_strided_slice %104 {offsets = [0, 0], sizes = [8, 384], strides = [1, 1]} : vector<8x512xf32> to vector<8x384xf32>
    %cst_38 = arith.constant 5.000000e-01 : f32
    %106 = vector.broadcast %cst_38 : f32 to vector<8x384xf32>
    %107 = arith.mulf %106, %105 : vector<8x384xf32>
    %108 = math.tanh %107 : vector<8x384xf32>
    %cst_39 = arith.constant 5.000000e-01 : f32
    %109 = vector.broadcast %cst_39 : f32 to vector<8x384xf32>
    %110 = arith.mulf %109, %108 : vector<8x384xf32>
    %cst_40 = arith.constant 5.000000e-01 : f32
    %111 = vector.broadcast %cst_40 : f32 to vector<8x384xf32>
    %112 = arith.addf %110, %111 : vector<8x384xf32>
    %113 = vector.extract_strided_slice %112 {offsets = [0, 0], sizes = [8, 128], strides = [1, 1]} : vector<8x384xf32> to vector<8x128xf32>
    %114 = vector.extract_strided_slice %112 {offsets = [0, 128], sizes = [8, 128], strides = [1, 1]} : vector<8x384xf32> to vector<8x128xf32>
    %115 = vector.extract_strided_slice %112 {offsets = [0, 256], sizes = [8, 128], strides = [1, 1]} : vector<8x384xf32> to vector<8x128xf32>
    %116 = vector.extract_strided_slice %104 {offsets = [0, 384], sizes = [8, 128], strides = [1, 1]} : vector<8x512xf32> to vector<8x128xf32>
    %117 = math.tanh %116 : vector<8x128xf32>
    %118 = arith.mulf %114, %89 : vector<8x128xf32>
    %119 = arith.mulf %113, %117 : vector<8x128xf32>
    %120 = arith.addf %118, %119 : vector<8x128xf32>
    %121 = math.tanh %120 : vector<8x128xf32>
    %122 = arith.mulf %115, %121 : vector<8x128xf32>
    %123 = arith.index_cast %c3_i32 : i32 to index
    %c0_41 = arith.constant 0 : index
    %c0_42 = arith.constant 0 : index
    %124 = vector.load %arg6[%123, %c0_41, %c0_42] : memref<8x8x128xf32, #tpu.memory_space<vmem>>, vector<1x8x128xf32>
    %125 = vector.shape_cast %124 : vector<1x8x128xf32> to vector<8x128xf32>
    %126 = vector.shape_cast %122 : vector<8x128xf32> to vector<1x8x128xf32>
    tpu.vector_store %arg6[%123, %c0_41, %c0_42], %126 {strides = array<i32>} : memref<8x8x128xf32, #tpu.memory_space<vmem>>, vector<1x8x128xf32>,
    %127 = arith.addi %4, %c3_i32 : i32
    %c7_i32_43 = arith.constant 7 : i32
    %128 = arith.cmpi eq, %127, %c7_i32_43 : i32
    %129 = arith.extui %128 : i1 to i32
    %c0_i32_44 = arith.constant 0 : i32
    %130 = arith.cmpi ne, %129, %c0_i32_44 : i32
    scf.if %130 {
      %c0_91 = arith.constant 0 : index
      %c0_92 = arith.constant 0 : index
      %257 = vector.load %arg7[%c0_91, %c0_92] : memref<8x128xf32, #tpu.memory_space<vmem>>, vector<8x128xf32>
      tpu.vector_store %arg7[%c0_91, %c0_92], %122 {strides = array<i32>} : memref<8x128xf32, #tpu.memory_space<vmem>>, vector<8x128xf32>,
      %c0_93 = arith.constant 0 : index
      %c0_94 = arith.constant 0 : index
      %258 = vector.load %arg8[%c0_93, %c0_94] : memref<8x128xf32, #tpu.memory_space<vmem>>, vector<8x128xf32>
      tpu.vector_store %arg8[%c0_93, %c0_94], %120 {strides = array<i32>} : memref<8x128xf32, #tpu.memory_space<vmem>>, vector<8x128xf32>,
    } else {
    }
    %c4_i32 = arith.constant 4 : i32
    %131 = arith.index_cast %c4_i32 : i32 to index
    %c0_45 = arith.constant 0 : index
    %c0_46 = arith.constant 0 : index
    %132 = vector.load %arg2[%131, %c0_45, %c0_46] : memref<8x8x512xf32, #tpu.memory_space<vmem>>, vector<1x8x512xf32>
    %133 = vector.shape_cast %132 : vector<1x8x512xf32> to vector<8x512xf32>
    %cst_47 = arith.constant dense<0.000000e+00> : vector<8x512xf32>
    %134 = tpu.matmul %122, %3, %cst_47 {dimension_numbers = #tpu.dot_dimension_numbers<[1], [0], [0], [1], [0, 0, 1, 1], [], []>} : vector<8x128xf32>, vector<128x512xf32>, vector<8x512xf32> -> vector<8x512xf32>
    %135 = arith.addf %133, %134 : vector<8x512xf32>
    %136 = vector.extract_strided_slice %135 {offsets = [0, 0], sizes = [8, 384], strides = [1, 1]} : vector<8x512xf32> to vector<8x384xf32>
    %cst_48 = arith.constant 5.000000e-01 : f32
    %137 = vector.broadcast %cst_48 : f32 to vector<8x384xf32>
    %138 = arith.mulf %137, %136 : vector<8x384xf32>
    %139 = math.tanh %138 : vector<8x384xf32>
    %cst_49 = arith.constant 5.000000e-01 : f32
    %140 = vector.broadcast %cst_49 : f32 to vector<8x384xf32>
    %141 = arith.mulf %140, %139 : vector<8x384xf32>
    %cst_50 = arith.constant 5.000000e-01 : f32
    %142 = vector.broadcast %cst_50 : f32 to vector<8x384xf32>
    %143 = arith.addf %141, %142 : vector<8x384xf32>
    %144 = vector.extract_strided_slice %143 {offsets = [0, 0], sizes = [8, 128], strides = [1, 1]} : vector<8x384xf32> to vector<8x128xf32>
    %145 = vector.extract_strided_slice %143 {offsets = [0, 128], sizes = [8, 128], strides = [1, 1]} : vector<8x384xf32> to vector<8x128xf32>
    %146 = vector.extract_strided_slice %143 {offsets = [0, 256], sizes = [8, 128], strides = [1, 1]} : vector<8x384xf32> to vector<8x128xf32>
    %147 = vector.extract_strided_slice %135 {offsets = [0, 384], sizes = [8, 128], strides = [1, 1]} : vector<8x512xf32> to vector<8x128xf32>
    %148 = math.tanh %147 : vector<8x128xf32>
    %149 = arith.mulf %145, %120 : vector<8x128xf32>
    %150 = arith.mulf %144, %148 : vector<8x128xf32>
    %151 = arith.addf %149, %150 : vector<8x128xf32>
    %152 = math.tanh %151 : vector<8x128xf32>
    %153 = arith.mulf %146, %152 : vector<8x128xf32>
    %154 = arith.index_cast %c4_i32 : i32 to index
    %c0_51 = arith.constant 0 : index
    %c0_52 = arith.constant 0 : index
    %155 = vector.load %arg6[%154, %c0_51, %c0_52] : memref<8x8x128xf32, #tpu.memory_space<vmem>>, vector<1x8x128xf32>
    %156 = vector.shape_cast %155 : vector<1x8x128xf32> to vector<8x128xf32>
    %157 = vector.shape_cast %153 : vector<8x128xf32> to vector<1x8x128xf32>
    tpu.vector_store %arg6[%154, %c0_51, %c0_52], %157 {strides = array<i32>} : memref<8x8x128xf32, #tpu.memory_space<vmem>>, vector<1x8x128xf32>,
    %158 = arith.addi %4, %c4_i32 : i32
    %c7_i32_53 = arith.constant 7 : i32
    %159 = arith.cmpi eq, %158, %c7_i32_53 : i32
    %160 = arith.extui %159 : i1 to i32
    %c0_i32_54 = arith.constant 0 : i32
    %161 = arith.cmpi ne, %160, %c0_i32_54 : i32
    scf.if %161 {
      %c0_91 = arith.constant 0 : index
      %c0_92 = arith.constant 0 : index
      %257 = vector.load %arg7[%c0_91, %c0_92] : memref<8x128xf32, #tpu.memory_space<vmem>>, vector<8x128xf32>
      tpu.vector_store %arg7[%c0_91, %c0_92], %153 {strides = array<i32>} : memref<8x128xf32, #tpu.memory_space<vmem>>, vector<8x128xf32>,
      %c0_93 = arith.constant 0 : index
      %c0_94 = arith.constant 0 : index
      %258 = vector.load %arg8[%c0_93, %c0_94] : memref<8x128xf32, #tpu.memory_space<vmem>>, vector<8x128xf32>
      tpu.vector_store %arg8[%c0_93, %c0_94], %151 {strides = array<i32>} : memref<8x128xf32, #tpu.memory_space<vmem>>, vector<8x128xf32>,
    } else {
    }
    %c5_i32 = arith.constant 5 : i32
    %162 = arith.index_cast %c5_i32 : i32 to index
    %c0_55 = arith.constant 0 : index
    %c0_56 = arith.constant 0 : index
    %163 = vector.load %arg2[%162, %c0_55, %c0_56] : memref<8x8x512xf32, #tpu.memory_space<vmem>>, vector<1x8x512xf32>
    %164 = vector.shape_cast %163 : vector<1x8x512xf32> to vector<8x512xf32>
    %cst_57 = arith.constant dense<0.000000e+00> : vector<8x512xf32>
    %165 = tpu.matmul %153, %3, %cst_57 {dimension_numbers = #tpu.dot_dimension_numbers<[1], [0], [0], [1], [0, 0, 1, 1], [], []>} : vector<8x128xf32>, vector<128x512xf32>, vector<8x512xf32> -> vector<8x512xf32>
    %166 = arith.addf %164, %165 : vector<8x512xf32>
    %167 = vector.extract_strided_slice %166 {offsets = [0, 0], sizes = [8, 384], strides = [1, 1]} : vector<8x512xf32> to vector<8x384xf32>
    %cst_58 = arith.constant 5.000000e-01 : f32
    %168 = vector.broadcast %cst_58 : f32 to vector<8x384xf32>
    %169 = arith.mulf %168, %167 : vector<8x384xf32>
    %170 = math.tanh %169 : vector<8x384xf32>
    %cst_59 = arith.constant 5.000000e-01 : f32
    %171 = vector.broadcast %cst_59 : f32 to vector<8x384xf32>
    %172 = arith.mulf %171, %170 : vector<8x384xf32>
    %cst_60 = arith.constant 5.000000e-01 : f32
    %173 = vector.broadcast %cst_60 : f32 to vector<8x384xf32>
    %174 = arith.addf %172, %173 : vector<8x384xf32>
    %175 = vector.extract_strided_slice %174 {offsets = [0, 0], sizes = [8, 128], strides = [1, 1]} : vector<8x384xf32> to vector<8x128xf32>
    %176 = vector.extract_strided_slice %174 {offsets = [0, 128], sizes = [8, 128], strides = [1, 1]} : vector<8x384xf32> to vector<8x128xf32>
    %177 = vector.extract_strided_slice %174 {offsets = [0, 256], sizes = [8, 128], strides = [1, 1]} : vector<8x384xf32> to vector<8x128xf32>
    %178 = vector.extract_strided_slice %166 {offsets = [0, 384], sizes = [8, 128], strides = [1, 1]} : vector<8x512xf32> to vector<8x128xf32>
    %179 = math.tanh %178 : vector<8x128xf32>
    %180 = arith.mulf %176, %151 : vector<8x128xf32>
    %181 = arith.mulf %175, %179 : vector<8x128xf32>
    %182 = arith.addf %180, %181 : vector<8x128xf32>
    %183 = math.tanh %182 : vector<8x128xf32>
    %184 = arith.mulf %177, %183 : vector<8x128xf32>
    %185 = arith.index_cast %c5_i32 : i32 to index
    %c0_61 = arith.constant 0 : index
    %c0_62 = arith.constant 0 : index
    %186 = vector.load %arg6[%185, %c0_61, %c0_62] : memref<8x8x128xf32, #tpu.memory_space<vmem>>, vector<1x8x128xf32>
    %187 = vector.shape_cast %186 : vector<1x8x128xf32> to vector<8x128xf32>
    %188 = vector.shape_cast %184 : vector<8x128xf32> to vector<1x8x128xf32>
    tpu.vector_store %arg6[%185, %c0_61, %c0_62], %188 {strides = array<i32>} : memref<8x8x128xf32, #tpu.memory_space<vmem>>, vector<1x8x128xf32>,
    %189 = arith.addi %4, %c5_i32 : i32
    %c7_i32_63 = arith.constant 7 : i32
    %190 = arith.cmpi eq, %189, %c7_i32_63 : i32
    %191 = arith.extui %190 : i1 to i32
    %c0_i32_64 = arith.constant 0 : i32
    %192 = arith.cmpi ne, %191, %c0_i32_64 : i32
    scf.if %192 {
      %c0_91 = arith.constant 0 : index
      %c0_92 = arith.constant 0 : index
      %257 = vector.load %arg7[%c0_91, %c0_92] : memref<8x128xf32, #tpu.memory_space<vmem>>, vector<8x128xf32>
      tpu.vector_store %arg7[%c0_91, %c0_92], %184 {strides = array<i32>} : memref<8x128xf32, #tpu.memory_space<vmem>>, vector<8x128xf32>,
      %c0_93 = arith.constant 0 : index
      %c0_94 = arith.constant 0 : index
      %258 = vector.load %arg8[%c0_93, %c0_94] : memref<8x128xf32, #tpu.memory_space<vmem>>, vector<8x128xf32>
      tpu.vector_store %arg8[%c0_93, %c0_94], %182 {strides = array<i32>} : memref<8x128xf32, #tpu.memory_space<vmem>>, vector<8x128xf32>,
    } else {
    }
    %c6_i32 = arith.constant 6 : i32
    %193 = arith.index_cast %c6_i32 : i32 to index
    %c0_65 = arith.constant 0 : index
    %c0_66 = arith.constant 0 : index
    %194 = vector.load %arg2[%193, %c0_65, %c0_66] : memref<8x8x512xf32, #tpu.memory_space<vmem>>, vector<1x8x512xf32>
    %195 = vector.shape_cast %194 : vector<1x8x512xf32> to vector<8x512xf32>
    %cst_67 = arith.constant dense<0.000000e+00> : vector<8x512xf32>
    %196 = tpu.matmul %184, %3, %cst_67 {dimension_numbers = #tpu.dot_dimension_numbers<[1], [0], [0], [1], [0, 0, 1, 1], [], []>} : vector<8x128xf32>, vector<128x512xf32>, vector<8x512xf32> -> vector<8x512xf32>
    %197 = arith.addf %195, %196 : vector<8x512xf32>
    %198 = vector.extract_strided_slice %197 {offsets = [0, 0], sizes = [8, 384], strides = [1, 1]} : vector<8x512xf32> to vector<8x384xf32>
    %cst_68 = arith.constant 5.000000e-01 : f32
    %199 = vector.broadcast %cst_68 : f32 to vector<8x384xf32>
    %200 = arith.mulf %199, %198 : vector<8x384xf32>
    %201 = math.tanh %200 : vector<8x384xf32>
    %cst_69 = arith.constant 5.000000e-01 : f32
    %202 = vector.broadcast %cst_69 : f32 to vector<8x384xf32>
    %203 = arith.mulf %202, %201 : vector<8x384xf32>
    %cst_70 = arith.constant 5.000000e-01 : f32
    %204 = vector.broadcast %cst_70 : f32 to vector<8x384xf32>
    %205 = arith.addf %203, %204 : vector<8x384xf32>
    %206 = vector.extract_strided_slice %205 {offsets = [0, 0], sizes = [8, 128], strides = [1, 1]} : vector<8x384xf32> to vector<8x128xf32>
    %207 = vector.extract_strided_slice %205 {offsets = [0, 128], sizes = [8, 128], strides = [1, 1]} : vector<8x384xf32> to vector<8x128xf32>
    %208 = vector.extract_strided_slice %205 {offsets = [0, 256], sizes = [8, 128], strides = [1, 1]} : vector<8x384xf32> to vector<8x128xf32>
    %209 = vector.extract_strided_slice %197 {offsets = [0, 384], sizes = [8, 128], strides = [1, 1]} : vector<8x512xf32> to vector<8x128xf32>
    %210 = math.tanh %209 : vector<8x128xf32>
    %211 = arith.mulf %207, %182 : vector<8x128xf32>
    %212 = arith.mulf %206, %210 : vector<8x128xf32>
    %213 = arith.addf %211, %212 : vector<8x128xf32>
    %214 = math.tanh %213 : vector<8x128xf32>
    %215 = arith.mulf %208, %214 : vector<8x128xf32>
    %216 = arith.index_cast %c6_i32 : i32 to index
    %c0_71 = arith.constant 0 : index
    %c0_72 = arith.constant 0 : index
    %217 = vector.load %arg6[%216, %c0_71, %c0_72] : memref<8x8x128xf32, #tpu.memory_space<vmem>>, vector<1x8x128xf32>
    %218 = vector.shape_cast %217 : vector<1x8x128xf32> to vector<8x128xf32>
    %219 = vector.shape_cast %215 : vector<8x128xf32> to vector<1x8x128xf32>
    tpu.vector_store %arg6[%216, %c0_71, %c0_72], %219 {strides = array<i32>} : memref<8x8x128xf32, #tpu.memory_space<vmem>>, vector<1x8x128xf32>,
    %220 = arith.addi %4, %c6_i32 : i32
    %c7_i32_73 = arith.constant 7 : i32
    %221 = arith.cmpi eq, %220, %c7_i32_73 : i32
    %222 = arith.extui %221 : i1 to i32
    %c0_i32_74 = arith.constant 0 : i32
    %223 = arith.cmpi ne, %222, %c0_i32_74 : i32
    scf.if %223 {
      %c0_91 = arith.constant 0 : index
      %c0_92 = arith.constant 0 : index
      %257 = vector.load %arg7[%c0_91, %c0_92] : memref<8x128xf32, #tpu.memory_space<vmem>>, vector<8x128xf32>
      tpu.vector_store %arg7[%c0_91, %c0_92], %215 {strides = array<i32>} : memref<8x128xf32, #tpu.memory_space<vmem>>, vector<8x128xf32>,
      %c0_93 = arith.constant 0 : index
      %c0_94 = arith.constant 0 : index
      %258 = vector.load %arg8[%c0_93, %c0_94] : memref<8x128xf32, #tpu.memory_space<vmem>>, vector<8x128xf32>
      tpu.vector_store %arg8[%c0_93, %c0_94], %213 {strides = array<i32>} : memref<8x128xf32, #tpu.memory_space<vmem>>, vector<8x128xf32>,
    } else {
    }
    %c7_i32_75 = arith.constant 7 : i32
    %224 = arith.index_cast %c7_i32_75 : i32 to index
    %c0_76 = arith.constant 0 : index
    %c0_77 = arith.constant 0 : index
    %225 = vector.load %arg2[%224, %c0_76, %c0_77] : memref<8x8x512xf32, #tpu.memory_space<vmem>>, vector<1x8x512xf32>
    %226 = vector.shape_cast %225 : vector<1x8x512xf32> to vector<8x512xf32>
    %cst_78 = arith.constant dense<0.000000e+00> : vector<8x512xf32>
    %227 = tpu.matmul %215, %3, %cst_78 {dimension_numbers = #tpu.dot_dimension_numbers<[1], [0], [0], [1], [0, 0, 1, 1], [], []>} : vector<8x128xf32>, vector<128x512xf32>, vector<8x512xf32> -> vector<8x512xf32>
    %228 = arith.addf %226, %227 : vector<8x512xf32>
    %229 = vector.extract_strided_slice %228 {offsets = [0, 0], sizes = [8, 384], strides = [1, 1]} : vector<8x512xf32> to vector<8x384xf32>
    %cst_79 = arith.constant 5.000000e-01 : f32
    %230 = vector.broadcast %cst_79 : f32 to vector<8x384xf32>
    %231 = arith.mulf %230, %229 : vector<8x384xf32>
    %232 = math.tanh %231 : vector<8x384xf32>
    %cst_80 = arith.constant 5.000000e-01 : f32
    %233 = vector.broadcast %cst_80 : f32 to vector<8x384xf32>
    %234 = arith.mulf %233, %232 : vector<8x384xf32>
    %cst_81 = arith.constant 5.000000e-01 : f32
    %235 = vector.broadcast %cst_81 : f32 to vector<8x384xf32>
    %236 = arith.addf %234, %235 : vector<8x384xf32>
    %237 = vector.extract_strided_slice %236 {offsets = [0, 0], sizes = [8, 128], strides = [1, 1]} : vector<8x384xf32> to vector<8x128xf32>
    %238 = vector.extract_strided_slice %236 {offsets = [0, 128], sizes = [8, 128], strides = [1, 1]} : vector<8x384xf32> to vector<8x128xf32>
    %239 = vector.extract_strided_slice %236 {offsets = [0, 256], sizes = [8, 128], strides = [1, 1]} : vector<8x384xf32> to vector<8x128xf32>
    %240 = vector.extract_strided_slice %228 {offsets = [0, 384], sizes = [8, 128], strides = [1, 1]} : vector<8x512xf32> to vector<8x128xf32>
    %241 = math.tanh %240 : vector<8x128xf32>
    %242 = arith.mulf %238, %213 : vector<8x128xf32>
    %243 = arith.mulf %237, %241 : vector<8x128xf32>
    %244 = arith.addf %242, %243 : vector<8x128xf32>
    %245 = math.tanh %244 : vector<8x128xf32>
    %246 = arith.mulf %239, %245 : vector<8x128xf32>
    %247 = arith.index_cast %c7_i32_75 : i32 to index
    %c0_82 = arith.constant 0 : index
    %c0_83 = arith.constant 0 : index
    %248 = vector.load %arg6[%247, %c0_82, %c0_83] : memref<8x8x128xf32, #tpu.memory_space<vmem>>, vector<1x8x128xf32>
    %249 = vector.shape_cast %248 : vector<1x8x128xf32> to vector<8x128xf32>
    %250 = vector.shape_cast %246 : vector<8x128xf32> to vector<1x8x128xf32>
    tpu.vector_store %arg6[%247, %c0_82, %c0_83], %250 {strides = array<i32>} : memref<8x8x128xf32, #tpu.memory_space<vmem>>, vector<1x8x128xf32>,
    %251 = arith.addi %4, %c7_i32_75 : i32
    %c7_i32_84 = arith.constant 7 : i32
    %252 = arith.cmpi eq, %251, %c7_i32_84 : i32
    %253 = arith.extui %252 : i1 to i32
    %c0_i32_85 = arith.constant 0 : i32
    %254 = arith.cmpi ne, %253, %c0_i32_85 : i32
    scf.if %254 {
      %c0_91 = arith.constant 0 : index
      %c0_92 = arith.constant 0 : index
      %257 = vector.load %arg7[%c0_91, %c0_92] : memref<8x128xf32, #tpu.memory_space<vmem>>, vector<8x128xf32>
      tpu.vector_store %arg7[%c0_91, %c0_92], %246 {strides = array<i32>} : memref<8x128xf32, #tpu.memory_space<vmem>>, vector<8x128xf32>,
      %c0_93 = arith.constant 0 : index
      %c0_94 = arith.constant 0 : index
      %258 = vector.load %arg8[%c0_93, %c0_94] : memref<8x128xf32, #tpu.memory_space<vmem>>, vector<8x128xf32>
      tpu.vector_store %arg8[%c0_93, %c0_94], %244 {strides = array<i32>} : memref<8x128xf32, #tpu.memory_space<vmem>>, vector<8x128xf32>,
    } else {
    }
    %c8_i32_86 = arith.constant 8 : i32
    %c0_87 = arith.constant 0 : index
    %c0_88 = arith.constant 0 : index
    %255 = vector.load %arg9[%c0_87, %c0_88] : memref<8x128xf32, #tpu.memory_space<vmem>>, vector<8x128xf32>
    tpu.vector_store %arg9[%c0_87, %c0_88], %246 {strides = array<i32>} : memref<8x128xf32, #tpu.memory_space<vmem>>, vector<8x128xf32>,
    %c0_89 = arith.constant 0 : index
    %c0_90 = arith.constant 0 : index
    %256 = vector.load %arg10[%c0_89, %c0_90] : memref<8x128xf32, #tpu.memory_space<vmem>>, vector<8x128xf32>
    tpu.vector_store %arg10[%c0_89, %c0_90], %244 {strides = array<i32>} : memref<8x128xf32, #tpu.memory_space<vmem>>, vector<8x128xf32>,
    return
  }
  func.func @transform_0(%arg0: i32, %arg1: i32) -> (i32, i32, i32) {
    %c0_i32 = arith.constant 0 : i32
    %c0_i32_0 = arith.constant 0 : i32
    return %arg1, %arg0, %c0_i32 : i32, i32, i32
  }
  func.func @transform_1(%arg0: i32, %arg1: i32) -> (i32, i32) {
    %c0_i32 = arith.constant 0 : i32
    %c0_i32_0 = arith.constant 0 : i32
    %c0_i32_1 = arith.constant 0 : i32
    return %c0_i32, %c0_i32_0 : i32, i32
  }
  func.func @transform_2(%arg0: i32, %arg1: i32) -> (i32, i32) {
    %c0_i32 = arith.constant 0 : i32
    %c0_i32_0 = arith.constant 0 : i32
    return %arg0, %c0_i32 : i32, i32
  }
  func.func @transform_3(%arg0: i32, %arg1: i32) -> (i32, i32) {
    %c0_i32 = arith.constant 0 : i32
    %c0_i32_0 = arith.constant 0 : i32
    return %arg0, %c0_i32 : i32, i32
  }
  func.func @transform_4(%arg0: i32, %arg1: i32) -> (i32, i32, i32) {
    %c0_i32 = arith.constant 0 : i32
    %c0_i32_0 = arith.constant 0 : i32
    return %arg1, %arg0, %c0_i32 : i32, i32, i32
  }
  func.func @transform_5(%arg0: i32, %arg1: i32) -> (i32, i32) {
    %c0_i32 = arith.constant 0 : i32
    %c0_i32_0 = arith.constant 0 : i32
    return %arg0, %c0_i32 : i32, i32
  }
  func.func @transform_6(%arg0: i32, %arg1: i32) -> (i32, i32) {
    %c0_i32 = arith.constant 0 : i32
    %c0_i32_0 = arith.constant 0 : i32
    return %arg0, %c0_i32 : i32, i32
  }
}

</mosaic_0001>

<llo_original>
// kernel: tpu_custom_call.1
$region0: #{tpu_custom_call.1}
  #allocation0 [shape = 'u32[]', space=smem, size = 0x4, offset = 0x4, fixed_abs, tag = 'smem constant byte address 0x4 - core index']
  #allocation1 [shape = 'u32[144,128]{1,0:T(1,128)}', space=vmem, size = 0x12000, scoped, tag = 'internal scratch']
  #allocation2 [shape = 'f32[8,128]{1,0:T(8,128)}', space=vmem, size = 0x1000, scoped, tag = 'scratch operand']
  #allocation3 [shape = 'f32[8,128]{1,0:T(8,128)}', space=vmem, size = 0x1000, scoped, tag = 'scratch operand']
  %s0 = inlined_call_operand.hbm [shape: f32[8,8,512], index: 0, kind: input, shape index: {}]
  %s1 = inlined_call_operand.hbm [shape: f32[128,512], index: 1, kind: input, shape index: {}]
  %s2 = inlined_call_operand.hbm [shape: f32[8,128], index: 2, kind: input, shape index: {}]
  %s3 = inlined_call_operand.hbm [shape: f32[8,128], index: 3, kind: input, shape index: {}]
  %s4 = inlined_call_operand.hbm [shape: f32[8,8,128], index: 4, kind: output, shape index: {0}]
  %s5 = inlined_call_operand.hbm [shape: f32[8,128], index: 5, kind: output, shape index: {1}]
  %s6 = inlined_call_operand.hbm [shape: f32[8,128], index: 6, kind: output, shape index: {2}]
  %7 = xla_tuple %s4, %s5, %s6
  %s8 = sld [smem:[#allocation0]]
  $region94: #{tpu_custom_call.1} parent=0
    _
  %s10 = ssub.s32 1, %s8
  %s11 = scalar_select 0, %s10, %s8
  $region1: #{tpu_custom_call.1} parent=0
    #allocation4 [shape = 'u8[131072]{0}', space=vmem, size = 0x20000, scoped, tag = 'input window, operand 0, single buffered']
    #allocation5 [shape = 's32[1]{0}', space=sflag, size = 0x4, scoped, tag = 'scoped memory for tpu_custom_call.1']
    #allocation6 [shape = 's32[1]{0}', space=sflag, size = 0x4, scoped, tag = 'scoped memory for tpu_custom_call.1']
    #allocation7 [shape = 'u8[262144]{0}', space=vmem, size = 0x40000, scoped, tag = 'input window, operand 1, single buffered']
    #allocation8 [shape = 's32[1]{0}', space=sflag, size = 0x4, scoped, tag = 'scoped memory for tpu_custom_call.1']
    #allocation9 [shape = 'u8[4096]{0}', space=vmem, size = 0x1000, scoped, tag = 'input window, operand 2, single buffered']
    #allocation10 [shape = 'u8[4096]{0}', space=vmem, size = 0x1000, scoped, tag = 'input window, operand 3, single buffered']
    #allocation11 [shape = 's32[1]{0}', space=sflag, size = 0x4, scoped, tag = 'scoped memory for tpu_custom_call.1']
    #allocation12 [shape = 'u8[32768]{0}', space=vmem, size = 0x8000, scoped, tag = 'output window, operand 0, single buffered']
    #allocation13 [shape = 'u8[4096]{0}', space=vmem, size = 0x1000, scoped, tag = 'output window, operand 1, single buffered']
    #allocation14 [shape = 's32[1]{0}', space=sflag, size = 0x4, scoped, tag = 'scoped memory for tpu_custom_call.1']
    #allocation15 [shape = 'u8[4096]{0}', space=vmem, size = 0x1000, scoped, tag = 'output window, operand 2, single buffered']
    %12 = vsyncpa [#allocation5], 0
    %13 = vsyncpa [#allocation8], 0
    %14 = vsyncpa [#allocation11], 0
    %15 = vsyncpa [#allocation6], 0
    %16 = vsyncpa [#allocation14], 0
    // Predicated region
    $region2: #{tpu_custom_call.1} parent=1 // pred_check
      _
    $region3: #{tpu_custom_call.1} parent=1 // pred_check_branch
      %18 = sbr.rel (0) target = $region5
    $region4: #{tpu_custom_call.1} parent=1 // pred_region
      %s20 = ssub.s32 4096, 4096
      %21 = vsyncadd [#allocation5], %s20
      %s22 = sshll.u32 [#allocation4], 4
      %s23 = int_to_ptr.vmem [resolvable:$true] %s22
      %28 = dma.hbm_to_vmem [thread:$0]  %s0, 4096, %s23, [#allocation5], 512, 512, 32
    $region5: #{tpu_custom_call.1} parent=1 // pred_fallthru
      _
    // Predicated region
    $region6: #{tpu_custom_call.1} parent=1 // pred_check
      _
    $region7: #{tpu_custom_call.1} parent=1 // pred_check_branch
      %30 = sbr.rel (0) target = $region9
    $region8: #{tpu_custom_call.1} parent=1 // pred_region
      %s32 = ssub.s32 8192, 8192
      %33 = vsyncadd [#allocation8], %s32
      %s34 = sshll.u32 [#allocation7], 4
      %s35 = int_to_ptr.vmem [resolvable:$true] %s34
      %40 = dma.hbm_to_vmem [thread:$0]  %s1, 8192, %s35, [#allocation8], 512, 512, 32
    $region9: #{tpu_custom_call.1} parent=1 // pred_fallthru
      _
    // Predicated region
    $region10: #{tpu_custom_call.1} parent=1 // pred_check
      _
    $region11: #{tpu_custom_call.1} parent=1 // pred_check_branch
      %42 = sbr.rel (0) target = $region13
    $region12: #{tpu_custom_call.1} parent=1 // pred_region
      %s44 = ssub.s32 128, 128
      %45 = vsyncadd [#allocation8], %s44
      %s47 = sshll.u32 [#allocation9], 4
      %s48 = int_to_ptr.vmem [resolvable:$true] %s47
      %50 = dma.hbm_to_vmem [thread:$0]  %s2, 128, %s48, [#allocation8]
    $region13: #{tpu_custom_call.1} parent=1 // pred_fallthru
      _
    // Predicated region
    $region14: #{tpu_custom_call.1} parent=1 // pred_check
      _
    $region15: #{tpu_custom_call.1} parent=1 // pred_check_branch
      %52 = sbr.rel (0) target = $region17
    $region16: #{tpu_custom_call.1} parent=1 // pred_region
      %s54 = ssub.s32 128, 128
      %55 = vsyncadd [#allocation11], %s54
      %s57 = sshll.u32 [#allocation10], 4
      %s58 = int_to_ptr.vmem [resolvable:$true] %s57
      %60 = dma.hbm_to_vmem [thread:$0]  %s3, 128, %s58, [#allocation11]
    $region17: #{tpu_custom_call.1} parent=1 // pred_fallthru
      _
    // Predicated region
    $region18: #{tpu_custom_call.1} parent=1 // pred_check
      _
    $region19: #{tpu_custom_call.1} parent=1 // pred_check_branch
      %62 = sbr.rel (0) target = $region21
    $region20: #{tpu_custom_call.1} parent=1 // pred_region
      %63 = dma.done [#allocation5], 4096
    $region21: #{tpu_custom_call.1} parent=1 // pred_fallthru
      _
    // Predicated region
    $region22: #{tpu_custom_call.1} parent=1 // pred_check
      _
    $region23: #{tpu_custom_call.1} parent=1 // pred_check_branch
      %65 = sbr.rel (0) target = $region25
    $region24: #{tpu_custom_call.1} parent=1 // pred_region
      %66 = dma.done [#allocation8], 8192
    $region25: #{tpu_custom_call.1} parent=1 // pred_fallthru
      _
    // Predicated region
    $region26: #{tpu_custom_call.1} parent=1 // pred_check
      _
    $region27: #{tpu_custom_call.1} parent=1 // pred_check_branch
      %68 = sbr.rel (0) target = $region29
    $region28: #{tpu_custom_call.1} parent=1 // pred_region
      %69 = dma.done [#allocation8], 128
    $region29: #{tpu_custom_call.1} parent=1 // pred_fallthru
      _
    // Predicated region
    $region30: #{tpu_custom_call.1} parent=1 // pred_check
      _
    $region31: #{tpu_custom_call.1} parent=1 // pred_check_branch
      %71 = sbr.rel (0) target = $region33
    $region32: #{tpu_custom_call.1} parent=1 // pred_region
      %72 = dma.done [#allocation11], 128
    $region33: #{tpu_custom_call.1} parent=1 // pred_fallthru
      _
    %p73 = scmp.eq.s32.totalorder 0, 0
    // Predicated region
    $region34: #{tpu_custom_call.1} parent=1 // pred_check
      %p74 = pneg %p73
    $region35: #{tpu_custom_call.1} parent=1 // pred_check_branch
      %76 = sbr.rel (%p74) target = $region37
    $region36: #{tpu_custom_call.1} parent=1 // pred_region
      %v77 = vld [vmem:[#allocation9] sm:$0xff]
      %78 = vst [vmem:[#allocation2] sm:$0xff] %v77
      %v79 = vld [vmem:[#allocation10] sm:$0xff]
      %80 = vst [vmem:[#allocation3] sm:$0xff] %v79
    $region37: #{tpu_custom_call.1} parent=1 // pred_fallthru
      _
    %v81 = vld [vmem:[#allocation7] sm:$0xff]
    %v82 = vld [vmem:[#allocation7 + $0x8] sm:$0xff]
    %v83 = vld [vmem:[#allocation7 + $0x10] sm:$0xff]
    %v84 = vld [vmem:[#allocation7 + $0x18] sm:$0xff]
    %v85 = vld [vmem:[#allocation7 + $0x20] sm:$0xff]
    %v86 = vld [vmem:[#allocation7 + $0x28] sm:$0xff]
    %v87 = vld [vmem:[#allocation7 + $0x30] sm:$0xff]
    %v88 = vld [vmem:[#allocation7 + $0x38] sm:$0xff]
    %v89 = vld [vmem:[#allocation7 + $0x40] sm:$0xff]
    %v90 = vld [vmem:[#allocation7 + $0x48] sm:$0xff]
    %v91 = vld [vmem:[#allocation7 + $0x50] sm:$0xff]
    %v92 = vld [vmem:[#allocation7 + $0x58] sm:$0xff]
    %v93 = vld [vmem:[#allocation7 + $0x60] sm:$0xff]
    %v94 = vld [vmem:[#allocation7 + $0x68] sm:$0xff]
    %v95 = vld [vmem:[#allocation7 + $0x70] sm:$0xff]
    %v96 = vld [vmem:[#allocation7 + $0x78] sm:$0xff]
    %v97 = vld [vmem:[#allocation7 + $0x80] sm:$0xff]
    %v98 = vld [vmem:[#allocation7 + $0x88] sm:$0xff]
    %v99 = vld [vmem:[#allocation7 + $0x90] sm:$0xff]
    %v100 = vld [vmem:[#allocation7 + $0x98] sm:$0xff]
    %v101 = vld [vmem:[#allocation7 + $0xa0] sm:$0xff]
    %v102 = vld [vmem:[#allocation7 + $0xa8] sm:$0xff]
    %v103 = vld [vmem:[#allocation7 + $0xb0] sm:$0xff]
    %v104 = vld [vmem:[#allocation7 + $0xb8] sm:$0xff]
    %v105 = vld [vmem:[#allocation7 + $0xc0] sm:$0xff]
    %v106 = vld [vmem:[#allocation7 + $0xc8] sm:$0xff]
    %v107 = vld [vmem:[#allocation7 + $0xd0] sm:$0xff]
    %v108 = vld [vmem:[#allocation7 + $0xd8] sm:$0xff]
    %v109 = vld [vmem:[#allocation7 + $0xe0] sm:$0xff]
    %v110 = vld [vmem:[#allocation7 + $0xe8] sm:$0xff]
    %v111 = vld [vmem:[#allocation7 + $0xf0] sm:$0xff]
    %v112 = vld [vmem:[#allocation7 + $0xf8] sm:$0xff]
    %v113 = vld [vmem:[#allocation7 + $0x100] sm:$0xff]
    %v114 = vld [vmem:[#allocation7 + $0x108] sm:$0xff]
    %v115 = vld [vmem:[#allocation7 + $0x110] sm:$0xff]
    %v116 = vld [vmem:[#allocation7 + $0x118] sm:$0xff]
    %v117 = vld [vmem:[#allocation7 + $0x120] sm:$0xff]
    %v118 = vld [vmem:[#allocation7 + $0x128] sm:$0xff]
    %v119 = vld [vmem:[#allocation7 + $0x130] sm:$0xff]
    %v120 = vld [vmem:[#allocation7 + $0x138] sm:$0xff]
    %v121 = vld [vmem:[#allocation7 + $0x140] sm:$0xff]
    %v122 = vld [vmem:[#allocation7 + $0x148] sm:$0xff]
    %v123 = vld [vmem:[#allocation7 + $0x150] sm:$0xff]
    %v124 = vld [vmem:[#allocation7 + $0x158] sm:$0xff]
    %v125 = vld [vmem:[#allocation7 + $0x160] sm:$0xff]
    %v126 = vld [vmem:[#allocation7 + $0x168] sm:$0xff]
    %v127 = vld [vmem:[#allocation7 + $0x170] sm:$0xff]
    %v128 = vld [vmem:[#allocation7 + $0x178] sm:$0xff]
    %v129 = vld [vmem:[#allocation7 + $0x180] sm:$0xff]
    %v130 = vld [vmem:[#allocation7 + $0x188] sm:$0xff]
    %v131 = vld [vmem:[#allocation7 + $0x190] sm:$0xff]
    %v132 = vld [vmem:[#allocation7 + $0x198] sm:$0xff]
    %v133 = vld [vmem:[#allocation7 + $0x1a0] sm:$0xff]
    %v134 = vld [vmem:[#allocation7 + $0x1a8] sm:$0xff]
    %v135 = vld [vmem:[#allocation7 + $0x1b0] sm:$0xff]
    %v136 = vld [vmem:[#allocation7 + $0x1b8] sm:$0xff]
    %v137 = vld [vmem:[#allocation7 + $0x1c0] sm:$0xff]
    %v138 = vld [vmem:[#allocation7 + $0x1c8] sm:$0xff]
    %v139 = vld [vmem:[#allocation7 + $0x1d0] sm:$0xff]
    %v140 = vld [vmem:[#allocation7 + $0x1d8] sm:$0xff]
    %v141 = vld [vmem:[#allocation7 + $0x1e0] sm:$0xff]
    %v142 = vld [vmem:[#allocation7 + $0x1e8] sm:$0xff]
    %v143 = vld [vmem:[#allocation7 + $0x1f0] sm:$0xff]
    %v144 = vld [vmem:[#allocation7 + $0x1f8] sm:$0xff]
    %s145 = smul.u32 0, 8
    %v146 = vld [vmem:[#allocation2] sm:$0xff]
    %v147 = vld [vmem:[#allocation3] sm:$0xff]
    %v148 = vld [vmem:[#allocation4] sm:$0xff]
    %v149 = vld [vmem:[#allocation4 + $0x8] sm:$0xff]
    %v150 = vld [vmem:[#allocation4 + $0x10] sm:$0xff]
    %v151 = vld [vmem:[#allocation4 + $0x18] sm:$0xff]
    %152 = vmatprep.subr.mxu0 %v142
    %153 = vmatpush1.msra.mxu0 %v141
    %154 = vmatprep.subr.mxu0 %v138
    %155 = vmatpush1.msra.mxu0 %v137
    %156 = vmatprep.subr.mxu0 %v134
    %157 = vmatpush1.msra.mxu0 %v133
    %158 = vmatprep.subr.mxu0 %v130
    %159 = vmatpush1.msra.mxu0 %v129
    %160 = vmatprep.subr.mxu0 %v126
    %161 = vmatpush1.msra.mxu0 %v125
    %162 = vmatprep.subr.mxu0 %v122
    %163 = vmatpush1.msra.mxu0 %v121
    %164 = vmatprep.subr.mxu0 %v118
    %165 = vmatpush1.msra.mxu0 %v117
    %166 = vmatprep.subr.mxu0 %v114
    %167 = vmatpush1.msra.mxu0 %v113
    %168 = vmatprep.subr.mxu0 %v110
    %169 = vmatpush1.msra.mxu0 %v109
    %170 = vmatprep.subr.mxu0 %v106
    %171 = vmatpush1.msra.mxu0 %v105
    %172 = vmatprep.subr.mxu0 %v102
    %173 = vmatpush1.msra.mxu0 %v101
    %174 = vmatprep.subr.mxu0 %v98
    %175 = vmatpush1.msra.mxu0 %v97
    %176 = vmatprep.subr.mxu0 %v94
    %177 = vmatpush1.msra.mxu0 %v93
    %178 = vmatprep.subr.mxu0 %v90
    %179 = vmatpush1.msra.mxu0 %v89
    %180 = vmatprep.subr.mxu0 %v86
    %181 = vmatpush1.msra.mxu0 %v85
    %182 = vmatprep.subr.mxu0 %v82
    %183 = vmatpush1.msra.mxu0 %v81
    %184 = vmatprep.subr.mxu0 0.0
    %185 = vmatpush2.msra.mxu0 0.0
    %186 = vmatprep.subr.mxu0 0.0
    %187 = vmatpush2.msra.mxu0 0.0
    %188 = vmatprep.subr.mxu0 0.0
    %189 = vmatpush2.msra.mxu0 0.0
    %190 = vmatprep.subr.mxu0 0.0
    %191 = vmatpush2.msra.mxu0 0.0
    %192 = vmatprep.subr.mxu0 0.0
    %193 = vmatpush2.msra.mxu0 0.0
    %194 = vmatprep.subr.mxu0 0.0
    %195 = vmatpush2.msra.mxu0 0.0
    %196 = vmatprep.subr.mxu0 0.0
    %197 = vmatpush2.msra.mxu0 0.0
    %198 = vmatprep.subr.mxu0 0.0
    %199 = vmatpush2.msra.mxu0 0.0
    %200 = vmatprep.subr.mxu0 0.0
    %201 = vmatpush2.msra.mxu0 0.0
    %202 = vmatprep.subr.mxu0 0.0
    %203 = vmatpush2.msra.mxu0 0.0
    %204 = vmatprep.subr.mxu0 0.0
    %205 = vmatpush2.msra.mxu0 0.0
    %206 = vmatprep.subr.mxu0 0.0
    %207 = vmatpush2.msra.mxu0 0.0
    %208 = vmatprep.subr.mxu0 0.0
    %209 = vmatpush2.msra.mxu0 0.0
    %210 = vmatprep.subr.mxu0 0.0
    %211 = vmatpush2.msra.mxu0 0.0
    %212 = vmatprep.subr.mxu0 0.0
    %213 = vmatpush2.msra.mxu0 0.0
    %214 = vmatprep.subr.mxu0 0.0
    %215 = vmatpush2.msra.mxu0 0.0
    %216 = vmatprep.mubr.f32.mxu0 0.0
    %217 = vmatmul.mubr.f32.gmra.mxu0 %v146
    %v218 = vpop.f32.mrf.mxu0
    %v219 = vadd.f32 0.0, %v218
    %v220 = vpop.f32.mrf.mxu0
    %v221 = vadd.f32 0.0, %v220
    %222 = vdwg.mxu0
    %223 = vmatprep.subr.mxu0 %v144
    %224 = vmatpush1.msra.mxu0 %v143
    %225 = vmatprep.subr.mxu0 %v140
    %226 = vmatpush1.msra.mxu0 %v139
    %227 = vmatprep.subr.mxu0 %v136
    %228 = vmatpush1.msra.mxu0 %v135
    %229 = vmatprep.subr.mxu0 %v132
    %230 = vmatpush1.msra.mxu0 %v131
    %231 = vmatprep.subr.mxu0 %v128
    %232 = vmatpush1.msra.mxu0 %v127
    %233 = vmatprep.subr.mxu0 %v124
    %234 = vmatpush1.msra.mxu0 %v123
    %235 = vmatprep.subr.mxu0 %v120
    %236 = vmatpush1.msra.mxu0 %v119
    %237 = vmatprep.subr.mxu0 %v116
    %238 = vmatpush1.msra.mxu0 %v115
    %239 = vmatprep.subr.mxu0 %v112
    %240 = vmatpush1.msra.mxu0 %v111
    %241 = vmatprep.subr.mxu0 %v108
    %242 = vmatpush1.msra.mxu0 %v107
    %243 = vmatprep.subr.mxu0 %v104
    %244 = vmatpush1.msra.mxu0 %v103
    %245 = vmatprep.subr.mxu0 %v100
    %246 = vmatpush1.msra.mxu0 %v99
    %247 = vmatprep.subr.mxu0 %v96
    %248 = vmatpush1.msra.mxu0 %v95
    %249 = vmatprep.subr.mxu0 %v92
    %250 = vmatpush1.msra.mxu0 %v91
    %251 = vmatprep.subr.mxu0 %v88
    %252 = vmatpush1.msra.mxu0 %v87
    %253 = vmatprep.subr.mxu0 %v84
    %254 = vmatpush1.msra.mxu0 %v83
    %255 = vmatprep.subr.mxu0 0.0
    %256 = vmatpush2.msra.mxu0 0.0
    %257 = vmatprep.subr.mxu0 0.0
    %258 = vmatpush2.msra.mxu0 0.0
    %259 = vmatprep.subr.mxu0 0.0
    %260 = vmatpush2.msra.mxu0 0.0
    %261 = vmatprep.subr.mxu0 0.0
    %262 = vmatpush2.msra.mxu0 0.0
    %263 = vmatprep.subr.mxu0 0.0
    %264 = vmatpush2.msra.mxu0 0.0
    %265 = vmatprep.subr.mxu0 0.0
    %266 = vmatpush2.msra.mxu0 0.0
    %267 = vmatprep.subr.mxu0 0.0
    %268 = vmatpush2.msra.mxu0 0.0
    %269 = vmatprep.subr.mxu0 0.0
    %270 = vmatpush2.msra.mxu0 0.0
    %271 = vmatprep.subr.mxu0 0.0
    %272 = vmatpush2.msra.mxu0 0.0
    %273 = vmatprep.subr.mxu0 0.0
    %274 = vmatpush2.msra.mxu0 0.0
    %275 = vmatprep.subr.mxu0 0.0
    %276 = vmatpush2.msra.mxu0 0.0
    %277 = vmatprep.subr.mxu0 0.0
    %278 = vmatpush2.msra.mxu0 0.0
    %279 = vmatprep.subr.mxu0 0.0
    %280 = vmatpush2.msra.mxu0 0.0
    %281 = vmatprep.subr.mxu0 0.0
    %282 = vmatpush2.msra.mxu0 0.0
    %283 = vmatprep.subr.mxu0 0.0
    %284 = vmatpush2.msra.mxu0 0.0
    %285 = vmatprep.subr.mxu0 0.0
    %286 = vmatpush2.msra.mxu0 0.0
    %287 = vmatprep.mubr.f32.mxu0 0.0
    %288 = vmatmul.mubr.f32.gmra.mxu0 %v146
    %v289 = vpop.f32.mrf.mxu0
    %v290 = vadd.f32 0.0, %v289
    %v291 = vpop.f32.mrf.mxu0
    %v292 = vadd.f32 0.0, %v291
    %293 = vdwg.mxu0
    %v294 = vadd.f32 %v148, %v219
    %v295 = vadd.f32 %v149, %v221
    %v296 = vadd.f32 %v150, %v290
    %v297 = vadd.f32 %v151, %v292
    %v298 = vmul.f32 %v294, 0.5
    %v299 = vmul.f32 %v295, 0.5
    %v300 = vmul.f32 %v296, 0.5
    %v301 = vtanh.pop %v298
    %v302 = vtanh.pop %v299
    %v303 = vtanh.pop %v300
    %v304 = vmul.f32 %v301, 0.5
    %v305 = vmul.f32 %v302, 0.5
    %v306 = vmul.f32 %v303, 0.5
    %v307 = vadd.f32 %v304, 0.5
    %v308 = vadd.f32 %v305, 0.5
    %v309 = vadd.f32 %v306, 0.5
    %v310 = vtanh.pop %v297
    %v311 = vmul.f32 %v308, %v147
    %v312 = vmul.f32 %v307, %v310
    %v313 = vadd.f32 %v311, %v312
    %v314 = vtanh.pop %v313
    %v315 = vmul.f32 %v309, %v314
    %316 = vst [vmem:[#allocation12] sm:$0xff] %v315
    %p317 = scmp.eq.s32.totalorder %s145, 7
    // Predicated region
    $region38: #{tpu_custom_call.1} parent=1 // pred_check
      %p318 = pneg %p317
    $region39: #{tpu_custom_call.1} parent=1 // pred_check_branch
      %320 = sbr.rel (%p318) target = $region41
    $region40: #{tpu_custom_call.1} parent=1 // pred_region
      %321 = vst [vmem:[#allocation13] sm:$0xff] %v315
      %322 = vst [vmem:[#allocation15] sm:$0xff] %v313
    $region41: #{tpu_custom_call.1} parent=1 // pred_fallthru
      _
    %s323 = scalar_lea.vmem [#allocation4], 32
    %v324 = vld [vmem:[%s323] sm:$0xff]
    %v325 = vld [vmem:[%s323 + $0x8] sm:$0xff]
    %v326 = vld [vmem:[%s323 + $0x10] sm:$0xff]
    %v327 = vld [vmem:[%s323 + $0x18] sm:$0xff]
    %328 = vmatprep.subr.mxu0 %v142
    %329 = vmatpush1.msra.mxu0 %v141
    %330 = vmatprep.subr.mxu0 %v138
    %331 = vmatpush1.msra.mxu0 %v137
    %332 = vmatprep.subr.mxu0 %v134
    %333 = vmatpush1.msra.mxu0 %v133
    %334 = vmatprep.subr.mxu0 %v130
    %335 = vmatpush1.msra.mxu0 %v129
    %336 = vmatprep.subr.mxu0 %v126
    %337 = vmatpush1.msra.mxu0 %v125
    %338 = vmatprep.subr.mxu0 %v122
    %339 = vmatpush1.msra.mxu0 %v121
    %340 = vmatprep.subr.mxu0 %v118
    %341 = vmatpush1.msra.mxu0 %v117
    %342 = vmatprep.subr.mxu0 %v114
    %343 = vmatpush1.msra.mxu0 %v113
    %344 = vmatprep.subr.mxu0 %v110
    %345 = vmatpush1.msra.mxu0 %v109
    %346 = vmatprep.subr.mxu0 %v106
    %347 = vmatpush1.msra.mxu0 %v105
    %348 = vmatprep.subr.mxu0 %v102
    %349 = vmatpush1.msra.mxu0 %v101
    %350 = vmatprep.subr.mxu0 %v98
    %351 = vmatpush1.msra.mxu0 %v97
    %352 = vmatprep.subr.mxu0 %v94
    %353 = vmatpush1.msra.mxu0 %v93
    %354 = vmatprep.subr.mxu0 %v90
    %355 = vmatpush1.msra.mxu0 %v89
    %356 = vmatprep.subr.mxu0 %v86
    %357 = vmatpush1.msra.mxu0 %v85
    %358 = vmatprep.subr.mxu0 %v82
    %359 = vmatpush1.msra.mxu0 %v81
    %360 = vmatprep.subr.mxu0 0.0
    %361 = vmatpush2.msra.mxu0 0.0
    %362 = vmatprep.subr.mxu0 0.0
    %363 = vmatpush2.msra.mxu0 0.0
    %364 = vmatprep.subr.mxu0 0.0
    %365 = vmatpush2.msra.mxu0 0.0
    %366 = vmatprep.subr.mxu0 0.0
    %367 = vmatpush2.msra.mxu0 0.0
    %368 = vmatprep.subr.mxu0 0.0
    %369 = vmatpush2.msra.mxu0 0.0
    %370 = vmatprep.subr.mxu0 0.0
    %371 = vmatpush2.msra.mxu0 0.0
    %372 = vmatprep.subr.mxu0 0.0
    %373 = vmatpush2.msra.mxu0 0.0
    %374 = vmatprep.subr.mxu0 0.0
    %375 = vmatpush2.msra.mxu0 0.0
    %376 = vmatprep.subr.mxu0 0.0
    %377 = vmatpush2.msra.mxu0 0.0
    %378 = vmatprep.subr.mxu0 0.0
    %379 = vmatpush2.msra.mxu0 0.0
    %380 = vmatprep.subr.mxu0 0.0
    %381 = vmatpush2.msra.mxu0 0.0
    %382 = vmatprep.subr.mxu0 0.0
    %383 = vmatpush2.msra.mxu0 0.0
    %384 = vmatprep.subr.mxu0 0.0
    %385 = vmatpush2.msra.mxu0 0.0
    %386 = vmatprep.subr.mxu0 0.0
    %387 = vmatpush2.msra.mxu0 0.0
    %388 = vmatprep.subr.mxu0 0.0
    %389 = vmatpush2.msra.mxu0 0.0
    %390 = vmatprep.subr.mxu0 0.0
    %391 = vmatpush2.msra.mxu0 0.0
    %392 = vmatprep.mubr.f32.mxu0 0.0
    %393 = vmatmul.mubr.f32.gmra.mxu0 %v315
    %v394 = vpop.f32.mrf.mxu0
    %v395 = vadd.f32 0.0, %v394
    %v396 = vpop.f32.mrf.mxu0
    %v397 = vadd.f32 0.0, %v396
    %398 = vdwg.mxu0
    %399 = vmatprep.subr.mxu0 %v144
    %400 = vmatpush1.msra.mxu0 %v143
    %401 = vmatprep.subr.mxu0 %v140
    %402 = vmatpush1.msra.mxu0 %v139
    %403 = vmatprep.subr.mxu0 %v136
    %404 = vmatpush1.msra.mxu0 %v135
    %405 = vmatprep.subr.mxu0 %v132
    %406 = vmatpush1.msra.mxu0 %v131
    %407 = vmatprep.subr.mxu0 %v128
    %408 = vmatpush1.msra.mxu0 %v127
    %409 = vmatprep.subr.mxu0 %v124
    %410 = vmatpush1.msra.mxu0 %v123
    %411 = vmatprep.subr.mxu0 %v120
    %412 = vmatpush1.msra.mxu0 %v119
    %413 = vmatprep.subr.mxu0 %v116
    %414 = vmatpush1.msra.mxu0 %v115
    %415 = vmatprep.subr.mxu0 %v112
    %416 = vmatpush1.msra.mxu0 %v111
    %417 = vmatprep.subr.mxu0 %v108
    %418 = vmatpush1.msra.mxu0 %v107
    %419 = vmatprep.subr.mxu0 %v104
    %420 = vmatpush1.msra.mxu0 %v103
    %421 = vmatprep.subr.mxu0 %v100
    %422 = vmatpush1.msra.mxu0 %v99
    %423 = vmatprep.subr.mxu0 %v96
    %424 = vmatpush1.msra.mxu0 %v95
    %425 = vmatprep.subr.mxu0 %v92
    %426 = vmatpush1.msra.mxu0 %v91
    %427 = vmatprep.subr.mxu0 %v88
    %428 = vmatpush1.msra.mxu0 %v87
    %429 = vmatprep.subr.mxu0 %v84
    %430 = vmatpush1.msra.mxu0 %v83
    %431 = vmatprep.subr.mxu0 0.0
    %432 = vmatpush2.msra.mxu0 0.0
    %433 = vmatprep.subr.mxu0 0.0
    %434 = vmatpush2.msra.mxu0 0.0
    %435 = vmatprep.subr.mxu0 0.0
    %436 = vmatpush2.msra.mxu0 0.0
    %437 = vmatprep.subr.mxu0 0.0
    %438 = vmatpush2.msra.mxu0 0.0
    %439 = vmatprep.subr.mxu0 0.0
    %440 = vmatpush2.msra.mxu0 0.0
    %441 = vmatprep.subr.mxu0 0.0
    %442 = vmatpush2.msra.mxu0 0.0
    %443 = vmatprep.subr.mxu0 0.0
    %444 = vmatpush2.msra.mxu0 0.0
    %445 = vmatprep.subr.mxu0 0.0
    %446 = vmatpush2.msra.mxu0 0.0
    %447 = vmatprep.subr.mxu0 0.0
    %448 = vmatpush2.msra.mxu0 0.0
    %449 = vmatprep.subr.mxu0 0.0
    %450 = vmatpush2.msra.mxu0 0.0
    %451 = vmatprep.subr.mxu0 0.0
    %452 = vmatpush2.msra.mxu0 0.0
    %453 = vmatprep.subr.mxu0 0.0
    %454 = vmatpush2.msra.mxu0 0.0
    %455 = vmatprep.subr.mxu0 0.0
    %456 = vmatpush2.msra.mxu0 0.0
    %457 = vmatprep.subr.mxu0 0.0
    %458 = vmatpush2.msra.mxu0 0.0
    %459 = vmatprep.subr.mxu0 0.0
    %460 = vmatpush2.msra.mxu0 0.0
    %461 = vmatprep.subr.mxu0 0.0
    %462 = vmatpush2.msra.mxu0 0.0
    %463 = vmatprep.mubr.f32.mxu0 0.0
    %464 = vmatmul.mubr.f32.gmra.mxu0 %v315
    %v465 = vpop.f32.mrf.mxu0
    %v466 = vadd.f32 0.0, %v465
    %v467 = vpop.f32.mrf.mxu0
    %v468 = vadd.f32 0.0, %v467
    %469 = vdwg.mxu0
    %v470 = vadd.f32 %v324, %v395
    %v471 = vadd.f32 %v325, %v397
    %v472 = vadd.f32 %v326, %v466
    %v473 = vadd.f32 %v327, %v468
    %v474 = vmul.f32 %v470, 0.5
    %v475 = vmul.f32 %v471, 0.5
    %v476 = vmul.f32 %v472, 0.5
    %v477 = vtanh.pop %v474
    %v478 = vtanh.pop %v475
    %v479 = vtanh.pop %v476
    %v480 = vmul.f32 %v477, 0.5
    %v481 = vmul.f32 %v478, 0.5
    %v482 = vmul.f32 %v479, 0.5
    %v483 = vadd.f32 %v480, 0.5
    %v484 = vadd.f32 %v481, 0.5
    %v485 = vadd.f32 %v482, 0.5
    %v486 = vtanh.pop %v473
    %v487 = vmul.f32 %v484, %v313
    %v488 = vmul.f32 %v483, %v486
    %v489 = vadd.f32 %v487, %v488
    %v490 = vtanh.pop %v489
    %v491 = vmul.f32 %v485, %v490
    %s492 = scalar_lea.vmem [#allocation12], 8
    %493 = vst [vmem:[%s492] sm:$0xff] %v491
    %s494 = sadd.s32 %s145, 1
    %p495 = scmp.eq.s32.totalorder %s494, 7
    // Predicated region
    $region42: #{tpu_custom_call.1} parent=1 // pred_check
      %p496 = pneg %p495
    $region43: #{tpu_custom_call.1} parent=1 // pred_check_branch
      %498 = sbr.rel (%p496) target = $region45
    $region44: #{tpu_custom_call.1} parent=1 // pred_region
      %499 = vst [vmem:[#allocation13] sm:$0xff] %v491
      %500 = vst [vmem:[#allocation15] sm:$0xff] %v489
    $region45: #{tpu_custom_call.1} parent=1 // pred_fallthru
      _
    %s501 = scalar_lea.vmem [#allocation4], 64
    %v502 = vld [vmem:[%s501] sm:$0xff]
    %v503 = vld [vmem:[%s501 + $0x8] sm:$0xff]
    %v504 = vld [vmem:[%s501 + $0x10] sm:$0xff]
    %v505 = vld [vmem:[%s501 + $0x18] sm:$0xff]
    %506 = vmatprep.subr.mxu0 %v142
    %507 = vmatpush1.msra.mxu0 %v141
    %508 = vmatprep.subr.mxu0 %v138
    %509 = vmatpush1.msra.mxu0 %v137
    %510 = vmatprep.subr.mxu0 %v134
    %511 = vmatpush1.msra.mxu0 %v133
    %512 = vmatprep.subr.mxu0 %v130
    %513 = vmatpush1.msra.mxu0 %v129
    %514 = vmatprep.subr.mxu0 %v126
    %515 = vmatpush1.msra.mxu0 %v125
    %516 = vmatprep.subr.mxu0 %v122
    %517 = vmatpush1.msra.mxu0 %v121
    %518 = vmatprep.subr.mxu0 %v118
    %519 = vmatpush1.msra.mxu0 %v117
    %520 = vmatprep.subr.mxu0 %v114
    %521 = vmatpush1.msra.mxu0 %v113
    %522 = vmatprep.subr.mxu0 %v110
    %523 = vmatpush1.msra.mxu0 %v109
    %524 = vmatprep.subr.mxu0 %v106
    %525 = vmatpush1.msra.mxu0 %v105
    %526 = vmatprep.subr.mxu0 %v102
    %527 = vmatpush1.msra.mxu0 %v101
    %528 = vmatprep.subr.mxu0 %v98
    %529 = vmatpush1.msra.mxu0 %v97
    %530 = vmatprep.subr.mxu0 %v94
    %531 = vmatpush1.msra.mxu0 %v93
    %532 = vmatprep.subr.mxu0 %v90
    %533 = vmatpush1.msra.mxu0 %v89
    %534 = vmatprep.subr.mxu0 %v86
    %535 = vmatpush1.msra.mxu0 %v85
    %536 = vmatprep.subr.mxu0 %v82
    %537 = vmatpush1.msra.mxu0 %v81
    %538 = vmatprep.subr.mxu0 0.0
    %539 = vmatpush2.msra.mxu0 0.0
    %540 = vmatprep.subr.mxu0 0.0
    %541 = vmatpush2.msra.mxu0 0.0
    %542 = vmatprep.subr.mxu0 0.0
    %543 = vmatpush2.msra.mxu0 0.0
    %544 = vmatprep.subr.mxu0 0.0
    %545 = vmatpush2.msra.mxu0 0.0
    %546 = vmatprep.subr.mxu0 0.0
    %547 = vmatpush2.msra.mxu0 0.0
    %548 = vmatprep.subr.mxu0 0.0
    %549 = vmatpush2.msra.mxu0 0.0
    %550 = vmatprep.subr.mxu0 0.0
    %551 = vmatpush2.msra.mxu0 0.0
    %552 = vmatprep.subr.mxu0 0.0
    %553 = vmatpush2.msra.mxu0 0.0
    %554 = vmatprep.subr.mxu0 0.0
    %555 = vmatpush2.msra.mxu0 0.0
    %556 = vmatprep.subr.mxu0 0.0
    %557 = vmatpush2.msra.mxu0 0.0
    %558 = vmatprep.subr.mxu0 0.0
    %559 = vmatpush2.msra.mxu0 0.0
    %560 = vmatprep.subr.mxu0 0.0
    %561 = vmatpush2.msra.mxu0 0.0
    %562 = vmatprep.subr.mxu0 0.0
    %563 = vmatpush2.msra.mxu0 0.0
    %564 = vmatprep.subr.mxu0 0.0
    %565 = vmatpush2.msra.mxu0 0.0
    %566 = vmatprep.subr.mxu0 0.0
    %567 = vmatpush2.msra.mxu0 0.0
    %568 = vmatprep.subr.mxu0 0.0
    %569 = vmatpush2.msra.mxu0 0.0
    %570 = vmatprep.mubr.f32.mxu0 0.0
    %571 = vmatmul.mubr.f32.gmra.mxu0 %v491
    %v572 = vpop.f32.mrf.mxu0
    %v573 = vadd.f32 0.0, %v572
    %v574 = vpop.f32.mrf.mxu0
    %v575 = vadd.f32 0.0, %v574
    %576 = vdwg.mxu0
    %577 = vmatprep.subr.mxu0 %v144
    %578 = vmatpush1.msra.mxu0 %v143
    %579 = vmatprep.subr.mxu0 %v140
    %580 = vmatpush1.msra.mxu0 %v139
    %581 = vmatprep.subr.mxu0 %v136
    %582 = vmatpush1.msra.mxu0 %v135
    %583 = vmatprep.subr.mxu0 %v132
    %584 = vmatpush1.msra.mxu0 %v131
    %585 = vmatprep.subr.mxu0 %v128
    %586 = vmatpush1.msra.mxu0 %v127
    %587 = vmatprep.subr.mxu0 %v124
    %588 = vmatpush1.msra.mxu0 %v123
    %589 = vmatprep.subr.mxu0 %v120
    %590 = vmatpush1.msra.mxu0 %v119
    %591 = vmatprep.subr.mxu0 %v116
    %592 = vmatpush1.msra.mxu0 %v115
    %593 = vmatprep.subr.mxu0 %v112
    %594 = vmatpush1.msra.mxu0 %v111
    %595 = vmatprep.subr.mxu0 %v108
    %596 = vmatpush1.msra.mxu0 %v107
    %597 = vmatprep.subr.mxu0 %v104
    %598 = vmatpush1.msra.mxu0 %v103
    %599 = vmatprep.subr.mxu0 %v100
    %600 = vmatpush1.msra.mxu0 %v99
    %601 = vmatprep.subr.mxu0 %v96
    %602 = vmatpush1.msra.mxu0 %v95
    %603 = vmatprep.subr.mxu0 %v92
    %604 = vmatpush1.msra.mxu0 %v91
    %605 = vmatprep.subr.mxu0 %v88
    %606 = vmatpush1.msra.mxu0 %v87
    %607 = vmatprep.subr.mxu0 %v84
    %608 = vmatpush1.msra.mxu0 %v83
    %609 = vmatprep.subr.mxu0 0.0
    %610 = vmatpush2.msra.mxu0 0.0
    %611 = vmatprep.subr.mxu0 0.0
    %612 = vmatpush2.msra.mxu0 0.0
    %613 = vmatprep.subr.mxu0 0.0
    %614 = vmatpush2.msra.mxu0 0.0
    %615 = vmatprep.subr.mxu0 0.0
    %616 = vmatpush2.msra.mxu0 0.0
    %617 = vmatprep.subr.mxu0 0.0
    %618 = vmatpush2.msra.mxu0 0.0
    %619 = vmatprep.subr.mxu0 0.0
    %620 = vmatpush2.msra.mxu0 0.0
    %621 = vmatprep.subr.mxu0 0.0
    %622 = vmatpush2.msra.mxu0 0.0
    %623 = vmatprep.subr.mxu0 0.0
    %624 = vmatpush2.msra.mxu0 0.0
    %625 = vmatprep.subr.mxu0 0.0
    %626 = vmatpush2.msra.mxu0 0.0
    %627 = vmatprep.subr.mxu0 0.0
    %628 = vmatpush2.msra.mxu0 0.0
    %629 = vmatprep.subr.mxu0 0.0
    %630 = vmatpush2.msra.mxu0 0.0
    %631 = vmatprep.subr.mxu0 0.0
    %632 = vmatpush2.msra.mxu0 0.0
    %633 = vmatprep.subr.mxu0 0.0
    %634 = vmatpush2.msra.mxu0 0.0
    %635 = vmatprep.subr.mxu0 0.0
    %636 = vmatpush2.msra.mxu0 0.0
    %637 = vmatprep.subr.mxu0 0.0
    %638 = vmatpush2.msra.mxu0 0.0
    %639 = vmatprep.subr.mxu0 0.0
    %640 = vmatpush2.msra.mxu0 0.0
    %641 = vmatprep.mubr.f32.mxu0 0.0
    %642 = vmatmul.mubr.f32.gmra.mxu0 %v491
    %v643 = vpop.f32.mrf.mxu0
    %v644 = vadd.f32 0.0, %v643
    %v645 = vpop.f32.mrf.mxu0
    %v646 = vadd.f32 0.0, %v645
    %647 = vdwg.mxu0
    %v648 = vadd.f32 %v502, %v573
    %v649 = vadd.f32 %v503, %v575
    %v650 = vadd.f32 %v504, %v644
    %v651 = vadd.f32 %v505, %v646
    %v652 = vmul.f32 %v648, 0.5
    %v653 = vmul.f32 %v649, 0.5
    %v654 = vmul.f32 %v650, 0.5
    %v655 = vtanh.pop %v652
    %v656 = vtanh.pop %v653
    %v657 = vtanh.pop %v654
    %v658 = vmul.f32 %v655, 0.5
    %v659 = vmul.f32 %v656, 0.5
    %v660 = vmul.f32 %v657, 0.5
    %v661 = vadd.f32 %v658, 0.5
    %v662 = vadd.f32 %v659, 0.5
    %v663 = vadd.f32 %v660, 0.5
    %v664 = vtanh.pop %v651
    %v665 = vmul.f32 %v662, %v489
    %v666 = vmul.f32 %v661, %v664
    %v667 = vadd.f32 %v665, %v666
    %v668 = vtanh.pop %v667
    %v669 = vmul.f32 %v663, %v668
    %s670 = scalar_lea.vmem [#allocation12], 16
    %671 = vst [vmem:[%s670] sm:$0xff] %v669
    %s672 = sadd.s32 %s145, 2
    %p673 = scmp.eq.s32.totalorder %s672, 7
    // Predicated region
    $region46: #{tpu_custom_call.1} parent=1 // pred_check
      %p674 = pneg %p673
    $region47: #{tpu_custom_call.1} parent=1 // pred_check_branch
      %676 = sbr.rel (%p674) target = $region49
    $region48: #{tpu_custom_call.1} parent=1 // pred_region
      %677 = vst [vmem:[#allocation13] sm:$0xff] %v669
      %678 = vst [vmem:[#allocation15] sm:$0xff] %v667
    $region49: #{tpu_custom_call.1} parent=1 // pred_fallthru
      _
    %s679 = scalar_lea.vmem [#allocation4], 96
    %v680 = vld [vmem:[%s679] sm:$0xff]
    %v681 = vld [vmem:[%s679 + $0x8] sm:$0xff]
    %v682 = vld [vmem:[%s679 + $0x10] sm:$0xff]
    %v683 = vld [vmem:[%s679 + $0x18] sm:$0xff]
    %684 = vmatprep.subr.mxu0 %v142
    %685 = vmatpush1.msra.mxu0 %v141
    %686 = vmatprep.subr.mxu0 %v138
    %687 = vmatpush1.msra.mxu0 %v137
    %688 = vmatprep.subr.mxu0 %v134
    %689 = vmatpush1.msra.mxu0 %v133
    %690 = vmatprep.subr.mxu0 %v130
    %691 = vmatpush1.msra.mxu0 %v129
    %692 = vmatprep.subr.mxu0 %v126
    %693 = vmatpush1.msra.mxu0 %v125
    %694 = vmatprep.subr.mxu0 %v122
    %695 = vmatpush1.msra.mxu0 %v121
    %696 = vmatprep.subr.mxu0 %v118
    %697 = vmatpush1.msra.mxu0 %v117
    %698 = vmatprep.subr.mxu0 %v114
    %699 = vmatpush1.msra.mxu0 %v113
    %700 = vmatprep.subr.mxu0 %v110
    %701 = vmatpush1.msra.mxu0 %v109
    %702 = vmatprep.subr.mxu0 %v106
    %703 = vmatpush1.msra.mxu0 %v105
    %704 = vmatprep.subr.mxu0 %v102
    %705 = vmatpush1.msra.mxu0 %v101
    %706 = vmatprep.subr.mxu0 %v98
    %707 = vmatpush1.msra.mxu0 %v97
    %708 = vmatprep.subr.mxu0 %v94
    %709 = vmatpush1.msra.mxu0 %v93
    %710 = vmatprep.subr.mxu0 %v90
    %711 = vmatpush1.msra.mxu0 %v89
    %712 = vmatprep.subr.mxu0 %v86
    %713 = vmatpush1.msra.mxu0 %v85
    %714 = vmatprep.subr.mxu0 %v82
    %715 = vmatpush1.msra.mxu0 %v81
    %716 = vmatprep.subr.mxu0 0.0
    %717 = vmatpush2.msra.mxu0 0.0
    %718 = vmatprep.subr.mxu0 0.0
    %719 = vmatpush2.msra.mxu0 0.0
    %720 = vmatprep.subr.mxu0 0.0
    %721 = vmatpush2.msra.mxu0 0.0
    %722 = vmatprep.subr.mxu0 0.0
    %723 = vmatpush2.msra.mxu0 0.0
    %724 = vmatprep.subr.mxu0 0.0
    %725 = vmatpush2.msra.mxu0 0.0
    %726 = vmatprep.subr.mxu0 0.0
    %727 = vmatpush2.msra.mxu0 0.0
    %728 = vmatprep.subr.mxu0 0.0
    %729 = vmatpush2.msra.mxu0 0.0
    %730 = vmatprep.subr.mxu0 0.0
    %731 = vmatpush2.msra.mxu0 0.0
    %732 = vmatprep.subr.mxu0 0.0
    %733 = vmatpush2.msra.mxu0 0.0
    %734 = vmatprep.subr.mxu0 0.0
    %735 = vmatpush2.msra.mxu0 0.0
    %736 = vmatprep.subr.mxu0 0.0
    %737 = vmatpush2.msra.mxu0 0.0
    %738 = vmatprep.subr.mxu0 0.0
    %739 = vmatpush2.msra.mxu0 0.0
    %740 = vmatprep.subr.mxu0 0.0
    %741 = vmatpush2.msra.mxu0 0.0
    %742 = vmatprep.subr.mxu0 0.0
    %743 = vmatpush2.msra.mxu0 0.0
    %744 = vmatprep.subr.mxu0 0.0
    %745 = vmatpush2.msra.mxu0 0.0
    %746 = vmatprep.subr.mxu0 0.0
    %747 = vmatpush2.msra.mxu0 0.0
    %748 = vmatprep.mubr.f32.mxu0 0.0
    %749 = vmatmul.mubr.f32.gmra.mxu0 %v669
    %v750 = vpop.f32.mrf.mxu0
    %v751 = vadd.f32 0.0, %v750
    %v752 = vpop.f32.mrf.mxu0
    %v753 = vadd.f32 0.0, %v752
    %754 = vdwg.mxu0
    %755 = vmatprep.subr.mxu0 %v144
    %756 = vmatpush1.msra.mxu0 %v143
    %757 = vmatprep.subr.mxu0 %v140
    %758 = vmatpush1.msra.mxu0 %v139
    %759 = vmatprep.subr.mxu0 %v136
    %760 = vmatpush1.msra.mxu0 %v135
    %761 = vmatprep.subr.mxu0 %v132
    %762 = vmatpush1.msra.mxu0 %v131
    %763 = vmatprep.subr.mxu0 %v128
    %764 = vmatpush1.msra.mxu0 %v127
    %765 = vmatprep.subr.mxu0 %v124
    %766 = vmatpush1.msra.mxu0 %v123
    %767 = vmatprep.subr.mxu0 %v120
    %768 = vmatpush1.msra.mxu0 %v119
    %769 = vmatprep.subr.mxu0 %v116
    %770 = vmatpush1.msra.mxu0 %v115
    %771 = vmatprep.subr.mxu0 %v112
    %772 = vmatpush1.msra.mxu0 %v111
    %773 = vmatprep.subr.mxu0 %v108
    %774 = vmatpush1.msra.mxu0 %v107
    %775 = vmatprep.subr.mxu0 %v104
    %776 = vmatpush1.msra.mxu0 %v103
    %777 = vmatprep.subr.mxu0 %v100
    %778 = vmatpush1.msra.mxu0 %v99
    %779 = vmatprep.subr.mxu0 %v96
    %780 = vmatpush1.msra.mxu0 %v95
    %781 = vmatprep.subr.mxu0 %v92
    %782 = vmatpush1.msra.mxu0 %v91
    %783 = vmatprep.subr.mxu0 %v88
    %784 = vmatpush1.msra.mxu0 %v87
    %785 = vmatprep.subr.mxu0 %v84
    %786 = vmatpush1.msra.mxu0 %v83
    %787 = vmatprep.subr.mxu0 0.0
    %788 = vmatpush2.msra.mxu0 0.0
    %789 = vmatprep.subr.mxu0 0.0
    %790 = vmatpush2.msra.mxu0 0.0
    %791 = vmatprep.subr.mxu0 0.0
    %792 = vmatpush2.msra.mxu0 0.0
    %793 = vmatprep.subr.mxu0 0.0
    %794 = vmatpush2.msra.mxu0 0.0
    %795 = vmatprep.subr.mxu0 0.0
    %796 = vmatpush2.msra.mxu0 0.0
    %797 = vmatprep.subr.mxu0 0.0
    %798 = vmatpush2.msra.mxu0 0.0
    %799 = vmatprep.subr.mxu0 0.0
    %800 = vmatpush2.msra.mxu0 0.0
    %801 = vmatprep.subr.mxu0 0.0
    %802 = vmatpush2.msra.mxu0 0.0
    %803 = vmatprep.subr.mxu0 0.0
    %804 = vmatpush2.msra.mxu0 0.0
    %805 = vmatprep.subr.mxu0 0.0
    %806 = vmatpush2.msra.mxu0 0.0
    %807 = vmatprep.subr.mxu0 0.0
    %808 = vmatpush2.msra.mxu0 0.0
    %809 = vmatprep.subr.mxu0 0.0
    %810 = vmatpush2.msra.mxu0 0.0
    %811 = vmatprep.subr.mxu0 0.0
    %812 = vmatpush2.msra.mxu0 0.0
    %813 = vmatprep.subr.mxu0 0.0
    %814 = vmatpush2.msra.mxu0 0.0
    %815 = vmatprep.subr.mxu0 0.0
    %816 = vmatpush2.msra.mxu0 0.0
    %817 = vmatprep.subr.mxu0 0.0
    %818 = vmatpush2.msra.mxu0 0.0
    %819 = vmatprep.mubr.f32.mxu0 0.0
    %820 = vmatmul.mubr.f32.gmra.mxu0 %v669
    %v821 = vpop.f32.mrf.mxu0
    %v822 = vadd.f32 0.0, %v821
    %v823 = vpop.f32.mrf.mxu0
    %v824 = vadd.f32 0.0, %v823
    %825 = vdwg.mxu0
    %v826 = vadd.f32 %v680, %v751
    %v827 = vadd.f32 %v681, %v753
    %v828 = vadd.f32 %v682, %v822
    %v829 = vadd.f32 %v683, %v824
    %v830 = vmul.f32 %v826, 0.5
    %v831 = vmul.f32 %v827, 0.5
    %v832 = vmul.f32 %v828, 0.5
    %v833 = vtanh.pop %v830
    %v834 = vtanh.pop %v831
    %v835 = vtanh.pop %v832
    %v836 = vmul.f32 %v833, 0.5
    %v837 = vmul.f32 %v834, 0.5
    %v838 = vmul.f32 %v835, 0.5
    %v839 = vadd.f32 %v836, 0.5
    %v840 = vadd.f32 %v837, 0.5
    %v841 = vadd.f32 %v838, 0.5
    %v842 = vtanh.pop %v829
    %v843 = vmul.f32 %v840, %v667
    %v844 = vmul.f32 %v839, %v842
    %v845 = vadd.f32 %v843, %v844
    %v846 = vtanh.pop %v845
    %v847 = vmul.f32 %v841, %v846
    %s848 = scalar_lea.vmem [#allocation12], 24
    %849 = vst [vmem:[%s848] sm:$0xff] %v847
    %s850 = sadd.s32 %s145, 3
    %p851 = scmp.eq.s32.totalorder %s850, 7
    // Predicated region
    $region50: #{tpu_custom_call.1} parent=1 // pred_check
      %p852 = pneg %p851
    $region51: #{tpu_custom_call.1} parent=1 // pred_check_branch
      %854 = sbr.rel (%p852) target = $region53
    $region52: #{tpu_custom_call.1} parent=1 // pred_region
      %855 = vst [vmem:[#allocation13] sm:$0xff] %v847
      %856 = vst [vmem:[#allocation15] sm:$0xff] %v845
    $region53: #{tpu_custom_call.1} parent=1 // pred_fallthru
      _
    %s857 = scalar_lea.vmem [#allocation4], 128
    %v858 = vld [vmem:[%s857] sm:$0xff]
    %v859 = vld [vmem:[%s857 + $0x8] sm:$0xff]
    %v860 = vld [vmem:[%s857 + $0x10] sm:$0xff]
    %v861 = vld [vmem:[%s857 + $0x18] sm:$0xff]
    %862 = vmatprep.subr.mxu0 %v142
    %863 = vmatpush1.msra.mxu0 %v141
    %864 = vmatprep.subr.mxu0 %v138
    %865 = vmatpush1.msra.mxu0 %v137
    %866 = vmatprep.subr.mxu0 %v134
    %867 = vmatpush1.msra.mxu0 %v133
    %868 = vmatprep.subr.mxu0 %v130
    %869 = vmatpush1.msra.mxu0 %v129
    %870 = vmatprep.subr.mxu0 %v126
    %871 = vmatpush1.msra.mxu0 %v125
    %872 = vmatprep.subr.mxu0 %v122
    %873 = vmatpush1.msra.mxu0 %v121
    %874 = vmatprep.subr.mxu0 %v118
    %875 = vmatpush1.msra.mxu0 %v117
    %876 = vmatprep.subr.mxu0 %v114
    %877 = vmatpush1.msra.mxu0 %v113
    %878 = vmatprep.subr.mxu0 %v110
    %879 = vmatpush1.msra.mxu0 %v109
    %880 = vmatprep.subr.mxu0 %v106
    %881 = vmatpush1.msra.mxu0 %v105
    %882 = vmatprep.subr.mxu0 %v102
    %883 = vmatpush1.msra.mxu0 %v101
    %884 = vmatprep.subr.mxu0 %v98
    %885 = vmatpush1.msra.mxu0 %v97
    %886 = vmatprep.subr.mxu0 %v94
    %887 = vmatpush1.msra.mxu0 %v93
    %888 = vmatprep.subr.mxu0 %v90
    %889 = vmatpush1.msra.mxu0 %v89
    %890 = vmatprep.subr.mxu0 %v86
    %891 = vmatpush1.msra.mxu0 %v85
    %892 = vmatprep.subr.mxu0 %v82
    %893 = vmatpush1.msra.mxu0 %v81
    %894 = vmatprep.subr.mxu0 0.0
    %895 = vmatpush2.msra.mxu0 0.0
    %896 = vmatprep.subr.mxu0 0.0
    %897 = vmatpush2.msra.mxu0 0.0
    %898 = vmatprep.subr.mxu0 0.0
    %899 = vmatpush2.msra.mxu0 0.0
    %900 = vmatprep.subr.mxu0 0.0
    %901 = vmatpush2.msra.mxu0 0.0
    %902 = vmatprep.subr.mxu0 0.0
    %903 = vmatpush2.msra.mxu0 0.0
    %904 = vmatprep.subr.mxu0 0.0
    %905 = vmatpush2.msra.mxu0 0.0
    %906 = vmatprep.subr.mxu0 0.0
    %907 = vmatpush2.msra.mxu0 0.0
    %908 = vmatprep.subr.mxu0 0.0
    %909 = vmatpush2.msra.mxu0 0.0
    %910 = vmatprep.subr.mxu0 0.0
    %911 = vmatpush2.msra.mxu0 0.0
    %912 = vmatprep.subr.mxu0 0.0
    %913 = vmatpush2.msra.mxu0 0.0
    %914 = vmatprep.subr.mxu0 0.0
    %915 = vmatpush2.msra.mxu0 0.0
    %916 = vmatprep.subr.mxu0 0.0
    %917 = vmatpush2.msra.mxu0 0.0
    %918 = vmatprep.subr.mxu0 0.0
    %919 = vmatpush2.msra.mxu0 0.0
    %920 = vmatprep.subr.mxu0 0.0
    %921 = vmatpush2.msra.mxu0 0.0
    %922 = vmatprep.subr.mxu0 0.0
    %923 = vmatpush2.msra.mxu0 0.0
    %924 = vmatprep.subr.mxu0 0.0
    %925 = vmatpush2.msra.mxu0 0.0
    %926 = vmatprep.mubr.f32.mxu0 0.0
    %927 = vmatmul.mubr.f32.gmra.mxu0 %v847
    %v928 = vpop.f32.mrf.mxu0
    %v929 = vadd.f32 0.0, %v928
    %v930 = vpop.f32.mrf.mxu0
    %v931 = vadd.f32 0.0, %v930
    %932 = vdwg.mxu0
    %933 = vmatprep.subr.mxu0 %v144
    %934 = vmatpush1.msra.mxu0 %v143
    %935 = vmatprep.subr.mxu0 %v140
    %936 = vmatpush1.msra.mxu0 %v139
    %937 = vmatprep.subr.mxu0 %v136
    %938 = vmatpush1.msra.mxu0 %v135
    %939 = vmatprep.subr.mxu0 %v132
    %940 = vmatpush1.msra.mxu0 %v131
    %941 = vmatprep.subr.mxu0 %v128
    %942 = vmatpush1.msra.mxu0 %v127
    %943 = vmatprep.subr.mxu0 %v124
    %944 = vmatpush1.msra.mxu0 %v123
    %945 = vmatprep.subr.mxu0 %v120
    %946 = vmatpush1.msra.mxu0 %v119
    %947 = vmatprep.subr.mxu0 %v116
    %948 = vmatpush1.msra.mxu0 %v115
    %949 = vmatprep.subr.mxu0 %v112
    %950 = vmatpush1.msra.mxu0 %v111
    %951 = vmatprep.subr.mxu0 %v108
    %952 = vmatpush1.msra.mxu0 %v107
    %953 = vmatprep.subr.mxu0 %v104
    %954 = vmatpush1.msra.mxu0 %v103
    %955 = vmatprep.subr.mxu0 %v100
    %956 = vmatpush1.msra.mxu0 %v99
    %957 = vmatprep.subr.mxu0 %v96
    %958 = vmatpush1.msra.mxu0 %v95
    %959 = vmatprep.subr.mxu0 %v92
    %960 = vmatpush1.msra.mxu0 %v91
    %961 = vmatprep.subr.mxu0 %v88
    %962 = vmatpush1.msra.mxu0 %v87
    %963 = vmatprep.subr.mxu0 %v84
    %964 = vmatpush1.msra.mxu0 %v83
    %965 = vmatprep.subr.mxu0 0.0
    %966 = vmatpush2.msra.mxu0 0.0
    %967 = vmatprep.subr.mxu0 0.0
    %968 = vmatpush2.msra.mxu0 0.0
    %969 = vmatprep.subr.mxu0 0.0
    %970 = vmatpush2.msra.mxu0 0.0
    %971 = vmatprep.subr.mxu0 0.0
    %972 = vmatpush2.msra.mxu0 0.0
    %973 = vmatprep.subr.mxu0 0.0
    %974 = vmatpush2.msra.mxu0 0.0
    %975 = vmatprep.subr.mxu0 0.0
    %976 = vmatpush2.msra.mxu0 0.0
    %977 = vmatprep.subr.mxu0 0.0
    %978 = vmatpush2.msra.mxu0 0.0
    %979 = vmatprep.subr.mxu0 0.0
    %980 = vmatpush2.msra.mxu0 0.0
    %981 = vmatprep.subr.mxu0 0.0
    %982 = vmatpush2.msra.mxu0 0.0
    %983 = vmatprep.subr.mxu0 0.0
    %984 = vmatpush2.msra.mxu0 0.0
    %985 = vmatprep.subr.mxu0 0.0
    %986 = vmatpush2.msra.mxu0 0.0
    %987 = vmatprep.subr.mxu0 0.0
    %988 = vmatpush2.msra.mxu0 0.0
    %989 = vmatprep.subr.mxu0 0.0
    %990 = vmatpush2.msra.mxu0 0.0
    %991 = vmatprep.subr.mxu0 0.0
    %992 = vmatpush2.msra.mxu0 0.0
    %993 = vmatprep.subr.mxu0 0.0
    %994 = vmatpush2.msra.mxu0 0.0
    %995 = vmatprep.subr.mxu0 0.0
    %996 = vmatpush2.msra.mxu0 0.0
    %997 = vmatprep.mubr.f32.mxu0 0.0
    %998 = vmatmul.mubr.f32.gmra.mxu0 %v847
    %v999 = vpop.f32.mrf.mxu0
    %v1000 = vadd.f32 0.0, %v999
    %v1001 = vpop.f32.mrf.mxu0
    %v1002 = vadd.f32 0.0, %v1001
    %1003 = vdwg.mxu0
    %v1004 = vadd.f32 %v858, %v929
    %v1005 = vadd.f32 %v859, %v931
    %v1006 = vadd.f32 %v860, %v1000
    %v1007 = vadd.f32 %v861, %v1002
    %v1008 = vmul.f32 %v1004, 0.5
    %v1009 = vmul.f32 %v1005, 0.5
    %v1010 = vmul.f32 %v1006, 0.5
    %v1011 = vtanh.pop %v1008
    %v1012 = vtanh.pop %v1009
    %v1013 = vtanh.pop %v1010
    %v1014 = vmul.f32 %v1011, 0.5
    %v1015 = vmul.f32 %v1012, 0.5
    %v1016 = vmul.f32 %v1013, 0.5
    %v1017 = vadd.f32 %v1014, 0.5
    %v1018 = vadd.f32 %v1015, 0.5
    %v1019 = vadd.f32 %v1016, 0.5
    %v1020 = vtanh.pop %v1007
    %v1021 = vmul.f32 %v1018, %v845
    %v1022 = vmul.f32 %v1017, %v1020
    %v1023 = vadd.f32 %v1021, %v1022
    %v1024 = vtanh.pop %v1023
    %v1025 = vmul.f32 %v1019, %v1024
    %s1026 = scalar_lea.vmem [#allocation12], 32
    %1027 = vst [vmem:[%s1026] sm:$0xff] %v1025
    %s1028 = sadd.s32 %s145, 4
    %p1029 = scmp.eq.s32.totalorder %s1028, 7
    // Predicated region
    $region54: #{tpu_custom_call.1} parent=1 // pred_check
      %p1030 = pneg %p1029
    $region55: #{tpu_custom_call.1} parent=1 // pred_check_branch
      %1032 = sbr.rel (%p1030) target = $region57
    $region56: #{tpu_custom_call.1} parent=1 // pred_region
      %1033 = vst [vmem:[#allocation13] sm:$0xff] %v1025
      %1034 = vst [vmem:[#allocation15] sm:$0xff] %v1023
    $region57: #{tpu_custom_call.1} parent=1 // pred_fallthru
      _
    %s1035 = scalar_lea.vmem [#allocation4], 160
    %v1036 = vld [vmem:[%s1035] sm:$0xff]
    %v1037 = vld [vmem:[%s1035 + $0x8] sm:$0xff]
    %v1038 = vld [vmem:[%s1035 + $0x10] sm:$0xff]
    %v1039 = vld [vmem:[%s1035 + $0x18] sm:$0xff]
    %1040 = vmatprep.subr.mxu0 %v142
    %1041 = vmatpush1.msra.mxu0 %v141
    %1042 = vmatprep.subr.mxu0 %v138
    %1043 = vmatpush1.msra.mxu0 %v137
    %1044 = vmatprep.subr.mxu0 %v134
    %1045 = vmatpush1.msra.mxu0 %v133
    %1046 = vmatprep.subr.mxu0 %v130
    %1047 = vmatpush1.msra.mxu0 %v129
    %1048 = vmatprep.subr.mxu0 %v126
    %1049 = vmatpush1.msra.mxu0 %v125
    %1050 = vmatprep.subr.mxu0 %v122
    %1051 = vmatpush1.msra.mxu0 %v121
    %1052 = vmatprep.subr.mxu0 %v118
    %1053 = vmatpush1.msra.mxu0 %v117
    %1054 = vmatprep.subr.mxu0 %v114
    %1055 = vmatpush1.msra.mxu0 %v113
    %1056 = vmatprep.subr.mxu0 %v110
    %1057 = vmatpush1.msra.mxu0 %v109
    %1058 = vmatprep.subr.mxu0 %v106
    %1059 = vmatpush1.msra.mxu0 %v105
    %1060 = vmatprep.subr.mxu0 %v102
    %1061 = vmatpush1.msra.mxu0 %v101
    %1062 = vmatprep.subr.mxu0 %v98
    %1063 = vmatpush1.msra.mxu0 %v97
    %1064 = vmatprep.subr.mxu0 %v94
    %1065 = vmatpush1.msra.mxu0 %v93
    %1066 = vmatprep.subr.mxu0 %v90
    %1067 = vmatpush1.msra.mxu0 %v89
    %1068 = vmatprep.subr.mxu0 %v86
    %1069 = vmatpush1.msra.mxu0 %v85
    %1070 = vmatprep.subr.mxu0 %v82
    %1071 = vmatpush1.msra.mxu0 %v81
    %1072 = vmatprep.subr.mxu0 0.0
    %1073 = vmatpush2.msra.mxu0 0.0
    %1074 = vmatprep.subr.mxu0 0.0
    %1075 = vmatpush2.msra.mxu0 0.0
    %1076 = vmatprep.subr.mxu0 0.0
    %1077 = vmatpush2.msra.mxu0 0.0
    %1078 = vmatprep.subr.mxu0 0.0
    %1079 = vmatpush2.msra.mxu0 0.0
    %1080 = vmatprep.subr.mxu0 0.0
    %1081 = vmatpush2.msra.mxu0 0.0
    %1082 = vmatprep.subr.mxu0 0.0
    %1083 = vmatpush2.msra.mxu0 0.0
    %1084 = vmatprep.subr.mxu0 0.0
    %1085 = vmatpush2.msra.mxu0 0.0
    %1086 = vmatprep.subr.mxu0 0.0
    %1087 = vmatpush2.msra.mxu0 0.0
    %1088 = vmatprep.subr.mxu0 0.0
    %1089 = vmatpush2.msra.mxu0 0.0
    %1090 = vmatprep.subr.mxu0 0.0
    %1091 = vmatpush2.msra.mxu0 0.0
    %1092 = vmatprep.subr.mxu0 0.0
    %1093 = vmatpush2.msra.mxu0 0.0
    %1094 = vmatprep.subr.mxu0 0.0
    %1095 = vmatpush2.msra.mxu0 0.0
    %1096 = vmatprep.subr.mxu0 0.0
    %1097 = vmatpush2.msra.mxu0 0.0
    %1098 = vmatprep.subr.mxu0 0.0
    %1099 = vmatpush2.msra.mxu0 0.0
    %1100 = vmatprep.subr.mxu0 0.0
    %1101 = vmatpush2.msra.mxu0 0.0
    %1102 = vmatprep.subr.mxu0 0.0
    %1103 = vmatpush2.msra.mxu0 0.0
    %1104 = vmatprep.mubr.f32.mxu0 0.0
    %1105 = vmatmul.mubr.f32.gmra.mxu0 %v1025
    %v1106 = vpop.f32.mrf.mxu0
    %v1107 = vadd.f32 0.0, %v1106
    %v1108 = vpop.f32.mrf.mxu0
    %v1109 = vadd.f32 0.0, %v1108
    %1110 = vdwg.mxu0
    %1111 = vmatprep.subr.mxu0 %v144
    %1112 = vmatpush1.msra.mxu0 %v143
    %1113 = vmatprep.subr.mxu0 %v140
    %1114 = vmatpush1.msra.mxu0 %v139
    %1115 = vmatprep.subr.mxu0 %v136
    %1116 = vmatpush1.msra.mxu0 %v135
    %1117 = vmatprep.subr.mxu0 %v132
    %1118 = vmatpush1.msra.mxu0 %v131
    %1119 = vmatprep.subr.mxu0 %v128
    %1120 = vmatpush1.msra.mxu0 %v127
    %1121 = vmatprep.subr.mxu0 %v124
    %1122 = vmatpush1.msra.mxu0 %v123
    %1123 = vmatprep.subr.mxu0 %v120
    %1124 = vmatpush1.msra.mxu0 %v119
    %1125 = vmatprep.subr.mxu0 %v116
    %1126 = vmatpush1.msra.mxu0 %v115
    %1127 = vmatprep.subr.mxu0 %v112
    %1128 = vmatpush1.msra.mxu0 %v111
    %1129 = vmatprep.subr.mxu0 %v108
    %1130 = vmatpush1.msra.mxu0 %v107
    %1131 = vmatprep.subr.mxu0 %v104
    %1132 = vmatpush1.msra.mxu0 %v103
    %1133 = vmatprep.subr.mxu0 %v100
    %1134 = vmatpush1.msra.mxu0 %v99
    %1135 = vmatprep.subr.mxu0 %v96
    %1136 = vmatpush1.msra.mxu0 %v95
    %1137 = vmatprep.subr.mxu0 %v92
    %1138 = vmatpush1.msra.mxu0 %v91
    %1139 = vmatprep.subr.mxu0 %v88
    %1140 = vmatpush1.msra.mxu0 %v87
    %1141 = vmatprep.subr.mxu0 %v84
    %1142 = vmatpush1.msra.mxu0 %v83
    %1143 = vmatprep.subr.mxu0 0.0
    %1144 = vmatpush2.msra.mxu0 0.0
    %1145 = vmatprep.subr.mxu0 0.0
    %1146 = vmatpush2.msra.mxu0 0.0
    %1147 = vmatprep.subr.mxu0 0.0
    %1148 = vmatpush2.msra.mxu0 0.0
    %1149 = vmatprep.subr.mxu0 0.0
    %1150 = vmatpush2.msra.mxu0 0.0
    %1151 = vmatprep.subr.mxu0 0.0
    %1152 = vmatpush2.msra.mxu0 0.0
    %1153 = vmatprep.subr.mxu0 0.0
    %1154 = vmatpush2.msra.mxu0 0.0
    %1155 = vmatprep.subr.mxu0 0.0
    %1156 = vmatpush2.msra.mxu0 0.0
    %1157 = vmatprep.subr.mxu0 0.0
    %1158 = vmatpush2.msra.mxu0 0.0
    %1159 = vmatprep.subr.mxu0 0.0
    %1160 = vmatpush2.msra.mxu0 0.0
    %1161 = vmatprep.subr.mxu0 0.0
    %1162 = vmatpush2.msra.mxu0 0.0
    %1163 = vmatprep.subr.mxu0 0.0
    %1164 = vmatpush2.msra.mxu0 0.0
    %1165 = vmatprep.subr.mxu0 0.0
    %1166 = vmatpush2.msra.mxu0 0.0
    %1167 = vmatprep.subr.mxu0 0.0
    %1168 = vmatpush2.msra.mxu0 0.0
    %1169 = vmatprep.subr.mxu0 0.0
    %1170 = vmatpush2.msra.mxu0 0.0
    %1171 = vmatprep.subr.mxu0 0.0
    %1172 = vmatpush2.msra.mxu0 0.0
    %1173 = vmatprep.subr.mxu0 0.0
    %1174 = vmatpush2.msra.mxu0 0.0
    %1175 = vmatprep.mubr.f32.mxu0 0.0
    %1176 = vmatmul.mubr.f32.gmra.mxu0 %v1025
    %v1177 = vpop.f32.mrf.mxu0
    %v1178 = vadd.f32 0.0, %v1177
    %v1179 = vpop.f32.mrf.mxu0
    %v1180 = vadd.f32 0.0, %v1179
    %1181 = vdwg.mxu0
    %v1182 = vadd.f32 %v1036, %v1107
    %v1183 = vadd.f32 %v1037, %v1109
    %v1184 = vadd.f32 %v1038, %v1178
    %v1185 = vadd.f32 %v1039, %v1180
    %v1186 = vmul.f32 %v1182, 0.5
    %v1187 = vmul.f32 %v1183, 0.5
    %v1188 = vmul.f32 %v1184, 0.5
    %v1189 = vtanh.pop %v1186
    %v1190 = vtanh.pop %v1187
    %v1191 = vtanh.pop %v1188
    %v1192 = vmul.f32 %v1189, 0.5
    %v1193 = vmul.f32 %v1190, 0.5
    %v1194 = vmul.f32 %v1191, 0.5
    %v1195 = vadd.f32 %v1192, 0.5
    %v1196 = vadd.f32 %v1193, 0.5
    %v1197 = vadd.f32 %v1194, 0.5
    %v1198 = vtanh.pop %v1185
    %v1199 = vmul.f32 %v1196, %v1023
    %v1200 = vmul.f32 %v1195, %v1198
    %v1201 = vadd.f32 %v1199, %v1200
    %v1202 = vtanh.pop %v1201
    %v1203 = vmul.f32 %v1197, %v1202
    %s1204 = scalar_lea.vmem [#allocation12], 40
    %1205 = vst [vmem:[%s1204] sm:$0xff] %v1203
    %s1206 = sadd.s32 %s145, 5
    %p1207 = scmp.eq.s32.totalorder %s1206, 7
    // Predicated region
    $region58: #{tpu_custom_call.1} parent=1 // pred_check
      %p1208 = pneg %p1207
    $region59: #{tpu_custom_call.1} parent=1 // pred_check_branch
      %1210 = sbr.rel (%p1208) target = $region61
    $region60: #{tpu_custom_call.1} parent=1 // pred_region
      %1211 = vst [vmem:[#allocation13] sm:$0xff] %v1203
      %1212 = vst [vmem:[#allocation15] sm:$0xff] %v1201
    $region61: #{tpu_custom_call.1} parent=1 // pred_fallthru
      _
    %s1213 = scalar_lea.vmem [#allocation4], 192
    %v1214 = vld [vmem:[%s1213] sm:$0xff]
    %v1215 = vld [vmem:[%s1213 + $0x8] sm:$0xff]
    %v1216 = vld [vmem:[%s1213 + $0x10] sm:$0xff]
    %v1217 = vld [vmem:[%s1213 + $0x18] sm:$0xff]
    %1218 = vmatprep.subr.mxu0 %v142
    %1219 = vmatpush1.msra.mxu0 %v141
    %1220 = vmatprep.subr.mxu0 %v138
    %1221 = vmatpush1.msra.mxu0 %v137
    %1222 = vmatprep.subr.mxu0 %v134
    %1223 = vmatpush1.msra.mxu0 %v133
    %1224 = vmatprep.subr.mxu0 %v130
    %1225 = vmatpush1.msra.mxu0 %v129
    %1226 = vmatprep.subr.mxu0 %v126
    %1227 = vmatpush1.msra.mxu0 %v125
    %1228 = vmatprep.subr.mxu0 %v122
    %1229 = vmatpush1.msra.mxu0 %v121
    %1230 = vmatprep.subr.mxu0 %v118
    %1231 = vmatpush1.msra.mxu0 %v117
    %1232 = vmatprep.subr.mxu0 %v114
    %1233 = vmatpush1.msra.mxu0 %v113
    %1234 = vmatprep.subr.mxu0 %v110
    %1235 = vmatpush1.msra.mxu0 %v109
    %1236 = vmatprep.subr.mxu0 %v106
    %1237 = vmatpush1.msra.mxu0 %v105
    %1238 = vmatprep.subr.mxu0 %v102
    %1239 = vmatpush1.msra.mxu0 %v101
    %1240 = vmatprep.subr.mxu0 %v98
    %1241 = vmatpush1.msra.mxu0 %v97
    %1242 = vmatprep.subr.mxu0 %v94
    %1243 = vmatpush1.msra.mxu0 %v93
    %1244 = vmatprep.subr.mxu0 %v90
    %1245 = vmatpush1.msra.mxu0 %v89
    %1246 = vmatprep.subr.mxu0 %v86
    %1247 = vmatpush1.msra.mxu0 %v85
    %1248 = vmatprep.subr.mxu0 %v82
    %1249 = vmatpush1.msra.mxu0 %v81
    %1250 = vmatprep.subr.mxu0 0.0
    %1251 = vmatpush2.msra.mxu0 0.0
    %1252 = vmatprep.subr.mxu0 0.0
    %1253 = vmatpush2.msra.mxu0 0.0
    %1254 = vmatprep.subr.mxu0 0.0
    %1255 = vmatpush2.msra.mxu0 0.0
    %1256 = vmatprep.subr.mxu0 0.0
    %1257 = vmatpush2.msra.mxu0 0.0
    %1258 = vmatprep.subr.mxu0 0.0
    %1259 = vmatpush2.msra.mxu0 0.0
    %1260 = vmatprep.subr.mxu0 0.0
    %1261 = vmatpush2.msra.mxu0 0.0
    %1262 = vmatprep.subr.mxu0 0.0
    %1263 = vmatpush2.msra.mxu0 0.0
    %1264 = vmatprep.subr.mxu0 0.0
    %1265 = vmatpush2.msra.mxu0 0.0
    %1266 = vmatprep.subr.mxu0 0.0
    %1267 = vmatpush2.msra.mxu0 0.0
    %1268 = vmatprep.subr.mxu0 0.0
    %1269 = vmatpush2.msra.mxu0 0.0
    %1270 = vmatprep.subr.mxu0 0.0
    %1271 = vmatpush2.msra.mxu0 0.0
    %1272 = vmatprep.subr.mxu0 0.0
    %1273 = vmatpush2.msra.mxu0 0.0
    %1274 = vmatprep.subr.mxu0 0.0
    %1275 = vmatpush2.msra.mxu0 0.0
    %1276 = vmatprep.subr.mxu0 0.0
    %1277 = vmatpush2.msra.mxu0 0.0
    %1278 = vmatprep.subr.mxu0 0.0
    %1279 = vmatpush2.msra.mxu0 0.0
    %1280 = vmatprep.subr.mxu0 0.0
    %1281 = vmatpush2.msra.mxu0 0.0
    %1282 = vmatprep.mubr.f32.mxu0 0.0
    %1283 = vmatmul.mubr.f32.gmra.mxu0 %v1203
    %v1284 = vpop.f32.mrf.mxu0
    %v1285 = vadd.f32 0.0, %v1284
    %v1286 = vpop.f32.mrf.mxu0
    %v1287 = vadd.f32 0.0, %v1286
    %1288 = vdwg.mxu0
    %1289 = vmatprep.subr.mxu0 %v144
    %1290 = vmatpush1.msra.mxu0 %v143
    %1291 = vmatprep.subr.mxu0 %v140
    %1292 = vmatpush1.msra.mxu0 %v139
    %1293 = vmatprep.subr.mxu0 %v136
    %1294 = vmatpush1.msra.mxu0 %v135
    %1295 = vmatprep.subr.mxu0 %v132
    %1296 = vmatpush1.msra.mxu0 %v131
    %1297 = vmatprep.subr.mxu0 %v128
    %1298 = vmatpush1.msra.mxu0 %v127
    %1299 = vmatprep.subr.mxu0 %v124
    %1300 = vmatpush1.msra.mxu0 %v123
    %1301 = vmatprep.subr.mxu0 %v120
    %1302 = vmatpush1.msra.mxu0 %v119
    %1303 = vmatprep.subr.mxu0 %v116
    %1304 = vmatpush1.msra.mxu0 %v115
    %1305 = vmatprep.subr.mxu0 %v112
    %1306 = vmatpush1.msra.mxu0 %v111
    %1307 = vmatprep.subr.mxu0 %v108
    %1308 = vmatpush1.msra.mxu0 %v107
    %1309 = vmatprep.subr.mxu0 %v104
    %1310 = vmatpush1.msra.mxu0 %v103
    %1311 = vmatprep.subr.mxu0 %v100
    %1312 = vmatpush1.msra.mxu0 %v99
    %1313 = vmatprep.subr.mxu0 %v96
    %1314 = vmatpush1.msra.mxu0 %v95
    %1315 = vmatprep.subr.mxu0 %v92
    %1316 = vmatpush1.msra.mxu0 %v91
    %1317 = vmatprep.subr.mxu0 %v88
    %1318 = vmatpush1.msra.mxu0 %v87
    %1319 = vmatprep.subr.mxu0 %v84
    %1320 = vmatpush1.msra.mxu0 %v83
    %1321 = vmatprep.subr.mxu0 0.0
    %1322 = vmatpush2.msra.mxu0 0.0
    %1323 = vmatprep.subr.mxu0 0.0
    %1324 = vmatpush2.msra.mxu0 0.0
    %1325 = vmatprep.subr.mxu0 0.0
    %1326 = vmatpush2.msra.mxu0 0.0
    %1327 = vmatprep.subr.mxu0 0.0
    %1328 = vmatpush2.msra.mxu0 0.0
    %1329 = vmatprep.subr.mxu0 0.0
    %1330 = vmatpush2.msra.mxu0 0.0
    %1331 = vmatprep.subr.mxu0 0.0
    %1332 = vmatpush2.msra.mxu0 0.0
    %1333 = vmatprep.subr.mxu0 0.0
    %1334 = vmatpush2.msra.mxu0 0.0
    %1335 = vmatprep.subr.mxu0 0.0
    %1336 = vmatpush2.msra.mxu0 0.0
    %1337 = vmatprep.subr.mxu0 0.0
    %1338 = vmatpush2.msra.mxu0 0.0
    %1339 = vmatprep.subr.mxu0 0.0
    %1340 = vmatpush2.msra.mxu0 0.0
    %1341 = vmatprep.subr.mxu0 0.0
    %1342 = vmatpush2.msra.mxu0 0.0
    %1343 = vmatprep.subr.mxu0 0.0
    %1344 = vmatpush2.msra.mxu0 0.0
    %1345 = vmatprep.subr.mxu0 0.0
    %1346 = vmatpush2.msra.mxu0 0.0
    %1347 = vmatprep.subr.mxu0 0.0
    %1348 = vmatpush2.msra.mxu0 0.0
    %1349 = vmatprep.subr.mxu0 0.0
    %1350 = vmatpush2.msra.mxu0 0.0
    %1351 = vmatprep.subr.mxu0 0.0
    %1352 = vmatpush2.msra.mxu0 0.0
    %1353 = vmatprep.mubr.f32.mxu0 0.0
    %1354 = vmatmul.mubr.f32.gmra.mxu0 %v1203
    %v1355 = vpop.f32.mrf.mxu0
    %v1356 = vadd.f32 0.0, %v1355
    %v1357 = vpop.f32.mrf.mxu0
    %v1358 = vadd.f32 0.0, %v1357
    %1359 = vdwg.mxu0
    %v1360 = vadd.f32 %v1214, %v1285
    %v1361 = vadd.f32 %v1215, %v1287
    %v1362 = vadd.f32 %v1216, %v1356
    %v1363 = vadd.f32 %v1217, %v1358
    %v1364 = vmul.f32 %v1360, 0.5
    %v1365 = vmul.f32 %v1361, 0.5
    %v1366 = vmul.f32 %v1362, 0.5
    %v1367 = vtanh.pop %v1364
    %v1368 = vtanh.pop %v1365
    %v1369 = vtanh.pop %v1366
    %v1370 = vmul.f32 %v1367, 0.5
    %v1371 = vmul.f32 %v1368, 0.5
    %v1372 = vmul.f32 %v1369, 0.5
    %v1373 = vadd.f32 %v1370, 0.5
    %v1374 = vadd.f32 %v1371, 0.5
    %v1375 = vadd.f32 %v1372, 0.5
    %v1376 = vtanh.pop %v1363
    %v1377 = vmul.f32 %v1374, %v1201
    %v1378 = vmul.f32 %v1373, %v1376
    %v1379 = vadd.f32 %v1377, %v1378
    %v1380 = vtanh.pop %v1379
    %v1381 = vmul.f32 %v1375, %v1380
    %s1382 = scalar_lea.vmem [#allocation12], 48
    %1383 = vst [vmem:[%s1382] sm:$0xff] %v1381
    %s1384 = sadd.s32 %s145, 6
    %p1385 = scmp.eq.s32.totalorder %s1384, 7
    // Predicated region
    $region62: #{tpu_custom_call.1} parent=1 // pred_check
      %p1386 = pneg %p1385
    $region63: #{tpu_custom_call.1} parent=1 // pred_check_branch
      %1388 = sbr.rel (%p1386) target = $region65
    $region64: #{tpu_custom_call.1} parent=1 // pred_region
      %1389 = vst [vmem:[#allocation13] sm:$0xff] %v1381
      %1390 = vst [vmem:[#allocation15] sm:$0xff] %v1379
    $region65: #{tpu_custom_call.1} parent=1 // pred_fallthru
      _
    %s1391 = scalar_lea.vmem [#allocation4], 224
    %v1392 = vld [vmem:[%s1391] sm:$0xff]
    %v1393 = vld [vmem:[%s1391 + $0x8] sm:$0xff]
    %v1394 = vld [vmem:[%s1391 + $0x10] sm:$0xff]
    %v1395 = vld [vmem:[%s1391 + $0x18] sm:$0xff]
    %1396 = vmatprep.subr.mxu0 %v142
    %1397 = vmatpush1.msra.mxu0 %v141
    %1398 = vmatprep.subr.mxu0 %v138
    %1399 = vmatpush1.msra.mxu0 %v137
    %1400 = vmatprep.subr.mxu0 %v134
    %1401 = vmatpush1.msra.mxu0 %v133
    %1402 = vmatprep.subr.mxu0 %v130
    %1403 = vmatpush1.msra.mxu0 %v129
    %1404 = vmatprep.subr.mxu0 %v126
    %1405 = vmatpush1.msra.mxu0 %v125
    %1406 = vmatprep.subr.mxu0 %v122
    %1407 = vmatpush1.msra.mxu0 %v121
    %1408 = vmatprep.subr.mxu0 %v118
    %1409 = vmatpush1.msra.mxu0 %v117
    %1410 = vmatprep.subr.mxu0 %v114
    %1411 = vmatpush1.msra.mxu0 %v113
    %1412 = vmatprep.subr.mxu0 %v110
    %1413 = vmatpush1.msra.mxu0 %v109
    %1414 = vmatprep.subr.mxu0 %v106
    %1415 = vmatpush1.msra.mxu0 %v105
    %1416 = vmatprep.subr.mxu0 %v102
    %1417 = vmatpush1.msra.mxu0 %v101
    %1418 = vmatprep.subr.mxu0 %v98
    %1419 = vmatpush1.msra.mxu0 %v97
    %1420 = vmatprep.subr.mxu0 %v94
    %1421 = vmatpush1.msra.mxu0 %v93
    %1422 = vmatprep.subr.mxu0 %v90
    %1423 = vmatpush1.msra.mxu0 %v89
    %1424 = vmatprep.subr.mxu0 %v86
    %1425 = vmatpush1.msra.mxu0 %v85
    %1426 = vmatprep.subr.mxu0 %v82
    %1427 = vmatpush1.msra.mxu0 %v81
    %1428 = vmatprep.subr.mxu0 0.0
    %1429 = vmatpush2.msra.mxu0 0.0
    %1430 = vmatprep.subr.mxu0 0.0
    %1431 = vmatpush2.msra.mxu0 0.0
    %1432 = vmatprep.subr.mxu0 0.0
    %1433 = vmatpush2.msra.mxu0 0.0
    %1434 = vmatprep.subr.mxu0 0.0
    %1435 = vmatpush2.msra.mxu0 0.0
    %1436 = vmatprep.subr.mxu0 0.0
    %1437 = vmatpush2.msra.mxu0 0.0
    %1438 = vmatprep.subr.mxu0 0.0
    %1439 = vmatpush2.msra.mxu0 0.0
    %1440 = vmatprep.subr.mxu0 0.0
    %1441 = vmatpush2.msra.mxu0 0.0
    %1442 = vmatprep.subr.mxu0 0.0
    %1443 = vmatpush2.msra.mxu0 0.0
    %1444 = vmatprep.subr.mxu0 0.0
    %1445 = vmatpush2.msra.mxu0 0.0
    %1446 = vmatprep.subr.mxu0 0.0
    %1447 = vmatpush2.msra.mxu0 0.0
    %1448 = vmatprep.subr.mxu0 0.0
    %1449 = vmatpush2.msra.mxu0 0.0
    %1450 = vmatprep.subr.mxu0 0.0
    %1451 = vmatpush2.msra.mxu0 0.0
    %1452 = vmatprep.subr.mxu0 0.0
    %1453 = vmatpush2.msra.mxu0 0.0
    %1454 = vmatprep.subr.mxu0 0.0
    %1455 = vmatpush2.msra.mxu0 0.0
    %1456 = vmatprep.subr.mxu0 0.0
    %1457 = vmatpush2.msra.mxu0 0.0
    %1458 = vmatprep.subr.mxu0 0.0
    %1459 = vmatpush2.msra.mxu0 0.0
    %1460 = vmatprep.mubr.f32.mxu0 0.0
    %1461 = vmatmul.mubr.f32.gmra.mxu0 %v1381
    %v1462 = vpop.f32.mrf.mxu0
    %v1463 = vadd.f32 0.0, %v1462
    %v1464 = vpop.f32.mrf.mxu0
    %v1465 = vadd.f32 0.0, %v1464
    %1466 = vdwg.mxu0
    %1467 = vmatprep.subr.mxu0 %v144
    %1468 = vmatpush1.msra.mxu0 %v143
    %1469 = vmatprep.subr.mxu0 %v140
    %1470 = vmatpush1.msra.mxu0 %v139
    %1471 = vmatprep.subr.mxu0 %v136
    %1472 = vmatpush1.msra.mxu0 %v135
    %1473 = vmatprep.subr.mxu0 %v132
    %1474 = vmatpush1.msra.mxu0 %v131
    %1475 = vmatprep.subr.mxu0 %v128
    %1476 = vmatpush1.msra.mxu0 %v127
    %1477 = vmatprep.subr.mxu0 %v124
    %1478 = vmatpush1.msra.mxu0 %v123
    %1479 = vmatprep.subr.mxu0 %v120
    %1480 = vmatpush1.msra.mxu0 %v119
    %1481 = vmatprep.subr.mxu0 %v116
    %1482 = vmatpush1.msra.mxu0 %v115
    %1483 = vmatprep.subr.mxu0 %v112
    %1484 = vmatpush1.msra.mxu0 %v111
    %1485 = vmatprep.subr.mxu0 %v108
    %1486 = vmatpush1.msra.mxu0 %v107
    %1487 = vmatprep.subr.mxu0 %v104
    %1488 = vmatpush1.msra.mxu0 %v103
    %1489 = vmatprep.subr.mxu0 %v100
    %1490 = vmatpush1.msra.mxu0 %v99
    %1491 = vmatprep.subr.mxu0 %v96
    %1492 = vmatpush1.msra.mxu0 %v95
    %1493 = vmatprep.subr.mxu0 %v92
    %1494 = vmatpush1.msra.mxu0 %v91
    %1495 = vmatprep.subr.mxu0 %v88
    %1496 = vmatpush1.msra.mxu0 %v87
    %1497 = vmatprep.subr.mxu0 %v84
    %1498 = vmatpush1.msra.mxu0 %v83
    %1499 = vmatprep.subr.mxu0 0.0
    %1500 = vmatpush2.msra.mxu0 0.0
    %1501 = vmatprep.subr.mxu0 0.0
    %1502 = vmatpush2.msra.mxu0 0.0
    %1503 = vmatprep.subr.mxu0 0.0
    %1504 = vmatpush2.msra.mxu0 0.0
    %1505 = vmatprep.subr.mxu0 0.0
    %1506 = vmatpush2.msra.mxu0 0.0
    %1507 = vmatprep.subr.mxu0 0.0
    %1508 = vmatpush2.msra.mxu0 0.0
    %1509 = vmatprep.subr.mxu0 0.0
    %1510 = vmatpush2.msra.mxu0 0.0
    %1511 = vmatprep.subr.mxu0 0.0
    %1512 = vmatpush2.msra.mxu0 0.0
    %1513 = vmatprep.subr.mxu0 0.0
    %1514 = vmatpush2.msra.mxu0 0.0
    %1515 = vmatprep.subr.mxu0 0.0
    %1516 = vmatpush2.msra.mxu0 0.0
    %1517 = vmatprep.subr.mxu0 0.0
    %1518 = vmatpush2.msra.mxu0 0.0
    %1519 = vmatprep.subr.mxu0 0.0
    %1520 = vmatpush2.msra.mxu0 0.0
    %1521 = vmatprep.subr.mxu0 0.0
    %1522 = vmatpush2.msra.mxu0 0.0
    %1523 = vmatprep.subr.mxu0 0.0
    %1524 = vmatpush2.msra.mxu0 0.0
    %1525 = vmatprep.subr.mxu0 0.0
    %1526 = vmatpush2.msra.mxu0 0.0
    %1527 = vmatprep.subr.mxu0 0.0
    %1528 = vmatpush2.msra.mxu0 0.0
    %1529 = vmatprep.subr.mxu0 0.0
    %1530 = vmatpush2.msra.mxu0 0.0
    %1531 = vmatprep.mubr.f32.mxu0 0.0
    %1532 = vmatmul.mubr.f32.gmra.mxu0 %v1381
    %v1533 = vpop.f32.mrf.mxu0
    %v1534 = vadd.f32 0.0, %v1533
    %v1535 = vpop.f32.mrf.mxu0
    %v1536 = vadd.f32 0.0, %v1535
    %1537 = vdwg.mxu0
    %v1538 = vadd.f32 %v1392, %v1463
    %v1539 = vadd.f32 %v1393, %v1465
    %v1540 = vadd.f32 %v1394, %v1534
    %v1541 = vadd.f32 %v1395, %v1536
    %v1542 = vmul.f32 %v1538, 0.5
    %v1543 = vmul.f32 %v1539, 0.5
    %v1544 = vmul.f32 %v1540, 0.5
    %v1545 = vtanh.pop %v1542
    %v1546 = vtanh.pop %v1543
    %v1547 = vtanh.pop %v1544
    %v1548 = vmul.f32 %v1545, 0.5
    %v1549 = vmul.f32 %v1546, 0.5
    %v1550 = vmul.f32 %v1547, 0.5
    %v1551 = vadd.f32 %v1548, 0.5
    %v1552 = vadd.f32 %v1549, 0.5
    %v1553 = vadd.f32 %v1550, 0.5
    %v1554 = vtanh.pop %v1541
    %v1555 = vmul.f32 %v1552, %v1379
    %v1556 = vmul.f32 %v1551, %v1554
    %v1557 = vadd.f32 %v1555, %v1556
    %v1558 = vtanh.pop %v1557
    %v1559 = vmul.f32 %v1553, %v1558
    %s1560 = scalar_lea.vmem [#allocation12], 56
    %1561 = vst [vmem:[%s1560] sm:$0xff] %v1559
    %s1562 = sadd.s32 %s145, 7
    %p1563 = scmp.eq.s32.totalorder %s1562, 7
    // Predicated region
    $region66: #{tpu_custom_call.1} parent=1 // pred_check
      %p1564 = pneg %p1563
    $region67: #{tpu_custom_call.1} parent=1 // pred_check_branch
      %1566 = sbr.rel (%p1564) target = $region69
    $region68: #{tpu_custom_call.1} parent=1 // pred_region
      %1567 = vst [vmem:[#allocation13] sm:$0xff] %v1559
      %1568 = vst [vmem:[#allocation15] sm:$0xff] %v1557
    $region69: #{tpu_custom_call.1} parent=1 // pred_fallthru
      _
    %1569 = vst [vmem:[#allocation2] sm:$0xff] %v1559
    %1570 = vst [vmem:[#allocation3] sm:$0xff] %v1557
    // Predicated region
    $region70: #{tpu_custom_call.1} parent=1 // pred_check
      _
    $region71: #{tpu_custom_call.1} parent=1 // pred_check_branch
      %1572 = sbr.rel (0) target = $region73
    $region72: #{tpu_custom_call.1} parent=1 // pred_region
      %s1574 = ssub.s32 1024, 1024
      %1575 = vsyncadd [#allocation6], %s1574
      %s1576 = sshll.u32 [#allocation12], 4
      %s1577 = int_to_ptr.vmem [resolvable:$true] %s1576
      %1582 = dma.vmem_to_hbm [thread:$0]  %s1577, 1024, %s4, [#allocation6], 128, 128, 8
    $region73: #{tpu_custom_call.1} parent=1 // pred_fallthru
      _
    // Predicated region
    $region74: #{tpu_custom_call.1} parent=1 // pred_check
      _
    $region75: #{tpu_custom_call.1} parent=1 // pred_check_branch
      %1584 = sbr.rel (0) target = $region77
    $region76: #{tpu_custom_call.1} parent=1 // pred_region
      %s1586 = ssub.s32 128, 128
      %1587 = vsyncadd [#allocation14], %s1586
      %s1589 = sshll.u32 [#allocation13], 4
      %s1590 = int_to_ptr.vmem [resolvable:$true] %s1589
      %1592 = dma.vmem_to_hbm [thread:$0]  %s1590, 128, %s5, [#allocation14]
    $region77: #{tpu_custom_call.1} parent=1 // pred_fallthru
      _
    // Predicated region
    $region78: #{tpu_custom_call.1} parent=1 // pred_check
      _
    $region79: #{tpu_custom_call.1} parent=1 // pred_check_branch
      %1594 = sbr.rel (0) target = $region81
    $region80: #{tpu_custom_call.1} parent=1 // pred_region
      %s1596 = ssub.s32 128, 128
      %1597 = vsyncadd [#allocation14], %s1596
      %s1599 = sshll.u32 [#allocation15], 4
      %s1600 = int_to_ptr.vmem [resolvable:$true] %s1599
      %1602 = dma.vmem_to_hbm [thread:$0]  %s1600, 128, %s6, [#allocation14]
    $region81: #{tpu_custom_call.1} parent=1 // pred_fallthru
      _
    // Predicated region
    $region82: #{tpu_custom_call.1} parent=1 // pred_check
      _
    $region83: #{tpu_custom_call.1} parent=1 // pred_check_branch
      %1604 = sbr.rel (0) target = $region85
    $region84: #{tpu_custom_call.1} parent=1 // pred_region
      %1605 = dma.done [#allocation6], 1024
    $region85: #{tpu_custom_call.1} parent=1 // pred_fallthru
      _
    // Predicated region
    $region86: #{tpu_custom_call.1} parent=1 // pred_check
      _
    $region87: #{tpu_custom_call.1} parent=1 // pred_check_branch
      %1607 = sbr.rel (0) target = $region89
    $region88: #{tpu_custom_call.1} parent=1 // pred_region
      %1608 = dma.done [#allocation14], 128
    $region89: #{tpu_custom_call.1} parent=1 // pred_fallthru
      _
    // Predicated region
    $region90: #{tpu_custom_call.1} parent=1 // pred_check
      _
    $region91: #{tpu_custom_call.1} parent=1 // pred_check_branch
      %1610 = sbr.rel (0) target = $region93
    $region92: #{tpu_custom_call.1} parent=1 // pred_region
      %1611 = dma.done [#allocation14], 128
    $region93: #{tpu_custom_call.1} parent=1 // pred_fallthru
      _
    %1612 = vsyncpa [#allocation5], 1
    %1613 = vsyncpa [#allocation8], 1
    %1614 = vsyncpa [#allocation11], 1
    %1615 = vsyncpa [#allocation6], 1
    %1616 = vsyncpa [#allocation14], 1

// kernel: tpu_custom_call.1
$region0: #{tpu_custom_call.1}
  #allocation0 [shape = 'u32[]', space=smem, size = 0x4, offset = 0x4, fixed_abs, tag = 'smem constant byte address 0x4 - core index']
  #allocation1 [shape = 'u32[144,128]{1,0:T(1,128)}', space=vmem, size = 0x12000, scoped, tag = 'internal scratch']
  #allocation2 [shape = 'f32[8,128]{1,0:T(8,128)}', space=vmem, size = 0x1000, scoped, tag = 'scratch operand']
  #allocation3 [shape = 'f32[8,128]{1,0:T(8,128)}', space=vmem, size = 0x1000, scoped, tag = 'scratch operand']
  %s0 = inlined_call_operand.hbm [shape: f32[8,8,512], index: 0, kind: input, shape index: {}]
  %s1 = inlined_call_operand.hbm [shape: f32[128,512], index: 1, kind: input, shape index: {}]
  %s2 = inlined_call_operand.hbm [shape: f32[8,128], index: 2, kind: input, shape index: {}]
  %s3 = inlined_call_operand.hbm [shape: f32[8,128], index: 3, kind: input, shape index: {}]
  %s4 = inlined_call_operand.hbm [shape: f32[8,8,128], index: 4, kind: output, shape index: {0}]
  %s5 = inlined_call_operand.hbm [shape: f32[8,128], index: 5, kind: output, shape index: {1}]
  %s6 = inlined_call_operand.hbm [shape: f32[8,128], index: 6, kind: output, shape index: {2}]
  %7 = xla_tuple %s4, %s5, %s6
  %s8 = sld [smem:[#allocation0]]
  $region94: #{tpu_custom_call.1} parent=0
    _
  %s10 = ssub.s32 1, %s8
  %s11 = scalar_select 0, %s10, %s8
  $region1: #{tpu_custom_call.1} parent=0
    #allocation4 [shape = 'u8[131072]{0}', space=vmem, size = 0x20000, scoped, tag = 'input window, operand 0, single buffered']
    #allocation5 [shape = 's32[1]{0}', space=sflag, size = 0x4, scoped, tag = 'scoped memory for tpu_custom_call.1']
    #allocation6 [shape = 's32[1]{0}', space=sflag, size = 0x4, scoped, tag = 'scoped memory for tpu_custom_call.1']
    #allocation7 [shape = 'u8[262144]{0}', space=vmem, size = 0x40000, scoped, tag = 'input window, operand 1, single buffered']
    #allocation8 [shape = 's32[1]{0}', space=sflag, size = 0x4, scoped, tag = 'scoped memory for tpu_custom_call.1']
    #allocation9 [shape = 'u8[4096]{0}', space=vmem, size = 0x1000, scoped, tag = 'input window, operand 2, single buffered']
    #allocation10 [shape = 'u8[4096]{0}', space=vmem, size = 0x1000, scoped, tag = 'input window, operand 3, single buffered']
    #allocation11 [shape = 's32[1]{0}', space=sflag, size = 0x4, scoped, tag = 'scoped memory for tpu_custom_call.1']
    #allocation12 [shape = 'u8[32768]{0}', space=vmem, size = 0x8000, scoped, tag = 'output window, operand 0, single buffered']
    #allocation13 [shape = 'u8[4096]{0}', space=vmem, size = 0x1000, scoped, tag = 'output window, operand 1, single buffered']
    #allocation14 [shape = 's32[1]{0}', space=sflag, size = 0x4, scoped, tag = 'scoped memory for tpu_custom_call.1']
    #allocation15 [shape = 'u8[4096]{0}', space=vmem, size = 0x1000, scoped, tag = 'output window, operand 2, single buffered']
    %12 = vsyncpa [#allocation5], 0
    %13 = vsyncpa [#allocation8], 0
    %14 = vsyncpa [#allocation11], 0
    %15 = vsyncpa [#allocation6], 0
    %16 = vsyncpa [#allocation14], 0
    // Predicated region
    $region2: #{tpu_custom_call.1} parent=1 // pred_check
      _
    $region3: #{tpu_custom_call.1} parent=1 // pred_check_branch
      %18 = sbr.rel (0) target = $region5
    $region4: #{tpu_custom_call.1} parent=1 // pred_region
      %s20 = ssub.s32 4096, 4096
      %21 = vsyncadd [#allocation5], %s20
      %s22 = sshll.u32 [#allocation4], 4
      %s23 = int_to_ptr.vmem [resolvable:$true] %s22
      %28 = dma.hbm_to_vmem [thread:$0]  %s0, 4096, %s23, [#allocation5], 512, 512, 32
    $region5: #{tpu_custom_call.1} parent=1 // pred_fallthru
      _
    // Predicated region
    $region6: #{tpu_custom_call.1} parent=1 // pred_check
      _
    $region7: #{tpu_custom_call.1} parent=1 // pred_check_branch
      %30 = sbr.rel (0) target = $region9
    $region8: #{tpu_custom_call.1} parent=1 // pred_region
      %s32 = ssub.s32 8192, 8192
      %33 = vsyncadd [#allocation8], %s32
      %s34 = sshll.u32 [#allocation7], 4
      %s35 = int_to_ptr.vmem [resolvable:$true] %s34
      %40 = dma.hbm_to_vmem [thread:$0]  %s1, 8192, %s35, [#allocation8], 512, 512, 32
    $region9: #{tpu_custom_call.1} parent=1 // pred_fallthru
      _
    // Predicated region
    $region10: #{tpu_custom_call.1} parent=1 // pred_check
      _
    $region11: #{tpu_custom_call.1} parent=1 // pred_check_branch
      %42 = sbr.rel (0) target = $region13
    $region12: #{tpu_custom_call.1} parent=1 // pred_region
      %s44 = ssub.s32 128, 128
      %45 = vsyncadd [#allocation8], %s44
      %s47 = sshll.u32 [#allocation9], 4
      %s48 = int_to_ptr.vmem [resolvable:$true] %s47
      %50 = dma.hbm_to_vmem [thread:$0]  %s2, 128, %s48, [#allocation8]
    $region13: #{tpu_custom_call.1} parent=1 // pred_fallthru
      _
    // Predicated region
    $region14: #{tpu_custom_call.1} parent=1 // pred_check
      _
    $region15: #{tpu_custom_call.1} parent=1 // pred_check_branch
      %52 = sbr.rel (0) target = $region17
    $region16: #{tpu_custom_call.1} parent=1 // pred_region
      %s54 = ssub.s32 128, 128
      %55 = vsyncadd [#allocation11], %s54
      %s57 = sshll.u32 [#allocation10], 4
      %s58 = int_to_ptr.vmem [resolvable:$true] %s57
      %60 = dma.hbm_to_vmem [thread:$0]  %s3, 128, %s58, [#allocation11]
    $region17: #{tpu_custom_call.1} parent=1 // pred_fallthru
      _
    // Predicated region
    $region18: #{tpu_custom_call.1} parent=1 // pred_check
      _
    $region19: #{tpu_custom_call.1} parent=1 // pred_check_branch
      %62 = sbr.rel (0) target = $region21
    $region20: #{tpu_custom_call.1} parent=1 // pred_region
      %63 = dma.done [#allocation5], 4096
    $region21: #{tpu_custom_call.1} parent=1 // pred_fallthru
      _
    // Predicated region
    $region22: #{tpu_custom_call.1} parent=1 // pred_check
      _
    $region23: #{tpu_custom_call.1} parent=1 // pred_check_branch
      %65 = sbr.rel (0) target = $region25
    $region24: #{tpu_custom_call.1} parent=1 // pred_region
      %66 = dma.done [#allocation8], 8192
    $region25: #{tpu_custom_call.1} parent=1 // pred_fallthru
      _
    // Predicated region
    $region26: #{tpu_custom_call.1} parent=1 // pred_check
      _
    $region27: #{tpu_custom_call.1} parent=1 // pred_check_branch
      %68 = sbr.rel (0) target = $region29
    $region28: #{tpu_custom_call.1} parent=1 // pred_region
      %69 = dma.done [#allocation8], 128
    $region29: #{tpu_custom_call.1} parent=1 // pred_fallthru
      _
    // Predicated region
    $region30: #{tpu_custom_call.1} parent=1 // pred_check
      _
    $region31: #{tpu_custom_call.1} parent=1 // pred_check_branch
      %71 = sbr.rel (0) target = $region33
    $region32: #{tpu_custom_call.1} parent=1 // pred_region
      %72 = dma.done [#allocation11], 128
    $region33: #{tpu_custom_call.1} parent=1 // pred_fallthru
      _
    %p73 = scmp.eq.s32.totalorder 0, 0
    // Predicated region
    $region34: #{tpu_custom_call.1} parent=1 // pred_check
      %p74 = pneg %p73
    $region35: #{tpu_custom_call.1} parent=1 // pred_check_branch
      %76 = sbr.rel (%p74) target = $region37
    $region36: #{tpu_custom_call.1} parent=1 // pred_region
      %v77 = vld [vmem:[#allocation9] sm:$0xff]
      %78 = vst [vmem:[#allocation2] sm:$0xff] %v77
      %v79 = vld [vmem:[#allocation10] sm:$0xff]
      %80 = vst [vmem:[#allocation3] sm:$0xff] %v79
    $region37: #{tpu_custom_call.1} parent=1 // pred_fallthru
      _
    %v81 = vld [vmem:[#allocation7] sm:$0xff]
    %v82 = vld [vmem:[#allocation7 + $0x8] sm:$0xff]
    %v83 = vld [vmem:[#allocation7 + $0x10] sm:$0xff]
    %v84 = vld [vmem:[#allocation7 + $0x18] sm:$0xff]
    %v85 = vld [vmem:[#allocation7 + $0x20] sm:$0xff]
    %v86 = vld [vmem:[#allocation7 + $0x28] sm:$0xff]
    %v87 = vld [vmem:[#allocation7 + $0x30] sm:$0xff]
    %v88 = vld [vmem:[#allocation7 + $0x38] sm:$0xff]
    %v89 = vld [vmem:[#allocation7 + $0x40] sm:$0xff]
    %v90 = vld [vmem:[#allocation7 + $0x48] sm:$0xff]
    %v91 = vld [vmem:[#allocation7 + $0x50] sm:$0xff]
    %v92 = vld [vmem:[#allocation7 + $0x58] sm:$0xff]
    %v93 = vld [vmem:[#allocation7 + $0x60] sm:$0xff]
    %v94 = vld [vmem:[#allocation7 + $0x68] sm:$0xff]
    %v95 = vld [vmem:[#allocation7 + $0x70] sm:$0xff]
    %v96 = vld [vmem:[#allocation7 + $0x78] sm:$0xff]
    %v97 = vld [vmem:[#allocation7 + $0x80] sm:$0xff]
    %v98 = vld [vmem:[#allocation7 + $0x88] sm:$0xff]
    %v99 = vld [vmem:[#allocation7 + $0x90] sm:$0xff]
    %v100 = vld [vmem:[#allocation7 + $0x98] sm:$0xff]
    %v101 = vld [vmem:[#allocation7 + $0xa0] sm:$0xff]
    %v102 = vld [vmem:[#allocation7 + $0xa8] sm:$0xff]
    %v103 = vld [vmem:[#allocation7 + $0xb0] sm:$0xff]
    %v104 = vld [vmem:[#allocation7 + $0xb8] sm:$0xff]
    %v105 = vld [vmem:[#allocation7 + $0xc0] sm:$0xff]
    %v106 = vld [vmem:[#allocation7 + $0xc8] sm:$0xff]
    %v107 = vld [vmem:[#allocation7 + $0xd0] sm:$0xff]
    %v108 = vld [vmem:[#allocation7 + $0xd8] sm:$0xff]
    %v109 = vld [vmem:[#allocation7 + $0xe0] sm:$0xff]
    %v110 = vld [vmem:[#allocation7 + $0xe8] sm:$0xff]
    %v111 = vld [vmem:[#allocation7 + $0xf0] sm:$0xff]
    %v112 = vld [vmem:[#allocation7 + $0xf8] sm:$0xff]
    %v113 = vld [vmem:[#allocation7 + $0x100] sm:$0xff]
    %v114 = vld [vmem:[#allocation7 + $0x108] sm:$0xff]
    %v115 = vld [vmem:[#allocation7 + $0x110] sm:$0xff]
    %v116 = vld [vmem:[#allocation7 + $0x118] sm:$0xff]
    %v117 = vld [vmem:[#allocation7 + $0x120] sm:$0xff]
    %v118 = vld [vmem:[#allocation7 + $0x128] sm:$0xff]
    %v119 = vld [vmem:[#allocation7 + $0x130] sm:$0xff]
    %v120 = vld [vmem:[#allocation7 + $0x138] sm:$0xff]
    %v121 = vld [vmem:[#allocation7 + $0x140] sm:$0xff]
    %v122 = vld [vmem:[#allocation7 + $0x148] sm:$0xff]
    %v123 = vld [vmem:[#allocation7 + $0x150] sm:$0xff]
    %v124 = vld [vmem:[#allocation7 + $0x158] sm:$0xff]
    %v125 = vld [vmem:[#allocation7 + $0x160] sm:$0xff]
    %v126 = vld [vmem:[#allocation7 + $0x168] sm:$0xff]
    %v127 = vld [vmem:[#allocation7 + $0x170] sm:$0xff]
    %v128 = vld [vmem:[#allocation7 + $0x178] sm:$0xff]
    %v129 = vld [vmem:[#allocation7 + $0x180] sm:$0xff]
    %v130 = vld [vmem:[#allocation7 + $0x188] sm:$0xff]
    %v131 = vld [vmem:[#allocation7 + $0x190] sm:$0xff]
    %v132 = vld [vmem:[#allocation7 + $0x198] sm:$0xff]
    %v133 = vld [vmem:[#allocation7 + $0x1a0] sm:$0xff]
    %v134 = vld [vmem:[#allocation7 + $0x1a8] sm:$0xff]
    %v135 = vld [vmem:[#allocation7 + $0x1b0] sm:$0xff]
    %v136 = vld [vmem:[#allocation7 + $0x1b8] sm:$0xff]
    %v137 = vld [vmem:[#allocation7 + $0x1c0] sm:$0xff]
    %v138 = vld [vmem:[#allocation7 + $0x1c8] sm:$0xff]
    %v139 = vld [vmem:[#allocation7 + $0x1d0] sm:$0xff]
    %v140 = vld [vmem:[#allocation7 + $0x1d8] sm:$0xff]
    %v141 = vld [vmem:[#allocation7 + $0x1e0] sm:$0xff]
    %v142 = vld [vmem:[#allocation7 + $0x1e8] sm:$0xff]
    %v143 = vld [vmem:[#allocation7 + $0x1f0] sm:$0xff]
    %v144 = vld [vmem:[#allocation7 + $0x1f8] sm:$0xff]
    %s145 = smul.u32 0, 8
    %v146 = vld [vmem:[#allocation2] sm:$0xff]
    %v147 = vld [vmem:[#allocation3] sm:$0xff]
    %v148 = vld [vmem:[#allocation4] sm:$0xff]
    %v149 = vld [vmem:[#allocation4 + $0x8] sm:$0xff]
    %v150 = vld [vmem:[#allocation4 + $0x10] sm:$0xff]
    %v151 = vld [vmem:[#allocation4 + $0x18] sm:$0xff]
    %152 = vmatprep.subr.mxu0 %v142
    %153 = vmatpush1.msra.mxu0 %v141
    %154 = vmatprep.subr.mxu0 %v138
    %155 = vmatpush1.msra.mxu0 %v137
    %156 = vmatprep.subr.mxu0 %v134
    %157 = vmatpush1.msra.mxu0 %v133
    %158 = vmatprep.subr.mxu0 %v130
    %159 = vmatpush1.msra.mxu0 %v129
    %160 = vmatprep.subr.mxu0 %v126
    %161 = vmatpush1.msra.mxu0 %v125
    %162 = vmatprep.subr.mxu0 %v122
    %163 = vmatpush1.msra.mxu0 %v121
    %164 = vmatprep.subr.mxu0 %v118
    %165 = vmatpush1.msra.mxu0 %v117
    %166 = vmatprep.subr.mxu0 %v114
    %167 = vmatpush1.msra.mxu0 %v113
    %168 = vmatprep.subr.mxu0 %v110
    %169 = vmatpush1.msra.mxu0 %v109
    %170 = vmatprep.subr.mxu0 %v106
    %171 = vmatpush1.msra.mxu0 %v105
    %172 = vmatprep.subr.mxu0 %v102
    %173 = vmatpush1.msra.mxu0 %v101
    %174 = vmatprep.subr.mxu0 %v98
    %175 = vmatpush1.msra.mxu0 %v97
    %176 = vmatprep.subr.mxu0 %v94
    %177 = vmatpush1.msra.mxu0 %v93
    %178 = vmatprep.subr.mxu0 %v90
    %179 = vmatpush1.msra.mxu0 %v89
    %180 = vmatprep.subr.mxu0 %v86
    %181 = vmatpush1.msra.mxu0 %v85
    %182 = vmatprep.subr.mxu0 %v82
    %183 = vmatpush1.msra.mxu0 %v81
    %184 = vmatprep.subr.mxu0 0.0
    %185 = vmatpush2.msra.mxu0 0.0
    %186 = vmatprep.subr.mxu0 0.0
    %187 = vmatpush2.msra.mxu0 0.0
    %188 = vmatprep.subr.mxu0 0.0
    %189 = vmatpush2.msra.mxu0 0.0
    %190 = vmatprep.subr.mxu0 0.0
    %191 = vmatpush2.msra.mxu0 0.0
    %192 = vmatprep.subr.mxu0 0.0
    %193 = vmatpush2.msra.mxu0 0.0
    %194 = vmatprep.subr.mxu0 0.0
    %195 = vmatpush2.msra.mxu0 0.0
    %196 = vmatprep.subr.mxu0 0.0
    %197 = vmatpush2.msra.mxu0 0.0
    %198 = vmatprep.subr.mxu0 0.0
    %199 = vmatpush2.msra.mxu0 0.0
    %200 = vmatprep.subr.mxu0 0.0
    %201 = vmatpush2.msra.mxu0 0.0
    %202 = vmatprep.subr.mxu0 0.0
    %203 = vmatpush2.msra.mxu0 0.0
    %204 = vmatprep.subr.mxu0 0.0
    %205 = vmatpush2.msra.mxu0 0.0
    %206 = vmatprep.subr.mxu0 0.0
    %207 = vmatpush2.msra.mxu0 0.0
    %208 = vmatprep.subr.mxu0 0.0
    %209 = vmatpush2.msra.mxu0 0.0
    %210 = vmatprep.subr.mxu0 0.0
    %211 = vmatpush2.msra.mxu0 0.0
    %212 = vmatprep.subr.mxu0 0.0
    %213 = vmatpush2.msra.mxu0 0.0
    %214 = vmatprep.subr.mxu0 0.0
    %215 = vmatpush2.msra.mxu0 0.0
    %216 = vmatprep.mubr.f32.mxu0 0.0
    %217 = vmatmul.mubr.f32.gmra.mxu0 %v146
    %v218 = vpop.f32.mrf.mxu0
    %v219 = vadd.f32 0.0, %v218
    %v220 = vpop.f32.mrf.mxu0
    %v221 = vadd.f32 0.0, %v220
    %222 = vdwg.mxu0
    %223 = vmatprep.subr.mxu0 %v144
    %224 = vmatpush1.msra.mxu0 %v143
    %225 = vmatprep.subr.mxu0 %v140
    %226 = vmatpush1.msra.mxu0 %v139
    %227 = vmatprep.subr.mxu0 %v136
    %228 = vmatpush1.msra.mxu0 %v135
    %229 = vmatprep.subr.mxu0 %v132
    %230 = vmatpush1.msra.mxu0 %v131
    %231 = vmatprep.subr.mxu0 %v128
    %232 = vmatpush1.msra.mxu0 %v127
    %233 = vmatprep.subr.mxu0 %v124
    %234 = vmatpush1.msra.mxu0 %v123
    %235 = vmatprep.subr.mxu0 %v120
    %236 = vmatpush1.msra.mxu0 %v119
    %237 = vmatprep.subr.mxu0 %v116
    %238 = vmatpush1.msra.mxu0 %v115
    %239 = vmatprep.subr.mxu0 %v112
    %240 = vmatpush1.msra.mxu0 %v111
    %241 = vmatprep.subr.mxu0 %v108
    %242 = vmatpush1.msra.mxu0 %v107
    %243 = vmatprep.subr.mxu0 %v104
    %244 = vmatpush1.msra.mxu0 %v103
    %245 = vmatprep.subr.mxu0 %v100
    %246 = vmatpush1.msra.mxu0 %v99
    %247 = vmatprep.subr.mxu0 %v96
    %248 = vmatpush1.msra.mxu0 %v95
    %249 = vmatprep.subr.mxu0 %v92
    %250 = vmatpush1.msra.mxu0 %v91
    %251 = vmatprep.subr.mxu0 %v88
    %252 = vmatpush1.msra.mxu0 %v87
    %253 = vmatprep.subr.mxu0 %v84
    %254 = vmatpush1.msra.mxu0 %v83
    %255 = vmatprep.subr.mxu0 0.0
    %256 = vmatpush2.msra.mxu0 0.0
    %257 = vmatprep.subr.mxu0 0.0
    %258 = vmatpush2.msra.mxu0 0.0
    %259 = vmatprep.subr.mxu0 0.0
    %260 = vmatpush2.msra.mxu0 0.0
    %261 = vmatprep.subr.mxu0 0.0
    %262 = vmatpush2.msra.mxu0 0.0
    %263 = vmatprep.subr.mxu0 0.0
    %264 = vmatpush2.msra.mxu0 0.0
    %265 = vmatprep.subr.mxu0 0.0
    %266 = vmatpush2.msra.mxu0 0.0
    %267 = vmatprep.subr.mxu0 0.0
    %268 = vmatpush2.msra.mxu0 0.0
    %269 = vmatprep.subr.mxu0 0.0
    %270 = vmatpush2.msra.mxu0 0.0
    %271 = vmatprep.subr.mxu0 0.0
    %272 = vmatpush2.msra.mxu0 0.0
    %273 = vmatprep.subr.mxu0 0.0
    %274 = vmatpush2.msra.mxu0 0.0
    %275 = vmatprep.subr.mxu0 0.0
    %276 = vmatpush2.msra.mxu0 0.0
    %277 = vmatprep.subr.mxu0 0.0
    %278 = vmatpush2.msra.mxu0 0.0
    %279 = vmatprep.subr.mxu0 0.0
    %280 = vmatpush2.msra.mxu0 0.0
    %281 = vmatprep.subr.mxu0 0.0
    %282 = vmatpush2.msra.mxu0 0.0
    %283 = vmatprep.subr.mxu0 0.0
    %284 = vmatpush2.msra.mxu0 0.0
    %285 = vmatprep.subr.mxu0 0.0
    %286 = vmatpush2.msra.mxu0 0.0
    %287 = vmatprep.mubr.f32.mxu0 0.0
    %288 = vmatmul.mubr.f32.gmra.mxu0 %v146
    %v289 = vpop.f32.mrf.mxu0
    %v290 = vadd.f32 0.0, %v289
    %v291 = vpop.f32.mrf.mxu0
    %v292 = vadd.f32 0.0, %v291
    %293 = vdwg.mxu0
    %v294 = vadd.f32 %v148, %v219
    %v295 = vadd.f32 %v149, %v221
    %v296 = vadd.f32 %v150, %v290
    %v297 = vadd.f32 %v151, %v292
    %v298 = vmul.f32 %v294, 0.5
    %v299 = vmul.f32 %v295, 0.5
    %v300 = vmul.f32 %v296, 0.5
    %v301 = vtanh.pop %v298
    %v302 = vtanh.pop %v299
    %v303 = vtanh.pop %v300
    %v304 = vmul.f32 %v301, 0.5
    %v305 = vmul.f32 %v302, 0.5
    %v306 = vmul.f32 %v303, 0.5
    %v307 = vadd.f32 %v304, 0.5
    %v308 = vadd.f32 %v305, 0.5
    %v309 = vadd.f32 %v306, 0.5
    %v310 = vtanh.pop %v297
    %v311 = vmul.f32 %v308, %v147
    %v312 = vmul.f32 %v307, %v310
    %v313 = vadd.f32 %v311, %v312
    %v314 = vtanh.pop %v313
    %v315 = vmul.f32 %v309, %v314
    %316 = vst [vmem:[#allocation12] sm:$0xff] %v315
    %p317 = scmp.eq.s32.totalorder %s145, 7
    // Predicated region
    $region38: #{tpu_custom_call.1} parent=1 // pred_check
      %p318 = pneg %p317
    $region39: #{tpu_custom_call.1} parent=1 // pred_check_branch
      %320 = sbr.rel (%p318) target = $region41
    $region40: #{tpu_custom_call.1} parent=1 // pred_region
      %321 = vst [vmem:[#allocation13] sm:$0xff] %v315
      %322 = vst [vmem:[#allocation15] sm:$0xff] %v313
    $region41: #{tpu_custom_call.1} parent=1 // pred_fallthru
      _
    %s323 = scalar_lea.vmem [#allocation4], 32
    %v324 = vld [vmem:[%s323] sm:$0xff]
    %v325 = vld [vmem:[%s323 + $0x8] sm:$0xff]
    %v326 = vld [vmem:[%s323 + $0x10] sm:$0xff]
    %v327 = vld [vmem:[%s323 + $0x18] sm:$0xff]
    %328 = vmatprep.subr.mxu0 %v142
    %329 = vmatpush1.msra.mxu0 %v141
    %330 = vmatprep.subr.mxu0 %v138
    %331 = vmatpush1.msra.mxu0 %v137
    %332 = vmatprep.subr.mxu0 %v134
    %333 = vmatpush1.msra.mxu0 %v133
    %334 = vmatprep.subr.mxu0 %v130
    %335 = vmatpush1.msra.mxu0 %v129
    %336 = vmatprep.subr.mxu0 %v126
    %337 = vmatpush1.msra.mxu0 %v125
    %338 = vmatprep.subr.mxu0 %v122
    %339 = vmatpush1.msra.mxu0 %v121
    %340 = vmatprep.subr.mxu0 %v118
    %341 = vmatpush1.msra.mxu0 %v117
    %342 = vmatprep.subr.mxu0 %v114
    %343 = vmatpush1.msra.mxu0 %v113
    %344 = vmatprep.subr.mxu0 %v110
    %345 = vmatpush1.msra.mxu0 %v109
    %346 = vmatprep.subr.mxu0 %v106
    %347 = vmatpush1.msra.mxu0 %v105
    %348 = vmatprep.subr.mxu0 %v102
    %349 = vmatpush1.msra.mxu0 %v101
    %350 = vmatprep.subr.mxu0 %v98
    %351 = vmatpush1.msra.mxu0 %v97
    %352 = vmatprep.subr.mxu0 %v94
    %353 = vmatpush1.msra.mxu0 %v93
    %354 = vmatprep.subr.mxu0 %v90
    %355 = vmatpush1.msra.mxu0 %v89
    %356 = vmatprep.subr.mxu0 %v86
    %357 = vmatpush1.msra.mxu0 %v85
    %358 = vmatprep.subr.mxu0 %v82
    %359 = vmatpush1.msra.mxu0 %v81
    %360 = vmatprep.subr.mxu0 0.0
    %361 = vmatpush2.msra.mxu0 0.0
    %362 = vmatprep.subr.mxu0 0.0
    %363 = vmatpush2.msra.mxu0 0.0
    %364 = vmatprep.subr.mxu0 0.0
    %365 = vmatpush2.msra.mxu0 0.0
    %366 = vmatprep.subr.mxu0 0.0
    %367 = vmatpush2.msra.mxu0 0.0
    %368 = vmatprep.subr.mxu0 0.0
    %369 = vmatpush2.msra.mxu0 0.0
    %370 = vmatprep.subr.mxu0 0.0
    %371 = vmatpush2.msra.mxu0 0.0
    %372 = vmatprep.subr.mxu0 0.0
    %373 = vmatpush2.msra.mxu0 0.0
    %374 = vmatprep.subr.mxu0 0.0
    %375 = vmatpush2.msra.mxu0 0.0
    %376 = vmatprep.subr.mxu0 0.0
    %377 = vmatpush2.msra.mxu0 0.0
    %378 = vmatprep.subr.mxu0 0.0
    %379 = vmatpush2.msra.mxu0 0.0
    %380 = vmatprep.subr.mxu0 0.0
    %381 = vmatpush2.msra.mxu0 0.0
    %382 = vmatprep.subr.mxu0 0.0
    %383 = vmatpush2.msra.mxu0 0.0
    %384 = vmatprep.subr.mxu0 0.0
    %385 = vmatpush2.msra.mxu0 0.0
    %386 = vmatprep.subr.mxu0 0.0
    %387 = vmatpush2.msra.mxu0 0.0
    %388 = vmatprep.subr.mxu0 0.0
    %389 = vmatpush2.msra.mxu0 0.0
    %390 = vmatprep.subr.mxu0 0.0
    %391 = vmatpush2.msra.mxu0 0.0
    %392 = vmatprep.mubr.f32.mxu0 0.0
    %393 = vmatmul.mubr.f32.gmra.mxu0 %v315
    %v394 = vpop.f32.mrf.mxu0
    %v395 = vadd.f32 0.0, %v394
    %v396 = vpop.f32.mrf.mxu0
    %v397 = vadd.f32 0.0, %v396
    %398 = vdwg.mxu0
    %399 = vmatprep.subr.mxu0 %v144
    %400 = vmatpush1.msra.mxu0 %v143
    %401 = vmatprep.subr.mxu0 %v140
    %402 = vmatpush1.msra.mxu0 %v139
    %403 = vmatprep.subr.mxu0 %v136
    %404 = vmatpush1.msra.mxu0 %v135
    %405 = vmatprep.subr.mxu0 %v132
    %406 = vmatpush1.msra.mxu0 %v131
    %407 = vmatprep.subr.mxu0 %v128
    %408 = vmatpush1.msra.mxu0 %v127
    %409 = vmatprep.subr.mxu0 %v124
    %410 = vmatpush1.msra.mxu0 %v123
    %411 = vmatprep.subr.mxu0 %v120
    %412 = vmatpush1.msra.mxu0 %v119
    %413 = vmatprep.subr.mxu0 %v116
    %414 = vmatpush1.msra.mxu0 %v115
    %415 = vmatprep.subr.mxu0 %v112
    %416 = vmatpush1.msra.mxu0 %v111
    %417 = vmatprep.subr.mxu0 %v108
    %418 = vmatpush1.msra.mxu0 %v107
    %419 = vmatprep.subr.mxu0 %v104
    %420 = vmatpush1.msra.mxu0 %v103
    %421 = vmatprep.subr.mxu0 %v100
    %422 = vmatpush1.msra.mxu0 %v99
    %423 = vmatprep.subr.mxu0 %v96
    %424 = vmatpush1.msra.mxu0 %v95
    %425 = vmatprep.subr.mxu0 %v92
    %426 = vmatpush1.msra.mxu0 %v91
    %427 = vmatprep.subr.mxu0 %v88
    %428 = vmatpush1.msra.mxu0 %v87
    %429 = vmatprep.subr.mxu0 %v84
    %430 = vmatpush1.msra.mxu0 %v83
    %431 = vmatprep.subr.mxu0 0.0
    %432 = vmatpush2.msra.mxu0 0.0
    %433 = vmatprep.subr.mxu0 0.0
    %434 = vmatpush2.msra.mxu0 0.0
    %435 = vmatprep.subr.mxu0 0.0
    %436 = vmatpush2.msra.mxu0 0.0
    %437 = vmatprep.subr.mxu0 0.0
    %438 = vmatpush2.msra.mxu0 0.0
    %439 = vmatprep.subr.mxu0 0.0
    %440 = vmatpush2.msra.mxu0 0.0
    %441 = vmatprep.subr.mxu0 0.0
    %442 = vmatpush2.msra.mxu0 0.0
    %443 = vmatprep.subr.mxu0 0.0
    %444 = vmatpush2.msra.mxu0 0.0
    %445 = vmatprep.subr.mxu0 0.0
    %446 = vmatpush2.msra.mxu0 0.0
    %447 = vmatprep.subr.mxu0 0.0
    %448 = vmatpush2.msra.mxu0 0.0
    %449 = vmatprep.subr.mxu0 0.0
    %450 = vmatpush2.msra.mxu0 0.0
    %451 = vmatprep.subr.mxu0 0.0
    %452 = vmatpush2.msra.mxu0 0.0
    %453 = vmatprep.subr.mxu0 0.0
    %454 = vmatpush2.msra.mxu0 0.0
    %455 = vmatprep.subr.mxu0 0.0
    %456 = vmatpush2.msra.mxu0 0.0
    %457 = vmatprep.subr.mxu0 0.0
    %458 = vmatpush2.msra.mxu0 0.0
    %459 = vmatprep.subr.mxu0 0.0
    %460 = vmatpush2.msra.mxu0 0.0
    %461 = vmatprep.subr.mxu0 0.0
    %462 = vmatpush2.msra.mxu0 0.0
    %463 = vmatprep.mubr.f32.mxu0 0.0
    %464 = vmatmul.mubr.f32.gmra.mxu0 %v315
    %v465 = vpop.f32.mrf.mxu0
    %v466 = vadd.f32 0.0, %v465
    %v467 = vpop.f32.mrf.mxu0
    %v468 = vadd.f32 0.0, %v467
    %469 = vdwg.mxu0
    %v470 = vadd.f32 %v324, %v395
    %v471 = vadd.f32 %v325, %v397
    %v472 = vadd.f32 %v326, %v466
    %v473 = vadd.f32 %v327, %v468
    %v474 = vmul.f32 %v470, 0.5
    %v475 = vmul.f32 %v471, 0.5
    %v476 = vmul.f32 %v472, 0.5
    %v477 = vtanh.pop %v474
    %v478 = vtanh.pop %v475
    %v479 = vtanh.pop %v476
    %v480 = vmul.f32 %v477, 0.5
    %v481 = vmul.f32 %v478, 0.5
    %v482 = vmul.f32 %v479, 0.5
    %v483 = vadd.f32 %v480, 0.5
    %v484 = vadd.f32 %v481, 0.5
    %v485 = vadd.f32 %v482, 0.5
    %v486 = vtanh.pop %v473
    %v487 = vmul.f32 %v484, %v313
    %v488 = vmul.f32 %v483, %v486
    %v489 = vadd.f32 %v487, %v488
    %v490 = vtanh.pop %v489
    %v491 = vmul.f32 %v485, %v490
    %s492 = scalar_lea.vmem [#allocation12], 8
    %493 = vst [vmem:[%s492] sm:$0xff] %v491
    %s494 = sadd.s32 %s145, 1
    %p495 = scmp.eq.s32.totalorder %s494, 7
    // Predicated region
    $region42: #{tpu_custom_call.1} parent=1 // pred_check
      %p496 = pneg %p495
    $region43: #{tpu_custom_call.1} parent=1 // pred_check_branch
      %498 = sbr.rel (%p496) target = $region45
    $region44: #{tpu_custom_call.1} parent=1 // pred_region
      %499 = vst [vmem:[#allocation13] sm:$0xff] %v491
      %500 = vst [vmem:[#allocation15] sm:$0xff] %v489
    $region45: #{tpu_custom_call.1} parent=1 // pred_fallthru
      _
    %s501 = scalar_lea.vmem [#allocation4], 64
    %v502 = vld [vmem:[%s501] sm:$0xff]
    %v503 = vld [vmem:[%s501 + $0x8] sm:$0xff]
    %v504 = vld [vmem:[%s501 + $0x10] sm:$0xff]
    %v505 = vld [vmem:[%s501 + $0x18] sm:$0xff]
    %506 = vmatprep.subr.mxu0 %v142
    %507 = vmatpush1.msra.mxu0 %v141
    %508 = vmatprep.subr.mxu0 %v138
    %509 = vmatpush1.msra.mxu0 %v137
    %510 = vmatprep.subr.mxu0 %v134
    %511 = vmatpush1.msra.mxu0 %v133
    %512 = vmatprep.subr.mxu0 %v130
    %513 = vmatpush1.msra.mxu0 %v129
    %514 = vmatprep.subr.mxu0 %v126
    %515 = vmatpush1.msra.mxu0 %v125
    %516 = vmatprep.subr.mxu0 %v122
    %517 = vmatpush1.msra.mxu0 %v121
    %518 = vmatprep.subr.mxu0 %v118
    %519 = vmatpush1.msra.mxu0 %v117
    %520 = vmatprep.subr.mxu0 %v114
    %521 = vmatpush1.msra.mxu0 %v113
    %522 = vmatprep.subr.mxu0 %v110
    %523 = vmatpush1.msra.mxu0 %v109
    %524 = vmatprep.subr.mxu0 %v106
    %525 = vmatpush1.msra.mxu0 %v105
    %526 = vmatprep.subr.mxu0 %v102
    %527 = vmatpush1.msra.mxu0 %v101
    %528 = vmatprep.subr.mxu0 %v98
    %529 = vmatpush1.msra.mxu0 %v97
    %530 = vmatprep.subr.mxu0 %v94
    %531 = vmatpush1.msra.mxu0 %v93
    %532 = vmatprep.subr.mxu0 %v90
    %533 = vmatpush1.msra.mxu0 %v89
    %534 = vmatprep.subr.mxu0 %v86
    %535 = vmatpush1.msra.mxu0 %v85
    %536 = vmatprep.subr.mxu0 %v82
    %537 = vmatpush1.msra.mxu0 %v81
    %538 = vmatprep.subr.mxu0 0.0
    %539 = vmatpush2.msra.mxu0 0.0
    %540 = vmatprep.subr.mxu0 0.0
    %541 = vmatpush2.msra.mxu0 0.0
    %542 = vmatprep.subr.mxu0 0.0
    %543 = vmatpush2.msra.mxu0 0.0
    %544 = vmatprep.subr.mxu0 0.0
    %545 = vmatpush2.msra.mxu0 0.0
    %546 = vmatprep.subr.mxu0 0.0
    %547 = vmatpush2.msra.mxu0 0.0
    %548 = vmatprep.subr.mxu0 0.0
    %549 = vmatpush2.msra.mxu0 0.0
    %550 = vmatprep.subr.mxu0 0.0
    %551 = vmatpush2.msra.mxu0 0.0
    %552 = vmatprep.subr.mxu0 0.0
    %553 = vmatpush2.msra.mxu0 0.0
    %554 = vmatprep.subr.mxu0 0.0
    %555 = vmatpush2.msra.mxu0 0.0
    %556 = vmatprep.subr.mxu0 0.0
    %557 = vmatpush2.msra.mxu0 0.0
    %558 = vmatprep.subr.mxu0 0.0
    %559 = vmatpush2.msra.mxu0 0.0
    %560 = vmatprep.subr.mxu0 0.0
    %561 = vmatpush2.msra.mxu0 0.0
    %562 = vmatprep.subr.mxu0 0.0
    %563 = vmatpush2.msra.mxu0 0.0
    %564 = vmatprep.subr.mxu0 0.0
    %565 = vmatpush2.msra.mxu0 0.0
    %566 = vmatprep.subr.mxu0 0.0
    %567 = vmatpush2.msra.mxu0 0.0
    %568 = vmatprep.subr.mxu0 0.0
    %569 = vmatpush2.msra.mxu0 0.0
    %570 = vmatprep.mubr.f32.mxu0 0.0
    %571 = vmatmul.mubr.f32.gmra.mxu0 %v491
    %v572 = vpop.f32.mrf.mxu0
    %v573 = vadd.f32 0.0, %v572
    %v574 = vpop.f32.mrf.mxu0
    %v575 = vadd.f32 0.0, %v574
    %576 = vdwg.mxu0
    %577 = vmatprep.subr.mxu0 %v144
    %578 = vmatpush1.msra.mxu0 %v143
    %579 = vmatprep.subr.mxu0 %v140
    %580 = vmatpush1.msra.mxu0 %v139
    %581 = vmatprep.subr.mxu0 %v136
    %582 = vmatpush1.msra.mxu0 %v135
    %583 = vmatprep.subr.mxu0 %v132
    %584 = vmatpush1.msra.mxu0 %v131
    %585 = vmatprep.subr.mxu0 %v128
    %586 = vmatpush1.msra.mxu0 %v127
    %587 = vmatprep.subr.mxu0 %v124
    %588 = vmatpush1.msra.mxu0 %v123
    %589 = vmatprep.subr.mxu0 %v120
    %590 = vmatpush1.msra.mxu0 %v119
    %591 = vmatprep.subr.mxu0 %v116
    %592 = vmatpush1.msra.mxu0 %v115
    %593 = vmatprep.subr.mxu0 %v112
    %594 = vmatpush1.msra.mxu0 %v111
    %595 = vmatprep.subr.mxu0 %v108
    %596 = vmatpush1.msra.mxu0 %v107
    %597 = vmatprep.subr.mxu0 %v104
    %598 = vmatpush1.msra.mxu0 %v103
    %599 = vmatprep.subr.mxu0 %v100
    %600 = vmatpush1.msra.mxu0 %v99
    %601 = vmatprep.subr.mxu0 %v96
    %602 = vmatpush1.msra.mxu0 %v95
    %603 = vmatprep.subr.mxu0 %v92
    %604 = vmatpush1.msra.mxu0 %v91
    %605 = vmatprep.subr.mxu0 %v88
    %606 = vmatpush1.msra.mxu0 %v87
    %607 = vmatprep.subr.mxu0 %v84
    %608 = vmatpush1.msra.mxu0 %v83
    %609 = vmatprep.subr.mxu0 0.0
    %610 = vmatpush2.msra.mxu0 0.0
    %611 = vmatprep.subr.mxu0 0.0
    %612 = vmatpush2.msra.mxu0 0.0
    %613 = vmatprep.subr.mxu0 0.0
    %614 = vmatpush2.msra.mxu0 0.0
    %615 = vmatprep.subr.mxu0 0.0
    %616 = vmatpush2.msra.mxu0 0.0
    %617 = vmatprep.subr.mxu0 0.0
    %618 = vmatpush2.msra.mxu0 0.0
    %619 = vmatprep.subr.mxu0 0.0
    %620 = vmatpush2.msra.mxu0 0.0
    %621 = vmatprep.subr.mxu0 0.0
    %622 = vmatpush2.msra.mxu0 0.0
    %623 = vmatprep.subr.mxu0 0.0
    %624 = vmatpush2.msra.mxu0 0.0
    %625 = vmatprep.subr.mxu0 0.0
    %626 = vmatpush2.msra.mxu0 0.0
    %627 = vmatprep.subr.mxu0 0.0
    %628 = vmatpush2.msra.mxu0 0.0
    %629 = vmatprep.subr.mxu0 0.0
    %630 = vmatpush2.msra.mxu0 0.0
    %631 = vmatprep.subr.mxu0 0.0
    %632 = vmatpush2.msra.mxu0 0.0
    %633 = vmatprep.subr.mxu0 0.0
    %634 = vmatpush2.msra.mxu0 0.0
    %635 = vmatprep.subr.mxu0 0.0
    %636 = vmatpush2.msra.mxu0 0.0
    %637 = vmatprep.subr.mxu0 0.0
    %638 = vmatpush2.msra.mxu0 0.0
    %639 = vmatprep.subr.mxu0 0.0
    %640 = vmatpush2.msra.mxu0 0.0
    %641 = vmatprep.mubr.f32.mxu0 0.0
    %642 = vmatmul.mubr.f32.gmra.mxu0 %v491
    %v643 = vpop.f32.mrf.mxu0
    %v644 = vadd.f32 0.0, %v643
    %v645 = vpop.f32.mrf.mxu0
    %v646 = vadd.f32 0.0, %v645
    %647 = vdwg.mxu0
    %v648 = vadd.f32 %v502, %v573
    %v649 = vadd.f32 %v503, %v575
    %v650 = vadd.f32 %v504, %v644
    %v651 = vadd.f32 %v505, %v646
    %v652 = vmul.f32 %v648, 0.5
    %v653 = vmul.f32 %v649, 0.5
    %v654 = vmul.f32 %v650, 0.5
    %v655 = vtanh.pop %v652
    %v656 = vtanh.pop %v653
    %v657 = vtanh.pop %v654
    %v658 = vmul.f32 %v655, 0.5
    %v659 = vmul.f32 %v656, 0.5
    %v660 = vmul.f32 %v657, 0.5
    %v661 = vadd.f32 %v658, 0.5
    %v662 = vadd.f32 %v659, 0.5
    %v663 = vadd.f32 %v660, 0.5
    %v664 = vtanh.pop %v651
    %v665 = vmul.f32 %v662, %v489
    %v666 = vmul.f32 %v661, %v664
    %v667 = vadd.f32 %v665, %v666
    %v668 = vtanh.pop %v667
    %v669 = vmul.f32 %v663, %v668
    %s670 = scalar_lea.vmem [#allocation12], 16
    %671 = vst [vmem:[%s670] sm:$0xff] %v669
    %s672 = sadd.s32 %s145, 2
    %p673 = scmp.eq.s32.totalorder %s672, 7
    // Predicated region
    $region46: #{tpu_custom_call.1} parent=1 // pred_check
      %p674 = pneg %p673
    $region47: #{tpu_custom_call.1} parent=1 // pred_check_branch
      %676 = sbr.rel (%p674) target = $region49
    $region48: #{tpu_custom_call.1} parent=1 // pred_region
      %677 = vst [vmem:[#allocation13] sm:$0xff] %v669
      %678 = vst [vmem:[#allocation15] sm:$0xff] %v667
    $region49: #{tpu_custom_call.1} parent=1 // pred_fallthru
      _
    %s679 = scalar_lea.vmem [#allocation4], 96
    %v680 = vld [vmem:[%s679] sm:$0xff]
    %v681 = vld [vmem:[%s679 + $0x8] sm:$0xff]
    %v682 = vld [vmem:[%s679 + $0x10] sm:$0xff]
    %v683 = vld [vmem:[%s679 + $0x18] sm:$0xff]
    %684 = vmatprep.subr.mxu0 %v142
    %685 = vmatpush1.msra.mxu0 %v141
    %686 = vmatprep.subr.mxu0 %v138
    %687 = vmatpush1.msra.mxu0 %v137
    %688 = vmatprep.subr.mxu0 %v134
    %689 = vmatpush1.msra.mxu0 %v133
    %690 = vmatprep.subr.mxu0 %v130
    %691 = vmatpush1.msra.mxu0 %v129
    %692 = vmatprep.subr.mxu0 %v126
    %693 = vmatpush1.msra.mxu0 %v125
    %694 = vmatprep.subr.mxu0 %v122
    %695 = vmatpush1.msra.mxu0 %v121
    %696 = vmatprep.subr.mxu0 %v118
    %697 = vmatpush1.msra.mxu0 %v117
    %698 = vmatprep.subr.mxu0 %v114
    %699 = vmatpush1.msra.mxu0 %v113
    %700 = vmatprep.subr.mxu0 %v110
    %701 = vmatpush1.msra.mxu0 %v109
    %702 = vmatprep.subr.mxu0 %v106
    %703 = vmatpush1.msra.mxu0 %v105
    %704 = vmatprep.subr.mxu0 %v102
    %705 = vmatpush1.msra.mxu0 %v101
    %706 = vmatprep.subr.mxu0 %v98
    %707 = vmatpush1.msra.mxu0 %v97
    %708 = vmatprep.subr.mxu0 %v94
    %709 = vmatpush1.msra.mxu0 %v93
    %710 = vmatprep.subr.mxu0 %v90
    %711 = vmatpush1.msra.mxu0 %v89
    %712 = vmatprep.subr.mxu0 %v86
    %713 = vmatpush1.msra.mxu0 %v85
    %714 = vmatprep.subr.mxu0 %v82
    %715 = vmatpush1.msra.mxu0 %v81
    %716 = vmatprep.subr.mxu0 0.0
    %717 = vmatpush2.msra.mxu0 0.0
    %718 = vmatprep.subr.mxu0 0.0
    %719 = vmatpush2.msra.mxu0 0.0
    %720 = vmatprep.subr.mxu0 0.0
    %721 = vmatpush2.msra.mxu0 0.0
    %722 = vmatprep.subr.mxu0 0.0
    %723 = vmatpush2.msra.mxu0 0.0
    %724 = vmatprep.subr.mxu0 0.0
    %725 = vmatpush2.msra.mxu0 0.0
    %726 = vmatprep.subr.mxu0 0.0
    %727 = vmatpush2.msra.mxu0 0.0
    %728 = vmatprep.subr.mxu0 0.0
    %729 = vmatpush2.msra.mxu0 0.0
    %730 = vmatprep.subr.mxu0 0.0
    %731 = vmatpush2.msra.mxu0 0.0
    %732 = vmatprep.subr.mxu0 0.0
    %733 = vmatpush2.msra.mxu0 0.0
    %734 = vmatprep.subr.mxu0 0.0
    %735 = vmatpush2.msra.mxu0 0.0
    %736 = vmatprep.subr.mxu0 0.0
    %737 = vmatpush2.msra.mxu0 0.0
    %738 = vmatprep.subr.mxu0 0.0
    %739 = vmatpush2.msra.mxu0 0.0
    %740 = vmatprep.subr.mxu0 0.0
    %741 = vmatpush2.msra.mxu0 0.0
    %742 = vmatprep.subr.mxu0 0.0
    %743 = vmatpush2.msra.mxu0 0.0
    %744 = vmatprep.subr.mxu0 0.0
    %745 = vmatpush2.msra.mxu0 0.0
    %746 = vmatprep.subr.mxu0 0.0
    %747 = vmatpush2.msra.mxu0 0.0
    %748 = vmatprep.mubr.f32.mxu0 0.0
    %749 = vmatmul.mubr.f32.gmra.mxu0 %v669
    %v750 = vpop.f32.mrf.mxu0
    %v751 = vadd.f32 0.0, %v750
    %v752 = vpop.f32.mrf.mxu0
    %v753 = vadd.f32 0.0, %v752
    %754 = vdwg.mxu0
    %755 = vmatprep.subr.mxu0 %v144
    %756 = vmatpush1.msra.mxu0 %v143
    %757 = vmatprep.subr.mxu0 %v140
    %758 = vmatpush1.msra.mxu0 %v139
    %759 = vmatprep.subr.mxu0 %v136
    %760 = vmatpush1.msra.mxu0 %v135
    %761 = vmatprep.subr.mxu0 %v132
    %762 = vmatpush1.msra.mxu0 %v131
    %763 = vmatprep.subr.mxu0 %v128
    %764 = vmatpush1.msra.mxu0 %v127
    %765 = vmatprep.subr.mxu0 %v124
    %766 = vmatpush1.msra.mxu0 %v123
    %767 = vmatprep.subr.mxu0 %v120
    %768 = vmatpush1.msra.mxu0 %v119
    %769 = vmatprep.subr.mxu0 %v116
    %770 = vmatpush1.msra.mxu0 %v115
    %771 = vmatprep.subr.mxu0 %v112
    %772 = vmatpush1.msra.mxu0 %v111
    %773 = vmatprep.subr.mxu0 %v108
    %774 = vmatpush1.msra.mxu0 %v107
    %775 = vmatprep.subr.mxu0 %v104
    %776 = vmatpush1.msra.mxu0 %v103
    %777 = vmatprep.subr.mxu0 %v100
    %778 = vmatpush1.msra.mxu0 %v99
    %779 = vmatprep.subr.mxu0 %v96
    %780 = vmatpush1.msra.mxu0 %v95
    %781 = vmatprep.subr.mxu0 %v92
    %782 = vmatpush1.msra.mxu0 %v91
    %783 = vmatprep.subr.mxu0 %v88
    %784 = vmatpush1.msra.mxu0 %v87
    %785 = vmatprep.subr.mxu0 %v84
    %786 = vmatpush1.msra.mxu0 %v83
    %787 = vmatprep.subr.mxu0 0.0
    %788 = vmatpush2.msra.mxu0 0.0
    %789 = vmatprep.subr.mxu0 0.0
    %790 = vmatpush2.msra.mxu0 0.0
    %791 = vmatprep.subr.mxu0 0.0
    %792 = vmatpush2.msra.mxu0 0.0
    %793 = vmatprep.subr.mxu0 0.0
    %794 = vmatpush2.msra.mxu0 0.0
    %795 = vmatprep.subr.mxu0 0.0
    %796 = vmatpush2.msra.mxu0 0.0
    %797 = vmatprep.subr.mxu0 0.0
    %798 = vmatpush2.msra.mxu0 0.0
    %799 = vmatprep.subr.mxu0 0.0
    %800 = vmatpush2.msra.mxu0 0.0
    %801 = vmatprep.subr.mxu0 0.0
    %802 = vmatpush2.msra.mxu0 0.0
    %803 = vmatprep.subr.mxu0 0.0
    %804 = vmatpush2.msra.mxu0 0.0
    %805 = vmatprep.subr.mxu0 0.0
    %806 = vmatpush2.msra.mxu0 0.0
    %807 = vmatprep.subr.mxu0 0.0
    %808 = vmatpush2.msra.mxu0 0.0
    %809 = vmatprep.subr.mxu0 0.0
    %810 = vmatpush2.msra.mxu0 0.0
    %811 = vmatprep.subr.mxu0 0.0
    %812 = vmatpush2.msra.mxu0 0.0
    %813 = vmatprep.subr.mxu0 0.0
    %814 = vmatpush2.msra.mxu0 0.0
    %815 = vmatprep.subr.mxu0 0.0
    %816 = vmatpush2.msra.mxu0 0.0
    %817 = vmatprep.subr.mxu0 0.0
    %818 = vmatpush2.msra.mxu0 0.0
    %819 = vmatprep.mubr.f32.mxu0 0.0
    %820 = vmatmul.mubr.f32.gmra.mxu0 %v669
    %v821 = vpop.f32.mrf.mxu0
    %v822 = vadd.f32 0.0, %v821
    %v823 = vpop.f32.mrf.mxu0
    %v824 = vadd.f32 0.0, %v823
    %825 = vdwg.mxu0
    %v826 = vadd.f32 %v680, %v751
    %v827 = vadd.f32 %v681, %v753
    %v828 = vadd.f32 %v682, %v822
    %v829 = vadd.f32 %v683, %v824
    %v830 = vmul.f32 %v826, 0.5
    %v831 = vmul.f32 %v827, 0.5
    %v832 = vmul.f32 %v828, 0.5
    %v833 = vtanh.pop %v830
    %v834 = vtanh.pop %v831
    %v835 = vtanh.pop %v832
    %v836 = vmul.f32 %v833, 0.5
    %v837 = vmul.f32 %v834, 0.5
    %v838 = vmul.f32 %v835, 0.5
    %v839 = vadd.f32 %v836, 0.5
    %v840 = vadd.f32 %v837, 0.5
    %v841 = vadd.f32 %v838, 0.5
    %v842 = vtanh.pop %v829
    %v843 = vmul.f32 %v840, %v667
    %v844 = vmul.f32 %v839, %v842
    %v845 = vadd.f32 %v843, %v844
    %v846 = vtanh.pop %v845
    %v847 = vmul.f32 %v841, %v846
    %s848 = scalar_lea.vmem [#allocation12], 24
    %849 = vst [vmem:[%s848] sm:$0xff] %v847
    %s850 = sadd.s32 %s145, 3
    %p851 = scmp.eq.s32.totalorder %s850, 7
    // Predicated region
    $region50: #{tpu_custom_call.1} parent=1 // pred_check
      %p852 = pneg %p851
    $region51: #{tpu_custom_call.1} parent=1 // pred_check_branch
      %854 = sbr.rel (%p852) target = $region53
    $region52: #{tpu_custom_call.1} parent=1 // pred_region
      %855 = vst [vmem:[#allocation13] sm:$0xff] %v847
      %856 = vst [vmem:[#allocation15] sm:$0xff] %v845
    $region53: #{tpu_custom_call.1} parent=1 // pred_fallthru
      _
    %s857 = scalar_lea.vmem [#allocation4], 128
    %v858 = vld [vmem:[%s857] sm:$0xff]
    %v859 = vld [vmem:[%s857 + $0x8] sm:$0xff]
    %v860 = vld [vmem:[%s857 + $0x10] sm:$0xff]
    %v861 = vld [vmem:[%s857 + $0x18] sm:$0xff]
    %862 = vmatprep.subr.mxu0 %v142
    %863 = vmatpush1.msra.mxu0 %v141
    %864 = vmatprep.subr.mxu0 %v138
    %865 = vmatpush1.msra.mxu0 %v137
    %866 = vmatprep.subr.mxu0 %v134
    %867 = vmatpush1.msra.mxu0 %v133
    %868 = vmatprep.subr.mxu0 %v130
    %869 = vmatpush1.msra.mxu0 %v129
    %870 = vmatprep.subr.mxu0 %v126
    %871 = vmatpush1.msra.mxu0 %v125
    %872 = vmatprep.subr.mxu0 %v122
    %873 = vmatpush1.msra.mxu0 %v121
    %874 = vmatprep.subr.mxu0 %v118
    %875 = vmatpush1.msra.mxu0 %v117
    %876 = vmatprep.subr.mxu0 %v114
    %877 = vmatpush1.msra.mxu0 %v113
    %878 = vmatprep.subr.mxu0 %v110
    %879 = vmatpush1.msra.mxu0 %v109
    %880 = vmatprep.subr.mxu0 %v106
    %881 = vmatpush1.msra.mxu0 %v105
    %882 = vmatprep.subr.mxu0 %v102
    %883 = vmatpush1.msra.mxu0 %v101
    %884 = vmatprep.subr.mxu0 %v98
    %885 = vmatpush1.msra.mxu0 %v97
    %886 = vmatprep.subr.mxu0 %v94
    %887 = vmatpush1.msra.mxu0 %v93
    %888 = vmatprep.subr.mxu0 %v90
    %889 = vmatpush1.msra.mxu0 %v89
    %890 = vmatprep.subr.mxu0 %v86
    %891 = vmatpush1.msra.mxu0 %v85
    %892 = vmatprep.subr.mxu0 %v82
    %893 = vmatpush1.msra.mxu0 %v81
    %894 = vmatprep.subr.mxu0 0.0
    %895 = vmatpush2.msra.mxu0 0.0
    %896 = vmatprep.subr.mxu0 0.0
    %897 = vmatpush2.msra.mxu0 0.0
    %898 = vmatprep.subr.mxu0 0.0
    %899 = vmatpush2.msra.mxu0 0.0
    %900 = vmatprep.subr.mxu0 0.0
    %901 = vmatpush2.msra.mxu0 0.0
    %902 = vmatprep.subr.mxu0 0.0
    %903 = vmatpush2.msra.mxu0 0.0
    %904 = vmatprep.subr.mxu0 0.0
    %905 = vmatpush2.msra.mxu0 0.0
    %906 = vmatprep.subr.mxu0 0.0
    %907 = vmatpush2.msra.mxu0 0.0
    %908 = vmatprep.subr.mxu0 0.0
    %909 = vmatpush2.msra.mxu0 0.0
    %910 = vmatprep.subr.mxu0 0.0
    %911 = vmatpush2.msra.mxu0 0.0
    %912 = vmatprep.subr.mxu0 0.0
    %913 = vmatpush2.msra.mxu0 0.0
    %914 = vmatprep.subr.mxu0 0.0
    %915 = vmatpush2.msra.mxu0 0.0
    %916 = vmatprep.subr.mxu0 0.0
    %917 = vmatpush2.msra.mxu0 0.0
    %918 = vmatprep.subr.mxu0 0.0
    %919 = vmatpush2.msra.mxu0 0.0
    %920 = vmatprep.subr.mxu0 0.0
    %921 = vmatpush2.msra.mxu0 0.0
    %922 = vmatprep.subr.mxu0 0.0
    %923 = vmatpush2.msra.mxu0 0.0
    %924 = vmatprep.subr.mxu0 0.0
    %925 = vmatpush2.msra.mxu0 0.0
    %926 = vmatprep.mubr.f32.mxu0 0.0
    %927 = vmatmul.mubr.f32.gmra.mxu0 %v847
    %v928 = vpop.f32.mrf.mxu0
    %v929 = vadd.f32 0.0, %v928
    %v930 = vpop.f32.mrf.mxu0
    %v931 = vadd.f32 0.0, %v930
    %932 = vdwg.mxu0
    %933 = vmatprep.subr.mxu0 %v144
    %934 = vmatpush1.msra.mxu0 %v143
    %935 = vmatprep.subr.mxu0 %v140
    %936 = vmatpush1.msra.mxu0 %v139
    %937 = vmatprep.subr.mxu0 %v136
    %938 = vmatpush1.msra.mxu0 %v135
    %939 = vmatprep.subr.mxu0 %v132
    %940 = vmatpush1.msra.mxu0 %v131
    %941 = vmatprep.subr.mxu0 %v128
    %942 = vmatpush1.msra.mxu0 %v127
    %943 = vmatprep.subr.mxu0 %v124
    %944 = vmatpush1.msra.mxu0 %v123
    %945 = vmatprep.subr.mxu0 %v120
    %946 = vmatpush1.msra.mxu0 %v119
    %947 = vmatprep.subr.mxu0 %v116
    %948 = vmatpush1.msra.mxu0 %v115
    %949 = vmatprep.subr.mxu0 %v112
    %950 = vmatpush1.msra.mxu0 %v111
    %951 = vmatprep.subr.mxu0 %v108
    %952 = vmatpush1.msra.mxu0 %v107
    %953 = vmatprep.subr.mxu0 %v104
    %954 = vmatpush1.msra.mxu0 %v103
    %955 = vmatprep.subr.mxu0 %v100
    %956 = vmatpush1.msra.mxu0 %v99
    %957 = vmatprep.subr.mxu0 %v96
    %958 = vmatpush1.msra.mxu0 %v95
    %959 = vmatprep.subr.mxu0 %v92
    %960 = vmatpush1.msra.mxu0 %v91
    %961 = vmatprep.subr.mxu0 %v88
    %962 = vmatpush1.msra.mxu0 %v87
    %963 = vmatprep.subr.mxu0 %v84
    %964 = vmatpush1.msra.mxu0 %v83
    %965 = vmatprep.subr.mxu0 0.0
    %966 = vmatpush2.msra.mxu0 0.0
    %967 = vmatprep.subr.mxu0 0.0
    %968 = vmatpush2.msra.mxu0 0.0
    %969 = vmatprep.subr.mxu0 0.0
    %970 = vmatpush2.msra.mxu0 0.0
    %971 = vmatprep.subr.mxu0 0.0
    %972 = vmatpush2.msra.mxu0 0.0
    %973 = vmatprep.subr.mxu0 0.0
    %974 = vmatpush2.msra.mxu0 0.0
    %975 = vmatprep.subr.mxu0 0.0
    %976 = vmatpush2.msra.mxu0 0.0
    %977 = vmatprep.subr.mxu0 0.0
    %978 = vmatpush2.msra.mxu0 0.0
    %979 = vmatprep.subr.mxu0 0.0
    %980 = vmatpush2.msra.mxu0 0.0
    %981 = vmatprep.subr.mxu0 0.0
    %982 = vmatpush2.msra.mxu0 0.0
    %983 = vmatprep.subr.mxu0 0.0
    %984 = vmatpush2.msra.mxu0 0.0
    %985 = vmatprep.subr.mxu0 0.0
    %986 = vmatpush2.msra.mxu0 0.0
    %987 = vmatprep.subr.mxu0 0.0
    %988 = vmatpush2.msra.mxu0 0.0
    %989 = vmatprep.subr.mxu0 0.0
    %990 = vmatpush2.msra.mxu0 0.0
    %991 = vmatprep.subr.mxu0 0.0
    %992 = vmatpush2.msra.mxu0 0.0
    %993 = vmatprep.subr.mxu0 0.0
    %994 = vmatpush2.msra.mxu0 0.0
    %995 = vmatprep.subr.mxu0 0.0
    %996 = vmatpush2.msra.mxu0 0.0
    %997 = vmatprep.mubr.f32.mxu0 0.0
    %998 = vmatmul.mubr.f32.gmra.mxu0 %v847
    %v999 = vpop.f32.mrf.mxu0
    %v1000 = vadd.f32 0.0, %v999
    %v1001 = vpop.f32.mrf.mxu0
    %v1002 = vadd.f32 0.0, %v1001
    %1003 = vdwg.mxu0
    %v1004 = vadd.f32 %v858, %v929
    %v1005 = vadd.f32 %v859, %v931
    %v1006 = vadd.f32 %v860, %v1000
    %v1007 = vadd.f32 %v861, %v1002
    %v1008 = vmul.f32 %v1004, 0.5
    %v1009 = vmul.f32 %v1005, 0.5
    %v1010 = vmul.f32 %v1006, 0.5
    %v1011 = vtanh.pop %v1008
    %v1012 = vtanh.pop %v1009
    %v1013 = vtanh.pop %v1010
    %v1014 = vmul.f32 %v1011, 0.5
    %v1015 = vmul.f32 %v1012, 0.5
    %v1016 = vmul.f32 %v1013, 0.5
    %v1017 = vadd.f32 %v1014, 0.5
    %v1018 = vadd.f32 %v1015, 0.5
    %v1019 = vadd.f32 %v1016, 0.5
    %v1020 = vtanh.pop %v1007
    %v1021 = vmul.f32 %v1018, %v845
    %v1022 = vmul.f32 %v1017, %v1020
    %v1023 = vadd.f32 %v1021, %v1022
    %v1024 = vtanh.pop %v1023
    %v1025 = vmul.f32 %v1019, %v1024
    %s1026 = scalar_lea.vmem [#allocation12], 32
    %1027 = vst [vmem:[%s1026] sm:$0xff] %v1025
    %s1028 = sadd.s32 %s145, 4
    %p1029 = scmp.eq.s32.totalorder %s1028, 7
    // Predicated region
    $region54: #{tpu_custom_call.1} parent=1 // pred_check
      %p1030 = pneg %p1029
    $region55: #{tpu_custom_call.1} parent=1 // pred_check_branch
      %1032 = sbr.rel (%p1030) target = $region57
    $region56: #{tpu_custom_call.1} parent=1 // pred_region
      %1033 = vst [vmem:[#allocation13] sm:$0xff] %v1025
      %1034 = vst [vmem:[#allocation15] sm:$0xff] %v1023
    $region57: #{tpu_custom_call.1} parent=1 // pred_fallthru
      _
    %s1035 = scalar_lea.vmem [#allocation4], 160
    %v1036 = vld [vmem:[%s1035] sm:$0xff]
    %v1037 = vld [vmem:[%s1035 + $0x8] sm:$0xff]
    %v1038 = vld [vmem:[%s1035 + $0x10] sm:$0xff]
    %v1039 = vld [vmem:[%s1035 + $0x18] sm:$0xff]
    %1040 = vmatprep.subr.mxu0 %v142
    %1041 = vmatpush1.msra.mxu0 %v141
    %1042 = vmatprep.subr.mxu0 %v138
    %1043 = vmatpush1.msra.mxu0 %v137
    %1044 = vmatprep.subr.mxu0 %v134
    %1045 = vmatpush1.msra.mxu0 %v133
    %1046 = vmatprep.subr.mxu0 %v130
    %1047 = vmatpush1.msra.mxu0 %v129
    %1048 = vmatprep.subr.mxu0 %v126
    %1049 = vmatpush1.msra.mxu0 %v125
    %1050 = vmatprep.subr.mxu0 %v122
    %1051 = vmatpush1.msra.mxu0 %v121
    %1052 = vmatprep.subr.mxu0 %v118
    %1053 = vmatpush1.msra.mxu0 %v117
    %1054 = vmatprep.subr.mxu0 %v114
    %1055 = vmatpush1.msra.mxu0 %v113
    %1056 = vmatprep.subr.mxu0 %v110
    %1057 = vmatpush1.msra.mxu0 %v109
    %1058 = vmatprep.subr.mxu0 %v106
    %1059 = vmatpush1.msra.mxu0 %v105
    %1060 = vmatprep.subr.mxu0 %v102
    %1061 = vmatpush1.msra.mxu0 %v101
    %1062 = vmatprep.subr.mxu0 %v98
    %1063 = vmatpush1.msra.mxu0 %v97
    %1064 = vmatprep.subr.mxu0 %v94
    %1065 = vmatpush1.msra.mxu0 %v93
    %1066 = vmatprep.subr.mxu0 %v90
    %1067 = vmatpush1.msra.mxu0 %v89
    %1068 = vmatprep.subr.mxu0 %v86
    %1069 = vmatpush1.msra.mxu0 %v85
    %1070 = vmatprep.subr.mxu0 %v82
    %1071 = vmatpush1.msra.mxu0 %v81
    %1072 = vmatprep.subr.mxu0 0.0
    %1073 = vmatpush2.msra.mxu0 0.0
    %1074 = vmatprep.subr.mxu0 0.0
    %1075 = vmatpush2.msra.mxu0 0.0
    %1076 = vmatprep.subr.mxu0 0.0
    %1077 = vmatpush2.msra.mxu0 0.0
    %1078 = vmatprep.subr.mxu0 0.0
    %1079 = vmatpush2.msra.mxu0 0.0
    %1080 = vmatprep.subr.mxu0 0.0
    %1081 = vmatpush2.msra.mxu0 0.0
    %1082 = vmatprep.subr.mxu0 0.0
    %1083 = vmatpush2.msra.mxu0 0.0
    %1084 = vmatprep.subr.mxu0 0.0
    %1085 = vmatpush2.msra.mxu0 0.0
    %1086 = vmatprep.subr.mxu0 0.0
    %1087 = vmatpush2.msra.mxu0 0.0
    %1088 = vmatprep.subr.mxu0 0.0
    %1089 = vmatpush2.msra.mxu0 0.0
    %1090 = vmatprep.subr.mxu0 0.0
    %1091 = vmatpush2.msra.mxu0 0.0
    %1092 = vmatprep.subr.mxu0 0.0
    %1093 = vmatpush2.msra.mxu0 0.0
    %1094 = vmatprep.subr.mxu0 0.0
    %1095 = vmatpush2.msra.mxu0 0.0
    %1096 = vmatprep.subr.mxu0 0.0
    %1097 = vmatpush2.msra.mxu0 0.0
    %1098 = vmatprep.subr.mxu0 0.0
    %1099 = vmatpush2.msra.mxu0 0.0
    %1100 = vmatprep.subr.mxu0 0.0
    %1101 = vmatpush2.msra.mxu0 0.0
    %1102 = vmatprep.subr.mxu0 0.0
    %1103 = vmatpush2.msra.mxu0 0.0
    %1104 = vmatprep.mubr.f32.mxu0 0.0
    %1105 = vmatmul.mubr.f32.gmra.mxu0 %v1025
    %v1106 = vpop.f32.mrf.mxu0
    %v1107 = vadd.f32 0.0, %v1106
    %v1108 = vpop.f32.mrf.mxu0
    %v1109 = vadd.f32 0.0, %v1108
    %1110 = vdwg.mxu0
    %1111 = vmatprep.subr.mxu0 %v144
    %1112 = vmatpush1.msra.mxu0 %v143
    %1113 = vmatprep.subr.mxu0 %v140
    %1114 = vmatpush1.msra.mxu0 %v139
    %1115 = vmatprep.subr.mxu0 %v136
    %1116 = vmatpush1.msra.mxu0 %v135
    %1117 = vmatprep.subr.mxu0 %v132
    %1118 = vmatpush1.msra.mxu0 %v131
    %1119 = vmatprep.subr.mxu0 %v128
    %1120 = vmatpush1.msra.mxu0 %v127
    %1121 = vmatprep.subr.mxu0 %v124
    %1122 = vmatpush1.msra.mxu0 %v123
    %1123 = vmatprep.subr.mxu0 %v120
    %1124 = vmatpush1.msra.mxu0 %v119
    %1125 = vmatprep.subr.mxu0 %v116
    %1126 = vmatpush1.msra.mxu0 %v115
    %1127 = vmatprep.subr.mxu0 %v112
    %1128 = vmatpush1.msra.mxu0 %v111
    %1129 = vmatprep.subr.mxu0 %v108
    %1130 = vmatpush1.msra.mxu0 %v107
    %1131 = vmatprep.subr.mxu0 %v104
    %1132 = vmatpush1.msra.mxu0 %v103
    %1133 = vmatprep.subr.mxu0 %v100
    %1134 = vmatpush1.msra.mxu0 %v99
    %1135 = vmatprep.subr.mxu0 %v96
    %1136 = vmatpush1.msra.mxu0 %v95
    %1137 = vmatprep.subr.mxu0 %v92
    %1138 = vmatpush1.msra.mxu0 %v91
    %1139 = vmatprep.subr.mxu0 %v88
    %1140 = vmatpush1.msra.mxu0 %v87
    %1141 = vmatprep.subr.mxu0 %v84
    %1142 = vmatpush1.msra.mxu0 %v83
    %1143 = vmatprep.subr.mxu0 0.0
    %1144 = vmatpush2.msra.mxu0 0.0
    %1145 = vmatprep.subr.mxu0 0.0
    %1146 = vmatpush2.msra.mxu0 0.0
    %1147 = vmatprep.subr.mxu0 0.0
    %1148 = vmatpush2.msra.mxu0 0.0
    %1149 = vmatprep.subr.mxu0 0.0
    %1150 = vmatpush2.msra.mxu0 0.0
    %1151 = vmatprep.subr.mxu0 0.0
    %1152 = vmatpush2.msra.mxu0 0.0
    %1153 = vmatprep.subr.mxu0 0.0
    %1154 = vmatpush2.msra.mxu0 0.0
    %1155 = vmatprep.subr.mxu0 0.0
    %1156 = vmatpush2.msra.mxu0 0.0
    %1157 = vmatprep.subr.mxu0 0.0
    %1158 = vmatpush2.msra.mxu0 0.0
    %1159 = vmatprep.subr.mxu0 0.0
    %1160 = vmatpush2.msra.mxu0 0.0
    %1161 = vmatprep.subr.mxu0 0.0
    %1162 = vmatpush2.msra.mxu0 0.0
    %1163 = vmatprep.subr.mxu0 0.0
    %1164 = vmatpush2.msra.mxu0 0.0
    %1165 = vmatprep.subr.mxu0 0.0
    %1166 = vmatpush2.msra.mxu0 0.0
    %1167 = vmatprep.subr.mxu0 0.0
    %1168 = vmatpush2.msra.mxu0 0.0
    %1169 = vmatprep.subr.mxu0 0.0
    %1170 = vmatpush2.msra.mxu0 0.0
    %1171 = vmatprep.subr.mxu0 0.0
    %1172 = vmatpush2.msra.mxu0 0.0
    %1173 = vmatprep.subr.mxu0 0.0
    %1174 = vmatpush2.msra.mxu0 0.0
    %1175 = vmatprep.mubr.f32.mxu0 0.0
    %1176 = vmatmul.mubr.f32.gmra.mxu0 %v1025
    %v1177 = vpop.f32.mrf.mxu0
    %v1178 = vadd.f32 0.0, %v1177
    %v1179 = vpop.f32.mrf.mxu0
    %v1180 = vadd.f32 0.0, %v1179
    %1181 = vdwg.mxu0
    %v1182 = vadd.f32 %v1036, %v1107
    %v1183 = vadd.f32 %v1037, %v1109
    %v1184 = vadd.f32 %v1038, %v1178
    %v1185 = vadd.f32 %v1039, %v1180
    %v1186 = vmul.f32 %v1182, 0.5
    %v1187 = vmul.f32 %v1183, 0.5
    %v1188 = vmul.f32 %v1184, 0.5
    %v1189 = vtanh.pop %v1186
    %v1190 = vtanh.pop %v1187
    %v1191 = vtanh.pop %v1188
    %v1192 = vmul.f32 %v1189, 0.5
    %v1193 = vmul.f32 %v1190, 0.5
    %v1194 = vmul.f32 %v1191, 0.5
    %v1195 = vadd.f32 %v1192, 0.5
    %v1196 = vadd.f32 %v1193, 0.5
    %v1197 = vadd.f32 %v1194, 0.5
    %v1198 = vtanh.pop %v1185
    %v1199 = vmul.f32 %v1196, %v1023
    %v1200 = vmul.f32 %v1195, %v1198
    %v1201 = vadd.f32 %v1199, %v1200
    %v1202 = vtanh.pop %v1201
    %v1203 = vmul.f32 %v1197, %v1202
    %s1204 = scalar_lea.vmem [#allocation12], 40
    %1205 = vst [vmem:[%s1204] sm:$0xff] %v1203
    %s1206 = sadd.s32 %s145, 5
    %p1207 = scmp.eq.s32.totalorder %s1206, 7
    // Predicated region
    $region58: #{tpu_custom_call.1} parent=1 // pred_check
      %p1208 = pneg %p1207
    $region59: #{tpu_custom_call.1} parent=1 // pred_check_branch
      %1210 = sbr.rel (%p1208) target = $region61
    $region60: #{tpu_custom_call.1} parent=1 // pred_region
      %1211 = vst [vmem:[#allocation13] sm:$0xff] %v1203
      %1212 = vst [vmem:[#allocation15] sm:$0xff] %v1201
    $region61: #{tpu_custom_call.1} parent=1 // pred_fallthru
      _
    %s1213 = scalar_lea.vmem [#allocation4], 192
    %v1214 = vld [vmem:[%s1213] sm:$0xff]
    %v1215 = vld [vmem:[%s1213 + $0x8] sm:$0xff]
    %v1216 = vld [vmem:[%s1213 + $0x10] sm:$0xff]
    %v1217 = vld [vmem:[%s1213 + $0x18] sm:$0xff]
    %1218 = vmatprep.subr.mxu0 %v142
    %1219 = vmatpush1.msra.mxu0 %v141
    %1220 = vmatprep.subr.mxu0 %v138
    %1221 = vmatpush1.msra.mxu0 %v137
    %1222 = vmatprep.subr.mxu0 %v134
    %1223 = vmatpush1.msra.mxu0 %v133
    %1224 = vmatprep.subr.mxu0 %v130
    %1225 = vmatpush1.msra.mxu0 %v129
    %1226 = vmatprep.subr.mxu0 %v126
    %1227 = vmatpush1.msra.mxu0 %v125
    %1228 = vmatprep.subr.mxu0 %v122
    %1229 = vmatpush1.msra.mxu0 %v121
    %1230 = vmatprep.subr.mxu0 %v118
    %1231 = vmatpush1.msra.mxu0 %v117
    %1232 = vmatprep.subr.mxu0 %v114
    %1233 = vmatpush1.msra.mxu0 %v113
    %1234 = vmatprep.subr.mxu0 %v110
    %1235 = vmatpush1.msra.mxu0 %v109
    %1236 = vmatprep.subr.mxu0 %v106
    %1237 = vmatpush1.msra.mxu0 %v105
    %1238 = vmatprep.subr.mxu0 %v102
    %1239 = vmatpush1.msra.mxu0 %v101
    %1240 = vmatprep.subr.mxu0 %v98
    %1241 = vmatpush1.msra.mxu0 %v97
    %1242 = vmatprep.subr.mxu0 %v94
    %1243 = vmatpush1.msra.mxu0 %v93
    %1244 = vmatprep.subr.mxu0 %v90
    %1245 = vmatpush1.msra.mxu0 %v89
    %1246 = vmatprep.subr.mxu0 %v86
    %1247 = vmatpush1.msra.mxu0 %v85
    %1248 = vmatprep.subr.mxu0 %v82
    %1249 = vmatpush1.msra.mxu0 %v81
    %1250 = vmatprep.subr.mxu0 0.0
    %1251 = vmatpush2.msra.mxu0 0.0
    %1252 = vmatprep.subr.mxu0 0.0
    %1253 = vmatpush2.msra.mxu0 0.0
    %1254 = vmatprep.subr.mxu0 0.0
    %1255 = vmatpush2.msra.mxu0 0.0
    %1256 = vmatprep.subr.mxu0 0.0
    %1257 = vmatpush2.msra.mxu0 0.0
    %1258 = vmatprep.subr.mxu0 0.0
    %1259 = vmatpush2.msra.mxu0 0.0
    %1260 = vmatprep.subr.mxu0 0.0
    %1261 = vmatpush2.msra.mxu0 0.0
    %1262 = vmatprep.subr.mxu0 0.0
    %1263 = vmatpush2.msra.mxu0 0.0
    %1264 = vmatprep.subr.mxu0 0.0
    %1265 = vmatpush2.msra.mxu0 0.0
    %1266 = vmatprep.subr.mxu0 0.0
    %1267 = vmatpush2.msra.mxu0 0.0
    %1268 = vmatprep.subr.mxu0 0.0
    %1269 = vmatpush2.msra.mxu0 0.0
    %1270 = vmatprep.subr.mxu0 0.0
    %1271 = vmatpush2.msra.mxu0 0.0
    %1272 = vmatprep.subr.mxu0 0.0
    %1273 = vmatpush2.msra.mxu0 0.0
    %1274 = vmatprep.subr.mxu0 0.0
    %1275 = vmatpush2.msra.mxu0 0.0
    %1276 = vmatprep.subr.mxu0 0.0
    %1277 = vmatpush2.msra.mxu0 0.0
    %1278 = vmatprep.subr.mxu0 0.0
    %1279 = vmatpush2.msra.mxu0 0.0
    %1280 = vmatprep.subr.mxu0 0.0
    %1281 = vmatpush2.msra.mxu0 0.0
    %1282 = vmatprep.mubr.f32.mxu0 0.0
    %1283 = vmatmul.mubr.f32.gmra.mxu0 %v1203
    %v1284 = vpop.f32.mrf.mxu0
    %v1285 = vadd.f32 0.0, %v1284
    %v1286 = vpop.f32.mrf.mxu0
    %v1287 = vadd.f32 0.0, %v1286
    %1288 = vdwg.mxu0
    %1289 = vmatprep.subr.mxu0 %v144
    %1290 = vmatpush1.msra.mxu0 %v143
    %1291 = vmatprep.subr.mxu0 %v140
    %1292 = vmatpush1.msra.mxu0 %v139
    %1293 = vmatprep.subr.mxu0 %v136
    %1294 = vmatpush1.msra.mxu0 %v135
    %1295 = vmatprep.subr.mxu0 %v132
    %1296 = vmatpush1.msra.mxu0 %v131
    %1297 = vmatprep.subr.mxu0 %v128
    %1298 = vmatpush1.msra.mxu0 %v127
    %1299 = vmatprep.subr.mxu0 %v124
    %1300 = vmatpush1.msra.mxu0 %v123
    %1301 = vmatprep.subr.mxu0 %v120
    %1302 = vmatpush1.msra.mxu0 %v119
    %1303 = vmatprep.subr.mxu0 %v116
    %1304 = vmatpush1.msra.mxu0 %v115
    %1305 = vmatprep.subr.mxu0 %v112
    %1306 = vmatpush1.msra.mxu0 %v111
    %1307 = vmatprep.subr.mxu0 %v108
    %1308 = vmatpush1.msra.mxu0 %v107
    %1309 = vmatprep.subr.mxu0 %v104
    %1310 = vmatpush1.msra.mxu0 %v103
    %1311 = vmatprep.subr.mxu0 %v100
    %1312 = vmatpush1.msra.mxu0 %v99
    %1313 = vmatprep.subr.mxu0 %v96
    %1314 = vmatpush1.msra.mxu0 %v95
    %1315 = vmatprep.subr.mxu0 %v92
    %1316 = vmatpush1.msra.mxu0 %v91
    %1317 = vmatprep.subr.mxu0 %v88
    %1318 = vmatpush1.msra.mxu0 %v87
    %1319 = vmatprep.subr.mxu0 %v84
    %1320 = vmatpush1.msra.mxu0 %v83
    %1321 = vmatprep.subr.mxu0 0.0
    %1322 = vmatpush2.msra.mxu0 0.0
    %1323 = vmatprep.subr.mxu0 0.0
    %1324 = vmatpush2.msra.mxu0 0.0
    %1325 = vmatprep.subr.mxu0 0.0
    %1326 = vmatpush2.msra.mxu0 0.0
    %1327 = vmatprep.subr.mxu0 0.0
    %1328 = vmatpush2.msra.mxu0 0.0
    %1329 = vmatprep.subr.mxu0 0.0
    %1330 = vmatpush2.msra.mxu0 0.0
    %1331 = vmatprep.subr.mxu0 0.0
    %1332 = vmatpush2.msra.mxu0 0.0
    %1333 = vmatprep.subr.mxu0 0.0
    %1334 = vmatpush2.msra.mxu0 0.0
    %1335 = vmatprep.subr.mxu0 0.0
    %1336 = vmatpush2.msra.mxu0 0.0
    %1337 = vmatprep.subr.mxu0 0.0
    %1338 = vmatpush2.msra.mxu0 0.0
    %1339 = vmatprep.subr.mxu0 0.0
    %1340 = vmatpush2.msra.mxu0 0.0
    %1341 = vmatprep.subr.mxu0 0.0
    %1342 = vmatpush2.msra.mxu0 0.0
    %1343 = vmatprep.subr.mxu0 0.0
    %1344 = vmatpush2.msra.mxu0 0.0
    %1345 = vmatprep.subr.mxu0 0.0
    %1346 = vmatpush2.msra.mxu0 0.0
    %1347 = vmatprep.subr.mxu0 0.0
    %1348 = vmatpush2.msra.mxu0 0.0
    %1349 = vmatprep.subr.mxu0 0.0
    %1350 = vmatpush2.msra.mxu0 0.0
    %1351 = vmatprep.subr.mxu0 0.0
    %1352 = vmatpush2.msra.mxu0 0.0
    %1353 = vmatprep.mubr.f32.mxu0 0.0
    %1354 = vmatmul.mubr.f32.gmra.mxu0 %v1203
    %v1355 = vpop.f32.mrf.mxu0
    %v1356 = vadd.f32 0.0, %v1355
    %v1357 = vpop.f32.mrf.mxu0
    %v1358 = vadd.f32 0.0, %v1357
    %1359 = vdwg.mxu0
    %v1360 = vadd.f32 %v1214, %v1285
    %v1361 = vadd.f32 %v1215, %v1287
    %v1362 = vadd.f32 %v1216, %v1356
    %v1363 = vadd.f32 %v1217, %v1358
    %v1364 = vmul.f32 %v1360, 0.5
    %v1365 = vmul.f32 %v1361, 0.5
    %v1366 = vmul.f32 %v1362, 0.5
    %v1367 = vtanh.pop %v1364
    %v1368 = vtanh.pop %v1365
    %v1369 = vtanh.pop %v1366
    %v1370 = vmul.f32 %v1367, 0.5
    %v1371 = vmul.f32 %v1368, 0.5
    %v1372 = vmul.f32 %v1369, 0.5
    %v1373 = vadd.f32 %v1370, 0.5
    %v1374 = vadd.f32 %v1371, 0.5
    %v1375 = vadd.f32 %v1372, 0.5
    %v1376 = vtanh.pop %v1363
    %v1377 = vmul.f32 %v1374, %v1201
    %v1378 = vmul.f32 %v1373, %v1376
    %v1379 = vadd.f32 %v1377, %v1378
    %v1380 = vtanh.pop %v1379
    %v1381 = vmul.f32 %v1375, %v1380
    %s1382 = scalar_lea.vmem [#allocation12], 48
    %1383 = vst [vmem:[%s1382] sm:$0xff] %v1381
    %s1384 = sadd.s32 %s145, 6
    %p1385 = scmp.eq.s32.totalorder %s1384, 7
    // Predicated region
    $region62: #{tpu_custom_call.1} parent=1 // pred_check
      %p1386 = pneg %p1385
    $region63: #{tpu_custom_call.1} parent=1 // pred_check_branch
      %1388 = sbr.rel (%p1386) target = $region65
    $region64: #{tpu_custom_call.1} parent=1 // pred_region
      %1389 = vst [vmem:[#allocation13] sm:$0xff] %v1381
      %1390 = vst [vmem:[#allocation15] sm:$0xff] %v1379
    $region65: #{tpu_custom_call.1} parent=1 // pred_fallthru
      _
    %s1391 = scalar_lea.vmem [#allocation4], 224
    %v1392 = vld [vmem:[%s1391] sm:$0xff]
    %v1393 = vld [vmem:[%s1391 + $0x8] sm:$0xff]
    %v1394 = vld [vmem:[%s1391 + $0x10] sm:$0xff]
    %v1395 = vld [vmem:[%s1391 + $0x18] sm:$0xff]
    %1396 = vmatprep.subr.mxu0 %v142
    %1397 = vmatpush1.msra.mxu0 %v141
    %1398 = vmatprep.subr.mxu0 %v138
    %1399 = vmatpush1.msra.mxu0 %v137
    %1400 = vmatprep.subr.mxu0 %v134
    %1401 = vmatpush1.msra.mxu0 %v133
    %1402 = vmatprep.subr.mxu0 %v130
    %1403 = vmatpush1.msra.mxu0 %v129
    %1404 = vmatprep.subr.mxu0 %v126
    %1405 = vmatpush1.msra.mxu0 %v125
    %1406 = vmatprep.subr.mxu0 %v122
    %1407 = vmatpush1.msra.mxu0 %v121
    %1408 = vmatprep.subr.mxu0 %v118
    %1409 = vmatpush1.msra.mxu0 %v117
    %1410 = vmatprep.subr.mxu0 %v114
    %1411 = vmatpush1.msra.mxu0 %v113
    %1412 = vmatprep.subr.mxu0 %v110
    %1413 = vmatpush1.msra.mxu0 %v109
    %1414 = vmatprep.subr.mxu0 %v106
    %1415 = vmatpush1.msra.mxu0 %v105
    %1416 = vmatprep.subr.mxu0 %v102
    %1417 = vmatpush1.msra.mxu0 %v101
    %1418 = vmatprep.subr.mxu0 %v98
    %1419 = vmatpush1.msra.mxu0 %v97
    %1420 = vmatprep.subr.mxu0 %v94
    %1421 = vmatpush1.msra.mxu0 %v93
    %1422 = vmatprep.subr.mxu0 %v90
    %1423 = vmatpush1.msra.mxu0 %v89
    %1424 = vmatprep.subr.mxu0 %v86
    %1425 = vmatpush1.msra.mxu0 %v85
    %1426 = vmatprep.subr.mxu0 %v82
    %1427 = vmatpush1.msra.mxu0 %v81
    %1428 = vmatprep.subr.mxu0 0.0
    %1429 = vmatpush2.msra.mxu0 0.0
    %1430 = vmatprep.subr.mxu0 0.0
    %1431 = vmatpush2.msra.mxu0 0.0
    %1432 = vmatprep.subr.mxu0 0.0
    %1433 = vmatpush2.msra.mxu0 0.0
    %1434 = vmatprep.subr.mxu0 0.0
    %1435 = vmatpush2.msra.mxu0 0.0
    %1436 = vmatprep.subr.mxu0 0.0
    %1437 = vmatpush2.msra.mxu0 0.0
    %1438 = vmatprep.subr.mxu0 0.0
    %1439 = vmatpush2.msra.mxu0 0.0
    %1440 = vmatprep.subr.mxu0 0.0
    %1441 = vmatpush2.msra.mxu0 0.0
    %1442 = vmatprep.subr.mxu0 0.0
    %1443 = vmatpush2.msra.mxu0 0.0
    %1444 = vmatprep.subr.mxu0 0.0
    %1445 = vmatpush2.msra.mxu0 0.0
    %1446 = vmatprep.subr.mxu0 0.0
    %1447 = vmatpush2.msra.mxu0 0.0
    %1448 = vmatprep.subr.mxu0 0.0
    %1449 = vmatpush2.msra.mxu0 0.0
    %1450 = vmatprep.subr.mxu0 0.0
    %1451 = vmatpush2.msra.mxu0 0.0
    %1452 = vmatprep.subr.mxu0 0.0
    %1453 = vmatpush2.msra.mxu0 0.0
    %1454 = vmatprep.subr.mxu0 0.0
    %1455 = vmatpush2.msra.mxu0 0.0
    %1456 = vmatprep.subr.mxu0 0.0
    %1457 = vmatpush2.msra.mxu0 0.0
    %1458 = vmatprep.subr.mxu0 0.0
    %1459 = vmatpush2.msra.mxu0 0.0
    %1460 = vmatprep.mubr.f32.mxu0 0.0
    %1461 = vmatmul.mubr.f32.gmra.mxu0 %v1381
    %v1462 = vpop.f32.mrf.mxu0
    %v1463 = vadd.f32 0.0, %v1462
    %v1464 = vpop.f32.mrf.mxu0
    %v1465 = vadd.f32 0.0, %v1464
    %1466 = vdwg.mxu0
    %1467 = vmatprep.subr.mxu0 %v144
    %1468 = vmatpush1.msra.mxu0 %v143
    %1469 = vmatprep.subr.mxu0 %v140
    %1470 = vmatpush1.msra.mxu0 %v139
    %1471 = vmatprep.subr.mxu0 %v136
    %1472 = vmatpush1.msra.mxu0 %v135
    %1473 = vmatprep.subr.mxu0 %v132
    %1474 = vmatpush1.msra.mxu0 %v131
    %1475 = vmatprep.subr.mxu0 %v128
    %1476 = vmatpush1.msra.mxu0 %v127
    %1477 = vmatprep.subr.mxu0 %v124
    %1478 = vmatpush1.msra.mxu0 %v123
    %1479 = vmatprep.subr.mxu0 %v120
    %1480 = vmatpush1.msra.mxu0 %v119
    %1481 = vmatprep.subr.mxu0 %v116
    %1482 = vmatpush1.msra.mxu0 %v115
    %1483 = vmatprep.subr.mxu0 %v112
    %1484 = vmatpush1.msra.mxu0 %v111
    %1485 = vmatprep.subr.mxu0 %v108
    %1486 = vmatpush1.msra.mxu0 %v107
    %1487 = vmatprep.subr.mxu0 %v104
    %1488 = vmatpush1.msra.mxu0 %v103
    %1489 = vmatprep.subr.mxu0 %v100
    %1490 = vmatpush1.msra.mxu0 %v99
    %1491 = vmatprep.subr.mxu0 %v96
    %1492 = vmatpush1.msra.mxu0 %v95
    %1493 = vmatprep.subr.mxu0 %v92
    %1494 = vmatpush1.msra.mxu0 %v91
    %1495 = vmatprep.subr.mxu0 %v88
    %1496 = vmatpush1.msra.mxu0 %v87
    %1497 = vmatprep.subr.mxu0 %v84
    %1498 = vmatpush1.msra.mxu0 %v83
    %1499 = vmatprep.subr.mxu0 0.0
    %1500 = vmatpush2.msra.mxu0 0.0
    %1501 = vmatprep.subr.mxu0 0.0
    %1502 = vmatpush2.msra.mxu0 0.0
    %1503 = vmatprep.subr.mxu0 0.0
    %1504 = vmatpush2.msra.mxu0 0.0
    %1505 = vmatprep.subr.mxu0 0.0
    %1506 = vmatpush2.msra.mxu0 0.0
    %1507 = vmatprep.subr.mxu0 0.0
    %1508 = vmatpush2.msra.mxu0 0.0
    %1509 = vmatprep.subr.mxu0 0.0
    %1510 = vmatpush2.msra.mxu0 0.0
    %1511 = vmatprep.subr.mxu0 0.0
    %1512 = vmatpush2.msra.mxu0 0.0
    %1513 = vmatprep.subr.mxu0 0.0
    %1514 = vmatpush2.msra.mxu0 0.0
    %1515 = vmatprep.subr.mxu0 0.0
    %1516 = vmatpush2.msra.mxu0 0.0
    %1517 = vmatprep.subr.mxu0 0.0
    %1518 = vmatpush2.msra.mxu0 0.0
    %1519 = vmatprep.subr.mxu0 0.0
    %1520 = vmatpush2.msra.mxu0 0.0
    %1521 = vmatprep.subr.mxu0 0.0
    %1522 = vmatpush2.msra.mxu0 0.0
    %1523 = vmatprep.subr.mxu0 0.0
    %1524 = vmatpush2.msra.mxu0 0.0
    %1525 = vmatprep.subr.mxu0 0.0
    %1526 = vmatpush2.msra.mxu0 0.0
    %1527 = vmatprep.subr.mxu0 0.0
    %1528 = vmatpush2.msra.mxu0 0.0
    %1529 = vmatprep.subr.mxu0 0.0
    %1530 = vmatpush2.msra.mxu0 0.0
    %1531 = vmatprep.mubr.f32.mxu0 0.0
    %1532 = vmatmul.mubr.f32.gmra.mxu0 %v1381
    %v1533 = vpop.f32.mrf.mxu0
    %v1534 = vadd.f32 0.0, %v1533
    %v1535 = vpop.f32.mrf.mxu0
    %v1536 = vadd.f32 0.0, %v1535
    %1537 = vdwg.mxu0
    %v1538 = vadd.f32 %v1392, %v1463
    %v1539 = vadd.f32 %v1393, %v1465
    %v1540 = vadd.f32 %v1394, %v1534
    %v1541 = vadd.f32 %v1395, %v1536
    %v1542 = vmul.f32 %v1538, 0.5
    %v1543 = vmul.f32 %v1539, 0.5
    %v1544 = vmul.f32 %v1540, 0.5
    %v1545 = vtanh.pop %v1542
    %v1546 = vtanh.pop %v1543
    %v1547 = vtanh.pop %v1544
    %v1548 = vmul.f32 %v1545, 0.5
    %v1549 = vmul.f32 %v1546, 0.5
    %v1550 = vmul.f32 %v1547, 0.5
    %v1551 = vadd.f32 %v1548, 0.5
    %v1552 = vadd.f32 %v1549, 0.5
    %v1553 = vadd.f32 %v1550, 0.5
    %v1554 = vtanh.pop %v1541
    %v1555 = vmul.f32 %v1552, %v1379
    %v1556 = vmul.f32 %v1551, %v1554
    %v1557 = vadd.f32 %v1555, %v1556
    %v1558 = vtanh.pop %v1557
    %v1559 = vmul.f32 %v1553, %v1558
    %s1560 = scalar_lea.vmem [#allocation12], 56
    %1561 = vst [vmem:[%s1560] sm:$0xff] %v1559
    %s1562 = sadd.s32 %s145, 7
    %p1563 = scmp.eq.s32.totalorder %s1562, 7
    // Predicated region
    $region66: #{tpu_custom_call.1} parent=1 // pred_check
      %p1564 = pneg %p1563
    $region67: #{tpu_custom_call.1} parent=1 // pred_check_branch
      %1566 = sbr.rel (%p1564) target = $region69
    $region68: #{tpu_custom_call.1} parent=1 // pred_region
      %1567 = vst [vmem:[#allocation13] sm:$0xff] %v1559
      %1568 = vst [vmem:[#allocation15] sm:$0xff] %v1557
    $region69: #{tpu_custom_call.1} parent=1 // pred_fallthru
      _
    %1569 = vst [vmem:[#allocation2] sm:$0xff] %v1559
    %1570 = vst [vmem:[#allocation3] sm:$0xff] %v1557
    // Predicated region
    $region70: #{tpu_custom_call.1} parent=1 // pred_check
      _
    $region71: #{tpu_custom_call.1} parent=1 // pred_check_branch
      %1572 = sbr.rel (0) target = $region73
    $region72: #{tpu_custom_call.1} parent=1 // pred_region
      %s1574 = ssub.s32 1024, 1024
      %1575 = vsyncadd [#allocation6], %s1574
      %s1576 = sshll.u32 [#allocation12], 4
      %s1577 = int_to_ptr.vmem [resolvable:$true] %s1576
      %1582 = dma.vmem_to_hbm [thread:$0]  %s1577, 1024, %s4, [#allocation6], 128, 128, 8
    $region73: #{tpu_custom_call.1} parent=1 // pred_fallthru
      _
    // Predicated region
    $region74: #{tpu_custom_call.1} parent=1 // pred_check
      _
    $region75: #{tpu_custom_call.1} parent=1 // pred_check_branch
      %1584 = sbr.rel (0) target = $region77
    $region76: #{tpu_custom_call.1} parent=1 // pred_region
      %s1586 = ssub.s32 128, 128
      %1587 = vsyncadd [#allocation14], %s1586
      %s1589 = sshll.u32 [#allocation13], 4
      %s1590 = int_to_ptr.vmem [resolvable:$true] %s1589
      %1592 = dma.vmem_to_hbm [thread:$0]  %s1590, 128, %s5, [#allocation14]
    $region77: #{tpu_custom_call.1} parent=1 // pred_fallthru
      _
    // Predicated region
    $region78: #{tpu_custom_call.1} parent=1 // pred_check
      _
    $region79: #{tpu_custom_call.1} parent=1 // pred_check_branch
      %1594 = sbr.rel (0) target = $region81
    $region80: #{tpu_custom_call.1} parent=1 // pred_region
      %s1596 = ssub.s32 128, 128
      %1597 = vsyncadd [#allocation14], %s1596
      %s1599 = sshll.u32 [#allocation15], 4
      %s1600 = int_to_ptr.vmem [resolvable:$true] %s1599
      %1602 = dma.vmem_to_hbm [thread:$0]  %s1600, 128, %s6, [#allocation14]
    $region81: #{tpu_custom_call.1} parent=1 // pred_fallthru
      _
    // Predicated region
    $region82: #{tpu_custom_call.1} parent=1 // pred_check
      _
    $region83: #{tpu_custom_call.1} parent=1 // pred_check_branch
      %1604 = sbr.rel (0) target = $region85
    $region84: #{tpu_custom_call.1} parent=1 // pred_region
      %1605 = dma.done [#allocation6], 1024
    $region85: #{tpu_custom_call.1} parent=1 // pred_fallthru
      _
    // Predicated region
    $region86: #{tpu_custom_call.1} parent=1 // pred_check
      _
    $region87: #{tpu_custom_call.1} parent=1 // pred_check_branch
      %1607 = sbr.rel (0) target = $region89
    $region88: #{tpu_custom_call.1} parent=1 // pred_region
      %1608 = dma.done [#allocation14], 128
    $region89: #{tpu_custom_call.1} parent=1 // pred_fallthru
      _
    // Predicated region
    $region90: #{tpu_custom_call.1} parent=1 // pred_check
      _
    $region91: #{tpu_custom_call.1} parent=1 // pred_check_branch
      %1610 = sbr.rel (0) target = $region93
    $region92: #{tpu_custom_call.1} parent=1 // pred_region
      %1611 = dma.done [#allocation14], 128
    $region93: #{tpu_custom_call.1} parent=1 // pred_fallthru
      _
    %1612 = vsyncpa [#allocation5], 1
    %1613 = vsyncpa [#allocation8], 1
    %1614 = vsyncpa [#allocation11], 1
    %1615 = vsyncpa [#allocation6], 1
    %1616 = vsyncpa [#allocation14], 1

</llo_original>
